<compile_context>
chip_gen: v7x
topology: tpu7x:2x2x1
jax: 0.10.0
libtpu: 0.0.40
codegen_flags: <defaults>
</compile_context>

<pallas_src>
import functools
import math

import jax
import jax.numpy as jnp
from jax.experimental import pallas as pl
from jax.experimental.pallas import tpu as pltpu

_VMEM_LIMIT = 64 * 1024 * 1024  # explicit scoped-VMEM budget (safe on v5e/v6e/v7x)


# ----------------------------- tiling helpers -------------------------------

def _round_up(x, m):
    return ((x + m - 1) // m) * m


def _pick_tile(dim, pref, align):
    """Return (tile, padded_dim).  Tile is either a multiple of `align`
    (8 sublanes / 128 lanes) or equal to the full (padded) array dim."""
    if dim <= align:
        return dim, dim
    if dim <= pref:
        t = _round_up(dim, align)
        return t, t
    return pref, _round_up(dim, pref)


def _pad2(a, r, c):
    if a.shape == (r, c):
        return a
    return jnp.pad(a, ((0, r - a.shape[0]), (0, c - a.shape[1])))


# ----------------------------- Pallas kernels ------------------------------

def _matmul_residual_kernel(x_ref, w_ref, r_ref, o_ref, acc_ref):
    """out = x @ w + residual, K-tiled with an f32 VMEM accumulator (P3)."""
    @pl.when(pl.program_id(2) == 0)
    def _():
        acc_ref[...] = jnp.zeros_like(acc_ref)

    acc_ref[...] += jnp.dot(x_ref[...].astype(jnp.bfloat16),
                            w_ref[...].astype(jnp.bfloat16),
                            preferred_element_type=jnp.float32)

    @pl.when(pl.program_id(2) == pl.num_programs(2) - 1)
    def _():
        o_ref[...] = acc_ref[...] + r_ref[...]


def _ln_matmul_kernel(x_ref, g_ref, b_ref, w_ref, o_ref, *, eps):
    """Fused LayerNorm (f32 stats) -> matmul (bf16 MXU, f32 accumulate)."""
    x = x_ref[...]
    mean = jnp.mean(x, axis=-1, keepdims=True)
    var = jnp.mean((x - mean) ** 2, axis=-1, keepdims=True)
    ln = (x - mean) * jax.lax.rsqrt(var + eps) * g_ref[...] + b_ref[...]
    o_ref[...] = jnp.dot(ln.astype(jnp.bfloat16), w_ref[...].astype(jnp.bfloat16),
                         preferred_element_type=jnp.float32)


def _ffn_kernel(x_ref, g_ref, b_ref, w1_ref, b1_ref, w2_ref, b2_ref, o_ref, *, eps):
    """Fused LayerNorm -> Linear -> ReLU -> Linear -> residual add."""
    x = x_ref[...]
    mean = jnp.mean(x, axis=-1, keepdims=True)
    var = jnp.mean((x - mean) ** 2, axis=-1, keepdims=True)
    ln = (x - mean) * jax.lax.rsqrt(var + eps) * g_ref[...] + b_ref[...]
    h = jnp.dot(ln.astype(jnp.bfloat16), w1_ref[...].astype(jnp.bfloat16),
                preferred_element_type=jnp.float32) + b1_ref[...]
    h = jnp.maximum(h, 0.0)                      # ReLU (use_leaky_relu=False)
    y = jnp.dot(h.astype(jnp.bfloat16), w2_ref[...].astype(jnp.bfloat16),
                preferred_element_type=jnp.float32) + b2_ref[...]
    o_ref[...] = x + y                           # fused residual (pre-norm input)


def _attention_kernel(len_ref, q_ref, kv_ref, o_ref, *, scale, n_heads, causal, use_len):
    """One batch element per grid step; all heads processed in-kernel.
    Mask built from `lengths` (SMEM) / causal iota — no mask tensor in HBM.
    kv is used for both keys and values (K_linear(V) == K_linear(K) here)."""
    b = pl.program_id(0)
    q = q_ref[0].astype(jnp.bfloat16)            # [Sq, H]
    kv = kv_ref[0].astype(jnp.bfloat16)          # [Sk, H]
    Sq, H = q.shape
    Sk = kv.shape[0]
    d = H // n_heads

    key_idx = jax.lax.broadcasted_iota(jnp.int32, (Sq, Sk), 1)
    masked = None
    if use_len:
        masked = key_idx >= len_ref[b]           # padding mask over keys
    if causal:
        qry_idx = jax.lax.broadcasted_iota(jnp.int32, (Sq, Sk), 0)
        cm = key_idx > qry_idx                   # future mask
        masked = cm if masked is None else jnp.logical_or(masked, cm)

    dn = (((1,), (1,)), ((), ()))                # contract last dims: no K transpose
    ctx = []
    # TODO(synk): for long sequences switch to flash-style (q_tile, kv_tile) grid
    # with online max/sum instead of the full [Sq, Sk] score matrix per head.
    for h in range(n_heads):
        qh = q[:, h * d:(h + 1) * d]
        kh = kv[:, h * d:(h + 1) * d]
        w = jax.lax.dot_general(qh, kh, dn, preferred_element_type=jnp.float32)
        if masked is not None:
            w = jnp.where(masked, -jnp.inf, w)   # masked_fill BEFORE scaling (ref parity)
        w = w * scale
        w = w - jnp.max(w, axis=-1, keepdims=True)
        e = jnp.exp(w)
        p = e * pl.reciprocal(jnp.sum(e, axis=-1, keepdims=True), approx=True)
        ctx.append(jnp.dot(p.astype(jnp.bfloat16), kh,     # value == key (ref bug)
                           preferred_element_type=jnp.float32))
    o_ref[0] = jnp.concatenate(ctx, axis=-1)     # single lane-dense store


def _generator_kernel(x_ref, g_ref, b_ref, w_ref, wb_ref, o_ref, *, eps):
    """Fused LayerNorm -> Linear(+bias) -> LogSoftmax."""
    x = x_ref[...]
    mean = jnp.mean(x, axis=-1, keepdims=True)
    var = jnp.mean((x - mean) ** 2, axis=-1, keepdims=True)
    ln = (x - mean) * jax.lax.rsqrt(var + eps) * g_ref[...] + b_ref[...]
    logits = jnp.dot(ln.astype(jnp.bfloat16), w_ref[...].astype(jnp.bfloat16),
                     preferred_element_type=jnp.float32) + wb_ref[...]
    mx = jnp.max(logits, axis=-1, keepdims=True)
    s = logits - mx
    o_ref[...] = s - jnp.log(jnp.sum(jnp.exp(s), axis=-1, keepdims=True))


# ----------------------------- Pallas wrappers ------------------------------

def pallas_matmul(x, w, residual):
    """out = x @ w + residual, tiled over (M//tm, N//tn, K//tk)."""
    M, K = x.shape
    N = w.shape[1]
    tm, Mp = _pick_tile(M, 256, 8)
    tk, Kp = _pick_tile(K, 512, 128)
    tn, Np = _pick_tile(N, 256, 128)
    xp, wp, rp = _pad2(x, Mp, Kp), _pad2(w, Kp, Np), _pad2(residual, Mp, Np)
    out = pl.pallas_call(
        _matmul_residual_kernel,
        out_shape=jax.ShapeDtypeStruct((Mp, Np), jnp.float32),
        grid_spec=pltpu.PrefetchScalarGridSpec(
            num_scalar_prefetch=0,
            grid=(Mp // tm, Np // tn, Kp // tk),
            in_specs=[pl.BlockSpec((tm, tk), lambda i, j, k: (i, k)),
                      pl.BlockSpec((tk, tn), lambda i, j, k: (k, j)),
                      pl.BlockSpec((tm, tn), lambda i, j, k: (i, j))],
            out_specs=pl.BlockSpec((tm, tn), lambda i, j, k: (i, j)),
            scratch_shapes=[pltpu.VMEM((tm, tn), jnp.float32)]),
        compiler_params=pltpu.CompilerParams(
            dimension_semantics=("parallel", "parallel", "arbitrary"),
            vmem_limit_bytes=_VMEM_LIMIT),
    )(xp, wp, rp)
    return out[:M, :N]


def pallas_ln_matmul(x2d, gamma, beta, w, *, eps=1e-5):
    """Row-tiled fused LayerNorm + projection; weight block stays resident."""
    R, H = x2d.shape
    N = w.shape[1]
    tm, Rp = _pick_tile(R, 256, 8)
    xp = x2d if Rp == R else jnp.pad(x2d, ((0, Rp - R), (0, 0)))
    out = pl.pallas_call(
        functools.partial(_ln_matmul_kernel, eps=eps),
        out_shape=jax.ShapeDtypeStruct((Rp, N), jnp.float32),
        grid_spec=pltpu.PrefetchScalarGridSpec(
            num_scalar_prefetch=0, grid=(Rp // tm,),
            in_specs=[pl.BlockSpec((tm, H), lambda i: (i, 0)),
                      pl.BlockSpec((1, H), lambda i: (0, 0)),
                      pl.BlockSpec((1, H), lambda i: (0, 0)),
                      pl.BlockSpec((H, N), lambda i: (0, 0))],
            out_specs=pl.BlockSpec((tm, N), lambda i: (i, 0))),
        compiler_params=pltpu.CompilerParams(
            dimension_semantics=("parallel",), vmem_limit_bytes=_VMEM_LIMIT),
    )(xp, gamma.reshape(1, H), beta.reshape(1, H), w)
    return out[:R] if Rp != R else out


def pallas_ffn(x, gamma, beta, w1, b1, w2, b2, *, eps=1e-5):
    """Row-tiled fused LN + FFN + residual.
    TODO(synk): for very large H also tile Hf with an accumulator."""
    B, S, H = x.shape
    Hf = w1.shape[1]
    R = B * S
    tm, Rp = _pick_tile(R, 256, 8)
    x2 = x.reshape(R, H)
    xp = x2 if Rp == R else jnp.pad(x2, ((0, Rp - R), (0, 0)))
    out = pl.pallas_call(
        functools.partial(_ffn_kernel, eps=eps),
        out_shape=jax.ShapeDtypeStruct((Rp, H), jnp.float32),
        grid_spec=pltpu.PrefetchScalarGridSpec(
            num_scalar_prefetch=0, grid=(Rp // tm,),
            in_specs=[pl.BlockSpec((tm, H), lambda i: (i, 0)),
                      pl.BlockSpec((1, H), lambda i: (0, 0)),
                      pl.BlockSpec((1, H), lambda i: (0, 0)),
                      pl.BlockSpec((H, Hf), lambda i: (0, 0)),
                      pl.BlockSpec((1, Hf), lambda i: (0, 0)),
                      pl.BlockSpec((Hf, H), lambda i: (0, 0)),
                      pl.BlockSpec((1, H), lambda i: (0, 0))],
            out_specs=pl.BlockSpec((tm, H), lambda i: (i, 0))),
        compiler_params=pltpu.CompilerParams(
            dimension_semantics=("parallel",), vmem_limit_bytes=_VMEM_LIMIT),
    )(xp, gamma.reshape(1, H), beta.reshape(1, H), w1, b1.reshape(1, Hf),
      w2, b2.reshape(1, H))
    out = out[:R] if Rp != R else out
    return out.reshape(B, S, H)


def pallas_attention(q, kv, lengths, *, n_heads, dk, causal, use_len):
    B, Sq, H = q.shape
    Sk = kv.shape[1]
    kern = functools.partial(_attention_kernel, scale=1.0 / math.sqrt(float(dk)),
                             n_heads=n_heads, causal=causal, use_len=use_len)
    return pl.pallas_call(
        kern,
        out_shape=jax.ShapeDtypeStruct((B, Sq, H), jnp.float32),
        grid_spec=pltpu.PrefetchScalarGridSpec(
            num_scalar_prefetch=1,            # lengths -> SMEM
            grid=(B,),
            in_specs=[pl.BlockSpec((1, Sq, H), lambda b, lens: (b, 0, 0)),
                      pl.BlockSpec((1, Sk, H), lambda b, lens: (b, 0, 0))],
            out_specs=pl.BlockSpec((1, Sq, H), lambda b, lens: (b, 0, 0))),
        compiler_params=pltpu.CompilerParams(
            dimension_semantics=("parallel",), vmem_limit_bytes=_VMEM_LIMIT),
    )(lengths, q, kv)


def pallas_generator(x, gamma, beta, w, bias, *, eps=1e-5):
    """Row-tiled fused LN + Linear + LogSoftmax.
    TODO(synk): for large vocabularies tile V with an online logsumexp."""
    B, S, H = x.shape
    V = w.shape[1]
    R = B * S
    tm, Rp = _pick_tile(R, 256, 8)
    x2 = x.reshape(R, H)
    xp = x2 if Rp == R else jnp.pad(x2, ((0, Rp - R), (0, 0)))
    out = pl.pallas_call(
        functools.partial(_generator_kernel, eps=eps),
        out_shape=jax.ShapeDtypeStruct((Rp, V), jnp.float32),
        grid_spec=pltpu.PrefetchScalarGridSpec(
            num_scalar_prefetch=0, grid=(Rp // tm,),
            in_specs=[pl.BlockSpec((tm, H), lambda i: (i, 0)),
                      pl.BlockSpec((1, H), lambda i: (0, 0)),
                      pl.BlockSpec((1, H), lambda i: (0, 0)),
                      pl.BlockSpec((H, V), lambda i: (0, 0)),
                      pl.BlockSpec((1, V), lambda i: (0, 0))],
            out_specs=pl.BlockSpec((tm, V), lambda i: (i, 0))),
        compiler_params=pltpu.CompilerParams(
            dimension_semantics=("parallel",), vmem_limit_bytes=_VMEM_LIMIT),
    )(xp, gamma.reshape(1, H), beta.reshape(1, H), w, bias.reshape(1, V))
    out = out[:R] if Rp != R else out
    return out.reshape(B, S, V)


# ----------------------------- Model (glue) ---------------------------------

def multi_head_self(p, ln_g, ln_b, x, lengths, *, hidden, n_splits, causal, use_len):
    """Pre-norm self-attention: LN fused into Q/K projection, residual fused
    into the output projection.  K and V projections are identical (ref bug)."""
    B, S, H = x.shape
    x2 = x.reshape(B * S, H)
    wqk = jnp.concatenate([p["Wq"], p["Wk"]], axis=1)       # share the x tile
    qk = pallas_ln_matmul(x2, ln_g, ln_b, wqk)               # [B*S, 2H]
    q = qk[:, :H].reshape(B, S, H)
    kv = qk[:, H:].reshape(B, S, H)
    c = pallas_attention(q, kv, lengths, n_heads=n_splits, dk=hidden // n_splits,
                         causal=causal, use_len=use_len)
    out = pallas_matmul(c.reshape(B * S, H), p["Wo"], residual=x2)
    return out.reshape(B, S, H)


def multi_head_cross(p, ln_g, ln_b, xq, xkv, lengths, *, hidden, n_splits):
    B, Sq, H = xq.shape
    Sk = xkv.shape[1]
    xq2 = xq.reshape(B * Sq, H)
    q = pallas_ln_matmul(xq2, ln_g, ln_b, p["Wq"]).reshape(B, Sq, H)
    kv = pallas_ln_matmul(xkv.reshape(B * Sk, H), ln_g, ln_b, p["Wk"]).reshape(B, Sk, H)
    c = pallas_attention(q, kv, lengths, n_heads=n_splits, dk=hidden // n_splits,
                         causal=False, use_len=True)
    out = pallas_matmul(c.reshape(B * Sq, H), p["Wo"], residual=xq2)
    return out.reshape(B, Sq, H)


def encoder_block(p, x, lengths, hidden, n_splits):
    z = multi_head_self(p["attn"], p["attn_norm_g"], p["attn_norm_b"], x, lengths,
                        hidden=hidden, n_splits=n_splits, causal=False, use_len=True)
    z = pallas_ffn(z, p["fc_norm_g"], p["fc_norm_b"],
                   p["fc_w1"], p["fc_b1"], p["fc_w2"], p["fc_b2"])
    return z


def decoder_block(p, x, kv, lengths, hidden, n_splits):
    # prev is None path (full-sequence forward)
    z = multi_head_self(p["mattn"], p["mattn_norm_g"], p["mattn_norm_b"], x, lengths,
                        hidden=hidden, n_splits=n_splits, causal=True, use_len=False)
    z = multi_head_cross(p["attn"], p["attn_norm_g"], p["attn_norm_b"], z, kv, lengths,
                         hidden=hidden, n_splits=n_splits)
    z = pallas_ffn(z, p["fc_norm_g"], p["fc_norm_b"],
                   p["fc_w1"], p["fc_b1"], p["fc_w2"], p["fc_b2"])
    return z


def make_pos_enc(hidden, max_length):
    pos = jnp.arange(max_length, dtype=jnp.float32)[:, None]
    dim = jnp.arange(hidden // 2, dtype=jnp.float32)[None, :]
    angle = pos / jnp.power(10000.0, dim / float(hidden))
    enc = jnp.zeros((max_length, hidden), jnp.float32)
    enc = enc.at[:, 0::2].set(jnp.sin(angle))
    enc = enc.at[:, 1::2].set(jnp.cos(angle))
    return enc


def transformer_forward(params, x_tokens, lengths, y_tokens, cfg):
    hidden, n_splits = cfg["hidden"], cfg["n_splits"]
    B, Sx = x_tokens.shape
    Sy = y_tokens.shape[1]
    lengths = jnp.asarray(lengths, jnp.int32)

    pos_enc = params["pos_enc"]
    # TODO(synk): embedding gather kept in XLA (data-dependent gather).
    z = params["emb_enc"][x_tokens] + pos_enc[None, :Sx, :]     # emb_dropout = identity
    for p in params["encoder"]:
        z = encoder_block(p, z, lengths, hidden, n_splits)

    h = params["emb_dec"][y_tokens] + pos_enc[None, :Sy, :]
    for p in params["decoder"]:
        h = decoder_block(p, h, z, lengths, hidden, n_splits)

    return pallas_generator(h, params["gen_g"], params["gen_b"],
                            params["gen_w"], params["gen_bias"])


def init_params(key, cfg):
    H, Hf = cfg["hidden"], 4 * cfg["hidden"]
    keys = iter(jax.random.split(key, 256))

    def normal(shape, scale=0.05):
        return scale * jax.random.normal(next(keys), shape, jnp.float32)

    ones = lambda n: jnp.ones((n,), jnp.float32)
    zeros = lambda n: jnp.zeros((n,), jnp.float32)

    def mha():
        return dict(Wq=normal((H, H)), Wk=normal((H, H)),
                    Wv=normal((H, H)),  # exists in module; unused by reference forward
                    Wo=normal((H, H)))

    def enc_block():
        return dict(attn=mha(),
                    attn_norm_g=ones(H), attn_norm_b=zeros(H),
                    fc_w1=normal((H, Hf)), fc_b1=zeros(Hf),
                    fc_w2=normal((Hf, H)), fc_b2=zeros(H),
                    fc_norm_g=ones(H), fc_norm_b=zeros(H))

    def dec_block():
        return dict(mattn=mha(), mattn_norm_g=ones(H), mattn_norm_b=zeros(H),
                    attn=mha(), attn_norm_g=ones(H), attn_norm_b=zeros(H),
                    fc_w1=normal((H, Hf)), fc_b1=zeros(Hf),
                    fc_w2=normal((Hf, H)), fc_b2=zeros(H),
                    fc_norm_g=ones(H), fc_norm_b=zeros(H))

    return dict(
        emb_enc=normal((cfg["input_size"], H), 1.0),
        emb_dec=normal((cfg["output_size"], H), 1.0),
        pos_enc=make_pos_enc(H, cfg["max_length"]),
        encoder=[enc_block() for _ in range(cfg["n_enc_blocks"])],
        decoder=[dec_block() for _ in range(cfg["n_dec_blocks"])],
        gen_g=ones(H), gen_b=zeros(H),
        gen_w=normal((H, cfg["output_size"])),
        gen_bias=zeros(cfg["output_size"]),
    )


if __name__ == "__main__":
    cfg = dict(input_size=16, hidden=32, output_size=16, n_splits=4,
               n_enc_blocks=2, n_dec_blocks=2, max_length=64)
    params = init_params(jax.random.PRNGKey(0), cfg)

    kx, ky = jax.random.split(jax.random.PRNGKey(0), 2)
    B, Sx, Sy = 2, 8, 8
    x_tokens = jax.random.randint(kx, (B, Sx), 0, cfg["input_size"], dtype=jnp.int32)
    y_tokens = jax.random.randint(ky, (B, Sy), 0, cfg["output_size"], dtype=jnp.int32)
    lengths = jnp.array([8, 5], jnp.int32)

    fwd = jax.jit(functools.partial(transformer_forward, cfg=cfg))
    y_hat = jax.block_until_ready(fwd(params, x_tokens, lengths, y_tokens))

    assert y_hat.shape == (B, Sy, cfg["output_size"])
    assert bool(jnp.all(jnp.isfinite(y_hat)))
    # rows of log-softmax must sum to ~1 in prob space
    assert bool(jnp.allclose(jnp.sum(jnp.exp(y_hat), axis=-1), 1.0, atol=1e-4))
    print("KERNEL_OK")
</pallas_src>

<mosaic_0001>
module attributes {stable_mosaic.version = 11 : i64} {
  func.func @_matmul_residual_kernel(%arg0: i32, %arg1: i32, %arg2: i32, %arg3: memref<16x32xf32, #tpu.memory_space<vmem>>, %arg4: memref<32x32xf32, #tpu.memory_space<vmem>>, %arg5: memref<16x32xf32, #tpu.memory_space<vmem>>, %arg6: memref<16x32xf32, #tpu.memory_space<vmem>>, %arg7: memref<16x32xf32, #tpu.memory_space<vmem>>) attributes {dimension_semantics = [#tpu.dimension_semantics<parallel>, #tpu.dimension_semantics<parallel>, #tpu.dimension_semantics<arbitrary>], iteration_bounds = array<i64: 1, 1, 1>, scalar_prefetch = 0 : i64, scratch_operands = 1 : i64, tpu.core_type = #tpu.core_type<tc>, window_params = [{transform_indices = @transform_0, window_bounds = array<i64: 16, 32>}, {transform_indices = @transform_1, window_bounds = array<i64: 32, 32>}, {transform_indices = @transform_2, window_bounds = array<i64: 16, 32>}, {transform_indices = @transform_3, window_bounds = array<i64: 16, 32>}]} {
    %c0_i32 = arith.constant 0 : i32
    %0 = arith.cmpi eq, %arg2, %c0_i32 : i32
    %1 = arith.extui %0 : i1 to i32
    %c0_i32_0 = arith.constant 0 : i32
    %2 = arith.cmpi ne, %1, %c0_i32_0 : i32
    scf.if %2 {
      %cst_10 = arith.constant 0.000000e+00 : f32
      %14 = vector.broadcast %cst_10 : f32 to vector<16x32xf32>
      %c0_11 = arith.constant 0 : index
      %c0_12 = arith.constant 0 : index
      %15 = vector.load %arg7[%c0_11, %c0_12] : memref<16x32xf32, #tpu.memory_space<vmem>>, vector<16x32xf32>
      tpu.vector_store %arg7[%c0_11, %c0_12], %14 {strides = array<i32>} : memref<16x32xf32, #tpu.memory_space<vmem>>, vector<16x32xf32>,
    } else {
    }
    %c0 = arith.constant 0 : index
    %c0_1 = arith.constant 0 : index
    %3 = vector.load %arg7[%c0, %c0_1] : memref<16x32xf32, #tpu.memory_space<vmem>>, vector<16x32xf32>
    %c0_2 = arith.constant 0 : index
    %c0_3 = arith.constant 0 : index
    %4 = vector.load %arg3[%c0_2, %c0_3] : memref<16x32xf32, #tpu.memory_space<vmem>>, vector<16x32xf32>
    %5 = arith.truncf %4 : vector<16x32xf32> to vector<16x32xbf16>
    %c0_4 = arith.constant 0 : index
    %c0_5 = arith.constant 0 : index
    %6 = vector.load %arg4[%c0_4, %c0_5] : memref<32x32xf32, #tpu.memory_space<vmem>>, vector<32x32xf32>
    %7 = arith.truncf %6 : vector<32x32xf32> to vector<32x32xbf16>
    %cst = arith.constant dense<0.000000e+00> : vector<16x32xf32>
    %8 = tpu.matmul %5, %7, %cst {dimension_numbers = #tpu.dot_dimension_numbers<[1], [0], [0], [1], [0, 0, 1, 1], [], []>} : vector<16x32xbf16>, vector<32x32xbf16>, vector<16x32xf32> -> vector<16x32xf32>
    %9 = arith.addf %3, %8 : vector<16x32xf32>
    %c0_6 = arith.constant 0 : index
    %c0_7 = arith.constant 0 : index
    %10 = vector.load %arg7[%c0_6, %c0_7] : memref<16x32xf32, #tpu.memory_space<vmem>>, vector<16x32xf32>
    tpu.vector_store %arg7[%c0_6, %c0_7], %9 {strides = array<i32>} : memref<16x32xf32, #tpu.memory_space<vmem>>, vector<16x32xf32>,
    %c0_i32_8 = arith.constant 0 : i32
    %11 = arith.cmpi eq, %arg2, %c0_i32_8 : i32
    %12 = arith.extui %11 : i1 to i32
    %c0_i32_9 = arith.constant 0 : i32
    %13 = arith.cmpi ne, %12, %c0_i32_9 : i32
    scf.if %13 {
      %c0_10 = arith.constant 0 : index
      %c0_11 = arith.constant 0 : index
      %14 = vector.load %arg7[%c0_10, %c0_11] : memref<16x32xf32, #tpu.memory_space<vmem>>, vector<16x32xf32>
      %c0_12 = arith.constant 0 : index
      %c0_13 = arith.constant 0 : index
      %15 = vector.load %arg5[%c0_12, %c0_13] : memref<16x32xf32, #tpu.memory_space<vmem>>, vector<16x32xf32>
      %16 = arith.addf %14, %15 : vector<16x32xf32>
      %c0_14 = arith.constant 0 : index
      %c0_15 = arith.constant 0 : index
      %17 = vector.load %arg6[%c0_14, %c0_15] : memref<16x32xf32, #tpu.memory_space<vmem>>, vector<16x32xf32>
      tpu.vector_store %arg6[%c0_14, %c0_15], %16 {strides = array<i32>} : memref<16x32xf32, #tpu.memory_space<vmem>>, vector<16x32xf32>,
    } else {
    }
    return
  }
  func.func @transform_0(%arg0: i32, %arg1: i32, %arg2: i32) -> (i32, i32) {
    %c0_i32 = arith.constant 0 : i32
    return %arg0, %arg2 : i32, i32
  }
  func.func @transform_1(%arg0: i32, %arg1: i32, %arg2: i32) -> (i32, i32) {
    %c0_i32 = arith.constant 0 : i32
    return %arg2, %arg1 : i32, i32
  }
  func.func @transform_2(%arg0: i32, %arg1: i32, %arg2: i32) -> (i32, i32) {
    %c0_i32 = arith.constant 0 : i32
    return %arg0, %arg1 : i32, i32
  }
  func.func @transform_3(%arg0: i32, %arg1: i32, %arg2: i32) -> (i32, i32) {
    %c0_i32 = arith.constant 0 : i32
    return %arg0, %arg1 : i32, i32
  }
}

module attributes {stable_mosaic.version = 11 : i64} {
  func.func @_ln_matmul_kernel(%arg0: i32, %arg1: memref<16x32xf32, #tpu.memory_space<vmem>>, %arg2: memref<1x32xf32, #tpu.memory_space<vmem>>, %arg3: memref<1x32xf32, #tpu.memory_space<vmem>>, %arg4: memref<32x64xf32, #tpu.memory_space<vmem>>, %arg5: memref<16x64xf32, #tpu.memory_space<vmem>>) attributes {dimension_semantics = [#tpu.dimension_semantics<parallel>], iteration_bounds = array<i64: 1>, scalar_prefetch = 0 : i64, scratch_operands = 0 : i64, tpu.core_type = #tpu.core_type<tc>, window_params = [{transform_indices = @transform_0, window_bounds = array<i64: 16, 32>}, {pipeline_mode = #tpu.pipeline_mode<synchronous>, transform_indices = @transform_1, window_bounds = array<i64: 1, 32>}, {pipeline_mode = #tpu.pipeline_mode<synchronous>, transform_indices = @transform_2, window_bounds = array<i64: 1, 32>}, {pipeline_mode = #tpu.pipeline_mode<synchronous>, transform_indices = @transform_3, window_bounds = array<i64: 32, 64>}, {transform_indices = @transform_4, window_bounds = array<i64: 16, 64>}]} {
    %c0 = arith.constant 0 : index
    %c0_0 = arith.constant 0 : index
    %0 = vector.load %arg1[%c0, %c0_0] : memref<16x32xf32, #tpu.memory_space<vmem>>, vector<16x32xf32>
    %cst = arith.constant dense<0.000000e+00> : vector<16xf32>
    %1 = vector.multi_reduction <add>, %0, %cst [1] : vector<16x32xf32> to vector<16xf32>
    %2 = vector.shape_cast %1 : vector<16xf32> to vector<16x1xf32>
    %cst_1 = arith.constant 3.200000e+01 : f32
    %3 = vector.broadcast %cst_1 : f32 to vector<16x1xf32>
    %4 = arith.divf %2, %3 : vector<16x1xf32>
    %5 = vector.broadcast %4 : vector<16x1xf32> to vector<16x32xf32>
    %6 = arith.subf %0, %5 : vector<16x32xf32>
    %7 = arith.mulf %6, %6 : vector<16x32xf32>
    %cst_2 = arith.constant dense<0.000000e+00> : vector<16xf32>
    %8 = vector.multi_reduction <add>, %7, %cst_2 [1] : vector<16x32xf32> to vector<16xf32>
    %9 = vector.shape_cast %8 : vector<16xf32> to vector<16x1xf32>
    %cst_3 = arith.constant 3.200000e+01 : f32
    %10 = vector.broadcast %cst_3 : f32 to vector<16x1xf32>
    %11 = arith.divf %9, %10 : vector<16x1xf32>
    %12 = vector.broadcast %4 : vector<16x1xf32> to vector<16x32xf32>
    %13 = arith.subf %0, %12 : vector<16x32xf32>
    %cst_4 = arith.constant 9.99999974E-6 : f32
    %14 = vector.broadcast %cst_4 : f32 to vector<16x1xf32>
    %15 = arith.addf %11, %14 : vector<16x1xf32>
    %16 = math.rsqrt %15 : vector<16x1xf32>
    %17 = vector.broadcast %16 : vector<16x1xf32> to vector<16x32xf32>
    %18 = arith.mulf %13, %17 : vector<16x32xf32>
    %c0_5 = arith.constant 0 : index
    %c0_6 = arith.constant 0 : index
    %19 = vector.load %arg2[%c0_5, %c0_6] : memref<1x32xf32, #tpu.memory_space<vmem>>, vector<1x32xf32>
    %20 = vector.broadcast %19 : vector<1x32xf32> to vector<16x32xf32>
    %21 = arith.mulf %18, %20 : vector<16x32xf32>
    %c0_7 = arith.constant 0 : index
    %c0_8 = arith.constant 0 : index
    %22 = vector.load %arg3[%c0_7, %c0_8] : memref<1x32xf32, #tpu.memory_space<vmem>>, vector<1x32xf32>
    %23 = vector.broadcast %22 : vector<1x32xf32> to vector<16x32xf32>
    %24 = arith.addf %21, %23 : vector<16x32xf32>
    %25 = arith.truncf %24 : vector<16x32xf32> to vector<16x32xbf16>
    %c0_9 = arith.constant 0 : index
    %c0_10 = arith.constant 0 : index
    %26 = vector.load %arg4[%c0_9, %c0_10] : memref<32x64xf32, #tpu.memory_space<vmem>>, vector<32x64xf32>
    %27 = arith.truncf %26 : vector<32x64xf32> to vector<32x64xbf16>
    %cst_11 = arith.constant dense<0.000000e+00> : vector<16x64xf32>
    %28 = tpu.matmul %25, %27, %cst_11 {dimension_numbers = #tpu.dot_dimension_numbers<[1], [0], [0], [1], [0, 0, 1, 1], [], []>} : vector<16x32xbf16>, vector<32x64xbf16>, vector<16x64xf32> -> vector<16x64xf32>
    %c0_12 = arith.constant 0 : index
    %c0_13 = arith.constant 0 : index
    %29 = vector.load %arg5[%c0_12, %c0_13] : memref<16x64xf32, #tpu.memory_space<vmem>>, vector<16x64xf32>
    tpu.vector_store %arg5[%c0_12, %c0_13], %28 {strides = array<i32>} : memref<16x64xf32, #tpu.memory_space<vmem>>, vector<16x64xf32>,
    return
  }
  func.func @transform_0(%arg0: i32) -> (i32, i32) {
    %c0_i32 = arith.constant 0 : i32
    %c0_i32_0 = arith.constant 0 : i32
    return %arg0, %c0_i32 : i32, i32
  }
  func.func @transform_1(%arg0: i32) -> (i32, i32) {
    %c0_i32 = arith.constant 0 : i32
    %c0_i32_0 = arith.constant 0 : i32
    %c0_i32_1 = arith.constant 0 : i32
    return %c0_i32, %c0_i32_0 : i32, i32
  }
  func.func @transform_2(%arg0: i32) -> (i32, i32) {
    %c0_i32 = arith.constant 0 : i32
    %c0_i32_0 = arith.constant 0 : i32
    %c0_i32_1 = arith.constant 0 : i32
    return %c0_i32, %c0_i32_0 : i32, i32
  }
  func.func @transform_3(%arg0: i32) -> (i32, i32) {
    %c0_i32 = arith.constant 0 : i32
    %c0_i32_0 = arith.constant 0 : i32
    %c0_i32_1 = arith.constant 0 : i32
    return %c0_i32, %c0_i32_0 : i32, i32
  }
  func.func @transform_4(%arg0: i32) -> (i32, i32) {
    %c0_i32 = arith.constant 0 : i32
    %c0_i32_0 = arith.constant 0 : i32
    return %arg0, %c0_i32 : i32, i32
  }
}

module attributes {stable_mosaic.version = 11 : i64} {
  func.func @_attention_kernel(%arg0: i32, %arg1: memref<2xi32, #tpu.memory_space<smem>>, %arg2: memref<1x8x32xf32, #tpu.memory_space<vmem>>, %arg3: memref<1x8x32xf32, #tpu.memory_space<vmem>>, %arg4: memref<1x8x32xf32, #tpu.memory_space<vmem>>) attributes {dimension_semantics = [#tpu.dimension_semantics<parallel>], iteration_bounds = array<i64: 2>, scalar_prefetch = 1 : i64, scratch_operands = 0 : i64, tpu.core_type = #tpu.core_type<tc>, window_params = [{transform_indices = @transform_0, window_bounds = array<i64: 1, 8, 32>}, {transform_indices = @transform_1, window_bounds = array<i64: 1, 8, 32>}, {transform_indices = @transform_2, window_bounds = array<i64: 1, 8, 32>}]} {
    %c0 = arith.constant 0 : index
    %c0_0 = arith.constant 0 : index
    %c0_1 = arith.constant 0 : index
    %0 = vector.load %arg2[%c0, %c0_0, %c0_1] : memref<1x8x32xf32, #tpu.memory_space<vmem>>, vector<1x8x32xf32>
    %1 = vector.shape_cast %0 : vector<1x8x32xf32> to vector<8x32xf32>
    %2 = arith.truncf %1 : vector<8x32xf32> to vector<8x32xbf16>
    %c0_2 = arith.constant 0 : index
    %c0_3 = arith.constant 0 : index
    %c0_4 = arith.constant 0 : index
    %3 = vector.load %arg3[%c0_2, %c0_3, %c0_4] : memref<1x8x32xf32, #tpu.memory_space<vmem>>, vector<1x8x32xf32>
    %4 = vector.shape_cast %3 : vector<1x8x32xf32> to vector<8x32xf32>
    %5 = arith.truncf %4 : vector<8x32xf32> to vector<8x32xbf16>
    %6 = tpu.iota {dimensions = array<i32: 1>} : vector<8x8xi32>
    %7 = arith.index_cast %arg0 : i32 to index
    %8 = memref.load %arg1[%7] : memref<2xi32, #tpu.memory_space<smem>>
    %9 = vector.broadcast %8 : i32 to vector<8x8xi32>
    %10 = arith.cmpi sge, %6, %9 : vector<8x8xi32>
    %11 = vector.extract_strided_slice %2 {offsets = [0, 0], sizes = [8, 8], strides = [1, 1]} : vector<8x32xbf16> to vector<8x8xbf16>
    %12 = vector.extract_strided_slice %5 {offsets = [0, 0], sizes = [8, 8], strides = [1, 1]} : vector<8x32xbf16> to vector<8x8xbf16>
    %cst = arith.constant dense<0.000000e+00> : vector<8x8xf32>
    %13 = tpu.matmul %11, %12, %cst {dimension_numbers = #tpu.dot_dimension_numbers<[1], [1], [0], [0], [0, 0, 1, 0], [], []>} : vector<8x8xbf16>, vector<8x8xbf16>, vector<8x8xf32> -> vector<8x8xf32>
    %cst_5 = arith.constant 0xFF800000 : f32
    %14 = vector.broadcast %cst_5 : f32 to vector<8x8xf32>
    %15 = arith.select %10, %14, %13 : vector<8x8xi1>, vector<8x8xf32>
    %cst_6 = arith.constant 0.353553385 : f32
    %16 = vector.broadcast %cst_6 : f32 to vector<8x8xf32>
    %17 = arith.mulf %15, %16 : vector<8x8xf32>
    %cst_7 = arith.constant dense<0xFF800000> : vector<8xf32>
    %18 = vector.multi_reduction <maximumf>, %17, %cst_7 [1] : vector<8x8xf32> to vector<8xf32>
    %19 = vector.shape_cast %18 : vector<8xf32> to vector<8x1xf32>
    %20 = vector.broadcast %19 : vector<8x1xf32> to vector<8x8xf32>
    %21 = arith.subf %17, %20 : vector<8x8xf32>
    %22 = math.exp %21 : vector<8x8xf32>
    %cst_8 = arith.constant dense<0.000000e+00> : vector<8xf32>
    %23 = vector.multi_reduction <add>, %22, %cst_8 [1] : vector<8x8xf32> to vector<8xf32>
    %24 = vector.shape_cast %23 : vector<8xf32> to vector<8x1xf32>
    %25 = tpu.reciprocal %24 {approx = true} : vector<8x1xf32> -> vector<8x1xf32>
    %26 = vector.broadcast %25 : vector<8x1xf32> to vector<8x8xf32>
    %27 = arith.mulf %22, %26 : vector<8x8xf32>
    %28 = arith.truncf %27 : vector<8x8xf32> to vector<8x8xbf16>
    %cst_9 = arith.constant dense<0.000000e+00> : vector<8x8xf32>
    %29 = tpu.matmul %28, %12, %cst_9 {dimension_numbers = #tpu.dot_dimension_numbers<[1], [0], [0], [1], [0, 0, 1, 1], [], []>} : vector<8x8xbf16>, vector<8x8xbf16>, vector<8x8xf32> -> vector<8x8xf32>
    %30 = vector.extract_strided_slice %2 {offsets = [0, 8], sizes = [8, 8], strides = [1, 1]} : vector<8x32xbf16> to vector<8x8xbf16>
    %31 = vector.extract_strided_slice %5 {offsets = [0, 8], sizes = [8, 8], strides = [1, 1]} : vector<8x32xbf16> to vector<8x8xbf16>
    %cst_10 = arith.constant dense<0.000000e+00> : vector<8x8xf32>
    %32 = tpu.matmul %30, %31, %cst_10 {dimension_numbers = #tpu.dot_dimension_numbers<[1], [1], [0], [0], [0, 0, 1, 0], [], []>} : vector<8x8xbf16>, vector<8x8xbf16>, vector<8x8xf32> -> vector<8x8xf32>
    %cst_11 = arith.constant 0xFF800000 : f32
    %33 = vector.broadcast %cst_11 : f32 to vector<8x8xf32>
    %34 = arith.select %10, %33, %32 : vector<8x8xi1>, vector<8x8xf32>
    %cst_12 = arith.constant 0.353553385 : f32
    %35 = vector.broadcast %cst_12 : f32 to vector<8x8xf32>
    %36 = arith.mulf %34, %35 : vector<8x8xf32>
    %cst_13 = arith.constant dense<0xFF800000> : vector<8xf32>
    %37 = vector.multi_reduction <maximumf>, %36, %cst_13 [1] : vector<8x8xf32> to vector<8xf32>
    %38 = vector.shape_cast %37 : vector<8xf32> to vector<8x1xf32>
    %39 = vector.broadcast %38 : vector<8x1xf32> to vector<8x8xf32>
    %40 = arith.subf %36, %39 : vector<8x8xf32>
    %41 = math.exp %40 : vector<8x8xf32>
    %cst_14 = arith.constant dense<0.000000e+00> : vector<8xf32>
    %42 = vector.multi_reduction <add>, %41, %cst_14 [1] : vector<8x8xf32> to vector<8xf32>
    %43 = vector.shape_cast %42 : vector<8xf32> to vector<8x1xf32>
    %44 = tpu.reciprocal %43 {approx = true} : vector<8x1xf32> -> vector<8x1xf32>
    %45 = vector.broadcast %44 : vector<8x1xf32> to vector<8x8xf32>
    %46 = arith.mulf %41, %45 : vector<8x8xf32>
    %47 = arith.truncf %46 : vector<8x8xf32> to vector<8x8xbf16>
    %cst_15 = arith.constant dense<0.000000e+00> : vector<8x8xf32>
    %48 = tpu.matmul %47, %31, %cst_15 {dimension_numbers = #tpu.dot_dimension_numbers<[1], [0], [0], [1], [0, 0, 1, 1], [], []>} : vector<8x8xbf16>, vector<8x8xbf16>, vector<8x8xf32> -> vector<8x8xf32>
    %49 = vector.extract_strided_slice %2 {offsets = [0, 16], sizes = [8, 8], strides = [1, 1]} : vector<8x32xbf16> to vector<8x8xbf16>
    %50 = vector.extract_strided_slice %5 {offsets = [0, 16], sizes = [8, 8], strides = [1, 1]} : vector<8x32xbf16> to vector<8x8xbf16>
    %cst_16 = arith.constant dense<0.000000e+00> : vector<8x8xf32>
    %51 = tpu.matmul %49, %50, %cst_16 {dimension_numbers = #tpu.dot_dimension_numbers<[1], [1], [0], [0], [0, 0, 1, 0], [], []>} : vector<8x8xbf16>, vector<8x8xbf16>, vector<8x8xf32> -> vector<8x8xf32>
    %cst_17 = arith.constant 0xFF800000 : f32
    %52 = vector.broadcast %cst_17 : f32 to vector<8x8xf32>
    %53 = arith.select %10, %52, %51 : vector<8x8xi1>, vector<8x8xf32>
    %cst_18 = arith.constant 0.353553385 : f32
    %54 = vector.broadcast %cst_18 : f32 to vector<8x8xf32>
    %55 = arith.mulf %53, %54 : vector<8x8xf32>
    %cst_19 = arith.constant dense<0xFF800000> : vector<8xf32>
    %56 = vector.multi_reduction <maximumf>, %55, %cst_19 [1] : vector<8x8xf32> to vector<8xf32>
    %57 = vector.shape_cast %56 : vector<8xf32> to vector<8x1xf32>
    %58 = vector.broadcast %57 : vector<8x1xf32> to vector<8x8xf32>
    %59 = arith.subf %55, %58 : vector<8x8xf32>
    %60 = math.exp %59 : vector<8x8xf32>
    %cst_20 = arith.constant dense<0.000000e+00> : vector<8xf32>
    %61 = vector.multi_reduction <add>, %60, %cst_20 [1] : vector<8x8xf32> to vector<8xf32>
    %62 = vector.shape_cast %61 : vector<8xf32> to vector<8x1xf32>
    %63 = tpu.reciprocal %62 {approx = true} : vector<8x1xf32> -> vector<8x1xf32>
    %64 = vector.broadcast %63 : vector<8x1xf32> to vector<8x8xf32>
    %65 = arith.mulf %60, %64 : vector<8x8xf32>
    %66 = arith.truncf %65 : vector<8x8xf32> to vector<8x8xbf16>
    %cst_21 = arith.constant dense<0.000000e+00> : vector<8x8xf32>
    %67 = tpu.matmul %66, %50, %cst_21 {dimension_numbers = #tpu.dot_dimension_numbers<[1], [0], [0], [1], [0, 0, 1, 1], [], []>} : vector<8x8xbf16>, vector<8x8xbf16>, vector<8x8xf32> -> vector<8x8xf32>
    %68 = vector.extract_strided_slice %2 {offsets = [0, 24], sizes = [8, 8], strides = [1, 1]} : vector<8x32xbf16> to vector<8x8xbf16>
    %69 = vector.extract_strided_slice %5 {offsets = [0, 24], sizes = [8, 8], strides = [1, 1]} : vector<8x32xbf16> to vector<8x8xbf16>
    %cst_22 = arith.constant dense<0.000000e+00> : vector<8x8xf32>
    %70 = tpu.matmul %68, %69, %cst_22 {dimension_numbers = #tpu.dot_dimension_numbers<[1], [1], [0], [0], [0, 0, 1, 0], [], []>} : vector<8x8xbf16>, vector<8x8xbf16>, vector<8x8xf32> -> vector<8x8xf32>
    %cst_23 = arith.constant 0xFF800000 : f32
    %71 = vector.broadcast %cst_23 : f32 to vector<8x8xf32>
    %72 = arith.select %10, %71, %70 : vector<8x8xi1>, vector<8x8xf32>
    %cst_24 = arith.constant 0.353553385 : f32
    %73 = vector.broadcast %cst_24 : f32 to vector<8x8xf32>
    %74 = arith.mulf %72, %73 : vector<8x8xf32>
    %cst_25 = arith.constant dense<0xFF800000> : vector<8xf32>
    %75 = vector.multi_reduction <maximumf>, %74, %cst_25 [1] : vector<8x8xf32> to vector<8xf32>
    %76 = vector.shape_cast %75 : vector<8xf32> to vector<8x1xf32>
    %77 = vector.broadcast %76 : vector<8x1xf32> to vector<8x8xf32>
    %78 = arith.subf %74, %77 : vector<8x8xf32>
    %79 = math.exp %78 : vector<8x8xf32>
    %cst_26 = arith.constant dense<0.000000e+00> : vector<8xf32>
    %80 = vector.multi_reduction <add>, %79, %cst_26 [1] : vector<8x8xf32> to vector<8xf32>
    %81 = vector.shape_cast %80 : vector<8xf32> to vector<8x1xf32>
    %82 = tpu.reciprocal %81 {approx = true} : vector<8x1xf32> -> vector<8x1xf32>
    %83 = vector.broadcast %82 : vector<8x1xf32> to vector<8x8xf32>
    %84 = arith.mulf %79, %83 : vector<8x8xf32>
    %85 = arith.truncf %84 : vector<8x8xf32> to vector<8x8xbf16>
    %cst_27 = arith.constant dense<0.000000e+00> : vector<8x8xf32>
    %86 = tpu.matmul %85, %69, %cst_27 {dimension_numbers = #tpu.dot_dimension_numbers<[1], [0], [0], [1], [0, 0, 1, 1], [], []>} : vector<8x8xbf16>, vector<8x8xbf16>, vector<8x8xf32> -> vector<8x8xf32>
    %87 = tpu.concatenate %29, %48, %67, %86 in 1 : vector<8x8xf32>, vector<8x8xf32>, vector<8x8xf32>, vector<8x8xf32> -> vector<8x32xf32>
    %c0_28 = arith.constant 0 : index
    %c0_29 = arith.constant 0 : index
    %c0_30 = arith.constant 0 : index
    %88 = vector.load %arg4[%c0_28, %c0_29, %c0_30] : memref<1x8x32xf32, #tpu.memory_space<vmem>>, vector<1x8x32xf32>
    %89 = vector.shape_cast %88 : vector<1x8x32xf32> to vector<8x32xf32>
    %90 = vector.shape_cast %87 : vector<8x32xf32> to vector<1x8x32xf32>
    tpu.vector_store %arg4[%c0_28, %c0_29, %c0_30], %90 {strides = array<i32>} : memref<1x8x32xf32, #tpu.memory_space<vmem>>, vector<1x8x32xf32>,
    return
  }
  func.func @transform_0(%arg0: i32, %arg1: memref<2xi32, #tpu.memory_space<smem>>) -> (i32, i32, i32) {
    %c0_i32 = arith.constant 0 : i32
    %c0_i32_0 = arith.constant 0 : i32
    %c0_i32_1 = arith.constant 0 : i32
    return %arg0, %c0_i32, %c0_i32_0 : i32, i32, i32
  }
  func.func @transform_1(%arg0: i32, %arg1: memref<2xi32, #tpu.memory_space<smem>>) -> (i32, i32, i32) {
    %c0_i32 = arith.constant 0 : i32
    %c0_i32_0 = arith.constant 0 : i32
    %c0_i32_1 = arith.constant 0 : i32
    return %arg0, %c0_i32, %c0_i32_0 : i32, i32, i32
  }
  func.func @transform_2(%arg0: i32, %arg1: memref<2xi32, #tpu.memory_space<smem>>) -> (i32, i32, i32) {
    %c0_i32 = arith.constant 0 : i32
    %c0_i32_0 = arith.constant 0 : i32
    %c0_i32_1 = arith.constant 0 : i32
    return %arg0, %c0_i32, %c0_i32_0 : i32, i32, i32
  }
}

module attributes {stable_mosaic.version = 11 : i64} {
  func.func @_ffn_kernel(%arg0: i32, %arg1: memref<16x32xf32, #tpu.memory_space<vmem>>, %arg2: memref<1x32xf32, #tpu.memory_space<vmem>>, %arg3: memref<1x32xf32, #tpu.memory_space<vmem>>, %arg4: memref<32x128xf32, #tpu.memory_space<vmem>>, %arg5: memref<1x128xf32, #tpu.memory_space<vmem>>, %arg6: memref<128x32xf32, #tpu.memory_space<vmem>>, %arg7: memref<1x32xf32, #tpu.memory_space<vmem>>, %arg8: memref<16x32xf32, #tpu.memory_space<vmem>>) attributes {dimension_semantics = [#tpu.dimension_semantics<parallel>], iteration_bounds = array<i64: 1>, scalar_prefetch = 0 : i64, scratch_operands = 0 : i64, tpu.core_type = #tpu.core_type<tc>, window_params = [{transform_indices = @transform_0, window_bounds = array<i64: 16, 32>}, {pipeline_mode = #tpu.pipeline_mode<synchronous>, transform_indices = @transform_1, window_bounds = array<i64: 1, 32>}, {pipeline_mode = #tpu.pipeline_mode<synchronous>, transform_indices = @transform_2, window_bounds = array<i64: 1, 32>}, {pipeline_mode = #tpu.pipeline_mode<synchronous>, transform_indices = @transform_3, window_bounds = array<i64: 32, 128>}, {pipeline_mode = #tpu.pipeline_mode<synchronous>, transform_indices = @transform_4, window_bounds = array<i64: 1, 128>}, {pipeline_mode = #tpu.pipeline_mode<synchronous>, transform_indices = @transform_5, window_bounds = array<i64: 128, 32>}, {pipeline_mode = #tpu.pipeline_mode<synchronous>, transform_indices = @transform_6, window_bounds = array<i64: 1, 32>}, {transform_indices = @transform_7, window_bounds = array<i64: 16, 32>}]} {
    %c0 = arith.constant 0 : index
    %c0_0 = arith.constant 0 : index
    %0 = vector.load %arg1[%c0, %c0_0] : memref<16x32xf32, #tpu.memory_space<vmem>>, vector<16x32xf32>
    %cst = arith.constant dense<0.000000e+00> : vector<16xf32>
    %1 = vector.multi_reduction <add>, %0, %cst [1] : vector<16x32xf32> to vector<16xf32>
    %2 = vector.shape_cast %1 : vector<16xf32> to vector<16x1xf32>
    %cst_1 = arith.constant 3.200000e+01 : f32
    %3 = vector.broadcast %cst_1 : f32 to vector<16x1xf32>
    %4 = arith.divf %2, %3 : vector<16x1xf32>
    %5 = vector.broadcast %4 : vector<16x1xf32> to vector<16x32xf32>
    %6 = arith.subf %0, %5 : vector<16x32xf32>
    %7 = arith.mulf %6, %6 : vector<16x32xf32>
    %cst_2 = arith.constant dense<0.000000e+00> : vector<16xf32>
    %8 = vector.multi_reduction <add>, %7, %cst_2 [1] : vector<16x32xf32> to vector<16xf32>
    %9 = vector.shape_cast %8 : vector<16xf32> to vector<16x1xf32>
    %cst_3 = arith.constant 3.200000e+01 : f32
    %10 = vector.broadcast %cst_3 : f32 to vector<16x1xf32>
    %11 = arith.divf %9, %10 : vector<16x1xf32>
    %12 = vector.broadcast %4 : vector<16x1xf32> to vector<16x32xf32>
    %13 = arith.subf %0, %12 : vector<16x32xf32>
    %cst_4 = arith.constant 9.99999974E-6 : f32
    %14 = vector.broadcast %cst_4 : f32 to vector<16x1xf32>
    %15 = arith.addf %11, %14 : vector<16x1xf32>
    %16 = math.rsqrt %15 : vector<16x1xf32>
    %17 = vector.broadcast %16 : vector<16x1xf32> to vector<16x32xf32>
    %18 = arith.mulf %13, %17 : vector<16x32xf32>
    %c0_5 = arith.constant 0 : index
    %c0_6 = arith.constant 0 : index
    %19 = vector.load %arg2[%c0_5, %c0_6] : memref<1x32xf32, #tpu.memory_space<vmem>>, vector<1x32xf32>
    %20 = vector.broadcast %19 : vector<1x32xf32> to vector<16x32xf32>
    %21 = arith.mulf %18, %20 : vector<16x32xf32>
    %c0_7 = arith.constant 0 : index
    %c0_8 = arith.constant 0 : index
    %22 = vector.load %arg3[%c0_7, %c0_8] : memref<1x32xf32, #tpu.memory_space<vmem>>, vector<1x32xf32>
    %23 = vector.broadcast %22 : vector<1x32xf32> to vector<16x32xf32>
    %24 = arith.addf %21, %23 : vector<16x32xf32>
    %25 = arith.truncf %24 : vector<16x32xf32> to vector<16x32xbf16>
    %c0_9 = arith.constant 0 : index
    %c0_10 = arith.constant 0 : index
    %26 = vector.load %arg4[%c0_9, %c0_10] : memref<32x128xf32, #tpu.memory_space<vmem>>, vector<32x128xf32>
    %27 = arith.truncf %26 : vector<32x128xf32> to vector<32x128xbf16>
    %cst_11 = arith.constant dense<0.000000e+00> : vector<16x128xf32>
    %28 = tpu.matmul %25, %27, %cst_11 {dimension_numbers = #tpu.dot_dimension_numbers<[1], [0], [0], [1], [0, 0, 1, 1], [], []>} : vector<16x32xbf16>, vector<32x128xbf16>, vector<16x128xf32> -> vector<16x128xf32>
    %c0_12 = arith.constant 0 : index
    %c0_13 = arith.constant 0 : index
    %29 = vector.load %arg5[%c0_12, %c0_13] : memref<1x128xf32, #tpu.memory_space<vmem>>, vector<1x128xf32>
    %30 = vector.broadcast %29 : vector<1x128xf32> to vector<16x128xf32>
    %31 = arith.addf %28, %30 : vector<16x128xf32>
    %cst_14 = arith.constant 0.000000e+00 : f32
    %32 = vector.broadcast %cst_14 : f32 to vector<16x128xf32>
    %33 = arith.maximumf %31, %32 : vector<16x128xf32>
    %34 = arith.truncf %33 : vector<16x128xf32> to vector<16x128xbf16>
    %c0_15 = arith.constant 0 : index
    %c0_16 = arith.constant 0 : index
    %35 = vector.load %arg6[%c0_15, %c0_16] : memref<128x32xf32, #tpu.memory_space<vmem>>, vector<128x32xf32>
    %36 = arith.truncf %35 : vector<128x32xf32> to vector<128x32xbf16>
    %cst_17 = arith.constant dense<0.000000e+00> : vector<16x32xf32>
    %37 = tpu.matmul %34, %36, %cst_17 {dimension_numbers = #tpu.dot_dimension_numbers<[1], [0], [0], [1], [0, 0, 1, 1], [], []>} : vector<16x128xbf16>, vector<128x32xbf16>, vector<16x32xf32> -> vector<16x32xf32>
    %c0_18 = arith.constant 0 : index
    %c0_19 = arith.constant 0 : index
    %38 = vector.load %arg7[%c0_18, %c0_19] : memref<1x32xf32, #tpu.memory_space<vmem>>, vector<1x32xf32>
    %39 = vector.broadcast %38 : vector<1x32xf32> to vector<16x32xf32>
    %40 = arith.addf %37, %39 : vector<16x32xf32>
    %41 = arith.addf %0, %40 : vector<16x32xf32>
    %c0_20 = arith.constant 0 : index
    %c0_21 = arith.constant 0 : index
    %42 = vector.load %arg8[%c0_20, %c0_21] : memref<16x32xf32, #tpu.memory_space<vmem>>, vector<16x32xf32>
    tpu.vector_store %arg8[%c0_20, %c0_21], %41 {strides = array<i32>} : memref<16x32xf32, #tpu.memory_space<vmem>>, vector<16x32xf32>,
    return
  }
  func.func @transform_0(%arg0: i32) -> (i32, i32) {
    %c0_i32 = arith.constant 0 : i32
    %c0_i32_0 = arith.constant 0 : i32
    return %arg0, %c0_i32 : i32, i32
  }
  func.func @transform_1(%arg0: i32) -> (i32, i32) {
    %c0_i32 = arith.constant 0 : i32
    %c0_i32_0 = arith.constant 0 : i32
    %c0_i32_1 = arith.constant 0 : i32
    return %c0_i32, %c0_i32_0 : i32, i32
  }
  func.func @transform_2(%arg0: i32) -> (i32, i32) {
    %c0_i32 = arith.constant 0 : i32
    %c0_i32_0 = arith.constant 0 : i32
    %c0_i32_1 = arith.constant 0 : i32
    return %c0_i32, %c0_i32_0 : i32, i32
  }
  func.func @transform_3(%arg0: i32) -> (i32, i32) {
    %c0_i32 = arith.constant 0 : i32
    %c0_i32_0 = arith.constant 0 : i32
    %c0_i32_1 = arith.constant 0 : i32
    return %c0_i32, %c0_i32_0 : i32, i32
  }
  func.func @transform_4(%arg0: i32) -> (i32, i32) {
    %c0_i32 = arith.constant 0 : i32
    %c0_i32_0 = arith.constant 0 : i32
    %c0_i32_1 = arith.constant 0 : i32
    return %c0_i32, %c0_i32_0 : i32, i32
  }
  func.func @transform_5(%arg0: i32) -> (i32, i32) {
    %c0_i32 = arith.constant 0 : i32
    %c0_i32_0 = arith.constant 0 : i32
    %c0_i32_1 = arith.constant 0 : i32
    return %c0_i32, %c0_i32_0 : i32, i32
  }
  func.func @transform_6(%arg0: i32) -> (i32, i32) {
    %c0_i32 = arith.constant 0 : i32
    %c0_i32_0 = arith.constant 0 : i32
    %c0_i32_1 = arith.constant 0 : i32
    return %c0_i32, %c0_i32_0 : i32, i32
  }
  func.func @transform_7(%arg0: i32) -> (i32, i32) {
    %c0_i32 = arith.constant 0 : i32
    %c0_i32_0 = arith.constant 0 : i32
    return %arg0, %c0_i32 : i32, i32
  }
}

module attributes {stable_mosaic.version = 11 : i64} {
  func.func @_ln_matmul_kernel(%arg0: i32, %arg1: memref<16x32xf32, #tpu.memory_space<vmem>>, %arg2: memref<1x32xf32, #tpu.memory_space<vmem>>, %arg3: memref<1x32xf32, #tpu.memory_space<vmem>>, %arg4: memref<32x32xf32, #tpu.memory_space<vmem>>, %arg5: memref<16x32xf32, #tpu.memory_space<vmem>>) attributes {dimension_semantics = [#tpu.dimension_semantics<parallel>], iteration_bounds = array<i64: 1>, scalar_prefetch = 0 : i64, scratch_operands = 0 : i64, tpu.core_type = #tpu.core_type<tc>, window_params = [{transform_indices = @transform_0, window_bounds = array<i64: 16, 32>}, {pipeline_mode = #tpu.pipeline_mode<synchronous>, transform_indices = @transform_1, window_bounds = array<i64: 1, 32>}, {pipeline_mode = #tpu.pipeline_mode<synchronous>, transform_indices = @transform_2, window_bounds = array<i64: 1, 32>}, {pipeline_mode = #tpu.pipeline_mode<synchronous>, transform_indices = @transform_3, window_bounds = array<i64: 32, 32>}, {transform_indices = @transform_4, window_bounds = array<i64: 16, 32>}]} {
    %c0 = arith.constant 0 : index
    %c0_0 = arith.constant 0 : index
    %0 = vector.load %arg1[%c0, %c0_0] : memref<16x32xf32, #tpu.memory_space<vmem>>, vector<16x32xf32>
    %cst = arith.constant dense<0.000000e+00> : vector<16xf32>
    %1 = vector.multi_reduction <add>, %0, %cst [1] : vector<16x32xf32> to vector<16xf32>
    %2 = vector.shape_cast %1 : vector<16xf32> to vector<16x1xf32>
    %cst_1 = arith.constant 3.200000e+01 : f32
    %3 = vector.broadcast %cst_1 : f32 to vector<16x1xf32>
    %4 = arith.divf %2, %3 : vector<16x1xf32>
    %5 = vector.broadcast %4 : vector<16x1xf32> to vector<16x32xf32>
    %6 = arith.subf %0, %5 : vector<16x32xf32>
    %7 = arith.mulf %6, %6 : vector<16x32xf32>
    %cst_2 = arith.constant dense<0.000000e+00> : vector<16xf32>
    %8 = vector.multi_reduction <add>, %7, %cst_2 [1] : vector<16x32xf32> to vector<16xf32>
    %9 = vector.shape_cast %8 : vector<16xf32> to vector<16x1xf32>
    %cst_3 = arith.constant 3.200000e+01 : f32
    %10 = vector.broadcast %cst_3 : f32 to vector<16x1xf32>
    %11 = arith.divf %9, %10 : vector<16x1xf32>
    %12 = vector.broadcast %4 : vector<16x1xf32> to vector<16x32xf32>
    %13 = arith.subf %0, %12 : vector<16x32xf32>
    %cst_4 = arith.constant 9.99999974E-6 : f32
    %14 = vector.broadcast %cst_4 : f32 to vector<16x1xf32>
    %15 = arith.addf %11, %14 : vector<16x1xf32>
    %16 = math.rsqrt %15 : vector<16x1xf32>
    %17 = vector.broadcast %16 : vector<16x1xf32> to vector<16x32xf32>
    %18 = arith.mulf %13, %17 : vector<16x32xf32>
    %c0_5 = arith.constant 0 : index
    %c0_6 = arith.constant 0 : index
    %19 = vector.load %arg2[%c0_5, %c0_6] : memref<1x32xf32, #tpu.memory_space<vmem>>, vector<1x32xf32>
    %20 = vector.broadcast %19 : vector<1x32xf32> to vector<16x32xf32>
    %21 = arith.mulf %18, %20 : vector<16x32xf32>
    %c0_7 = arith.constant 0 : index
    %c0_8 = arith.constant 0 : index
    %22 = vector.load %arg3[%c0_7, %c0_8] : memref<1x32xf32, #tpu.memory_space<vmem>>, vector<1x32xf32>
    %23 = vector.broadcast %22 : vector<1x32xf32> to vector<16x32xf32>
    %24 = arith.addf %21, %23 : vector<16x32xf32>
    %25 = arith.truncf %24 : vector<16x32xf32> to vector<16x32xbf16>
    %c0_9 = arith.constant 0 : index
    %c0_10 = arith.constant 0 : index
    %26 = vector.load %arg4[%c0_9, %c0_10] : memref<32x32xf32, #tpu.memory_space<vmem>>, vector<32x32xf32>
    %27 = arith.truncf %26 : vector<32x32xf32> to vector<32x32xbf16>
    %cst_11 = arith.constant dense<0.000000e+00> : vector<16x32xf32>
    %28 = tpu.matmul %25, %27, %cst_11 {dimension_numbers = #tpu.dot_dimension_numbers<[1], [0], [0], [1], [0, 0, 1, 1], [], []>} : vector<16x32xbf16>, vector<32x32xbf16>, vector<16x32xf32> -> vector<16x32xf32>
    %c0_12 = arith.constant 0 : index
    %c0_13 = arith.constant 0 : index
    %29 = vector.load %arg5[%c0_12, %c0_13] : memref<16x32xf32, #tpu.memory_space<vmem>>, vector<16x32xf32>
    tpu.vector_store %arg5[%c0_12, %c0_13], %28 {strides = array<i32>} : memref<16x32xf32, #tpu.memory_space<vmem>>, vector<16x32xf32>,
    return
  }
  func.func @transform_0(%arg0: i32) -> (i32, i32) {
    %c0_i32 = arith.constant 0 : i32
    %c0_i32_0 = arith.constant 0 : i32
    return %arg0, %c0_i32 : i32, i32
  }
  func.func @transform_1(%arg0: i32) -> (i32, i32) {
    %c0_i32 = arith.constant 0 : i32
    %c0_i32_0 = arith.constant 0 : i32
    %c0_i32_1 = arith.constant 0 : i32
    return %c0_i32, %c0_i32_0 : i32, i32
  }
  func.func @transform_2(%arg0: i32) -> (i32, i32) {
    %c0_i32 = arith.constant 0 : i32
    %c0_i32_0 = arith.constant 0 : i32
    %c0_i32_1 = arith.constant 0 : i32
    return %c0_i32, %c0_i32_0 : i32, i32
  }
  func.func @transform_3(%arg0: i32) -> (i32, i32) {
    %c0_i32 = arith.constant 0 : i32
    %c0_i32_0 = arith.constant 0 : i32
    %c0_i32_1 = arith.constant 0 : i32
    return %c0_i32, %c0_i32_0 : i32, i32
  }
  func.func @transform_4(%arg0: i32) -> (i32, i32) {
    %c0_i32 = arith.constant 0 : i32
    %c0_i32_0 = arith.constant 0 : i32
    return %arg0, %c0_i32 : i32, i32
  }
}

module attributes {stable_mosaic.version = 11 : i64} {
  func.func @_attention_kernel(%arg0: i32, %arg1: memref<2xi32, #tpu.memory_space<smem>>, %arg2: memref<1x8x32xf32, #tpu.memory_space<vmem>>, %arg3: memref<1x8x32xf32, #tpu.memory_space<vmem>>, %arg4: memref<1x8x32xf32, #tpu.memory_space<vmem>>) attributes {dimension_semantics = [#tpu.dimension_semantics<parallel>], iteration_bounds = array<i64: 2>, scalar_prefetch = 1 : i64, scratch_operands = 0 : i64, tpu.core_type = #tpu.core_type<tc>, window_params = [{transform_indices = @transform_0, window_bounds = array<i64: 1, 8, 32>}, {transform_indices = @transform_1, window_bounds = array<i64: 1, 8, 32>}, {transform_indices = @transform_2, window_bounds = array<i64: 1, 8, 32>}]} {
    %c0 = arith.constant 0 : index
    %c0_0 = arith.constant 0 : index
    %c0_1 = arith.constant 0 : index
    %0 = vector.load %arg2[%c0, %c0_0, %c0_1] : memref<1x8x32xf32, #tpu.memory_space<vmem>>, vector<1x8x32xf32>
    %1 = vector.shape_cast %0 : vector<1x8x32xf32> to vector<8x32xf32>
    %2 = arith.truncf %1 : vector<8x32xf32> to vector<8x32xbf16>
    %c0_2 = arith.constant 0 : index
    %c0_3 = arith.constant 0 : index
    %c0_4 = arith.constant 0 : index
    %3 = vector.load %arg3[%c0_2, %c0_3, %c0_4] : memref<1x8x32xf32, #tpu.memory_space<vmem>>, vector<1x8x32xf32>
    %4 = vector.shape_cast %3 : vector<1x8x32xf32> to vector<8x32xf32>
    %5 = arith.truncf %4 : vector<8x32xf32> to vector<8x32xbf16>
    %6 = tpu.iota {dimensions = array<i32: 1>} : vector<8x8xi32>
    %7 = tpu.iota {dimensions = array<i32: 0>} : vector<8x8xi32>
    %8 = arith.cmpi sgt, %6, %7 : vector<8x8xi32>
    %9 = vector.extract_strided_slice %2 {offsets = [0, 0], sizes = [8, 8], strides = [1, 1]} : vector<8x32xbf16> to vector<8x8xbf16>
    %10 = vector.extract_strided_slice %5 {offsets = [0, 0], sizes = [8, 8], strides = [1, 1]} : vector<8x32xbf16> to vector<8x8xbf16>
    %cst = arith.constant dense<0.000000e+00> : vector<8x8xf32>
    %11 = tpu.matmul %9, %10, %cst {dimension_numbers = #tpu.dot_dimension_numbers<[1], [1], [0], [0], [0, 0, 1, 0], [], []>} : vector<8x8xbf16>, vector<8x8xbf16>, vector<8x8xf32> -> vector<8x8xf32>
    %cst_5 = arith.constant 0xFF800000 : f32
    %12 = vector.broadcast %cst_5 : f32 to vector<8x8xf32>
    %13 = arith.select %8, %12, %11 : vector<8x8xi1>, vector<8x8xf32>
    %cst_6 = arith.constant 0.353553385 : f32
    %14 = vector.broadcast %cst_6 : f32 to vector<8x8xf32>
    %15 = arith.mulf %13, %14 : vector<8x8xf32>
    %cst_7 = arith.constant dense<0xFF800000> : vector<8xf32>
    %16 = vector.multi_reduction <maximumf>, %15, %cst_7 [1] : vector<8x8xf32> to vector<8xf32>
    %17 = vector.shape_cast %16 : vector<8xf32> to vector<8x1xf32>
    %18 = vector.broadcast %17 : vector<8x1xf32> to vector<8x8xf32>
    %19 = arith.subf %15, %18 : vector<8x8xf32>
    %20 = math.exp %19 : vector<8x8xf32>
    %cst_8 = arith.constant dense<0.000000e+00> : vector<8xf32>
    %21 = vector.multi_reduction <add>, %20, %cst_8 [1] : vector<8x8xf32> to vector<8xf32>
    %22 = vector.shape_cast %21 : vector<8xf32> to vector<8x1xf32>
    %23 = tpu.reciprocal %22 {approx = true} : vector<8x1xf32> -> vector<8x1xf32>
    %24 = vector.broadcast %23 : vector<8x1xf32> to vector<8x8xf32>
    %25 = arith.mulf %20, %24 : vector<8x8xf32>
    %26 = arith.truncf %25 : vector<8x8xf32> to vector<8x8xbf16>
    %cst_9 = arith.constant dense<0.000000e+00> : vector<8x8xf32>
    %27 = tpu.matmul %26, %10, %cst_9 {dimension_numbers = #tpu.dot_dimension_numbers<[1], [0], [0], [1], [0, 0, 1, 1], [], []>} : vector<8x8xbf16>, vector<8x8xbf16>, vector<8x8xf32> -> vector<8x8xf32>
    %28 = vector.extract_strided_slice %2 {offsets = [0, 8], sizes = [8, 8], strides = [1, 1]} : vector<8x32xbf16> to vector<8x8xbf16>
    %29 = vector.extract_strided_slice %5 {offsets = [0, 8], sizes = [8, 8], strides = [1, 1]} : vector<8x32xbf16> to vector<8x8xbf16>
    %cst_10 = arith.constant dense<0.000000e+00> : vector<8x8xf32>
    %30 = tpu.matmul %28, %29, %cst_10 {dimension_numbers = #tpu.dot_dimension_numbers<[1], [1], [0], [0], [0, 0, 1, 0], [], []>} : vector<8x8xbf16>, vector<8x8xbf16>, vector<8x8xf32> -> vector<8x8xf32>
    %cst_11 = arith.constant 0xFF800000 : f32
    %31 = vector.broadcast %cst_11 : f32 to vector<8x8xf32>
    %32 = arith.select %8, %31, %30 : vector<8x8xi1>, vector<8x8xf32>
    %cst_12 = arith.constant 0.353553385 : f32
    %33 = vector.broadcast %cst_12 : f32 to vector<8x8xf32>
    %34 = arith.mulf %32, %33 : vector<8x8xf32>
    %cst_13 = arith.constant dense<0xFF800000> : vector<8xf32>
    %35 = vector.multi_reduction <maximumf>, %34, %cst_13 [1] : vector<8x8xf32> to vector<8xf32>
    %36 = vector.shape_cast %35 : vector<8xf32> to vector<8x1xf32>
    %37 = vector.broadcast %36 : vector<8x1xf32> to vector<8x8xf32>
    %38 = arith.subf %34, %37 : vector<8x8xf32>
    %39 = math.exp %38 : vector<8x8xf32>
    %cst_14 = arith.constant dense<0.000000e+00> : vector<8xf32>
    %40 = vector.multi_reduction <add>, %39, %cst_14 [1] : vector<8x8xf32> to vector<8xf32>
    %41 = vector.shape_cast %40 : vector<8xf32> to vector<8x1xf32>
    %42 = tpu.reciprocal %41 {approx = true} : vector<8x1xf32> -> vector<8x1xf32>
    %43 = vector.broadcast %42 : vector<8x1xf32> to vector<8x8xf32>
    %44 = arith.mulf %39, %43 : vector<8x8xf32>
    %45 = arith.truncf %44 : vector<8x8xf32> to vector<8x8xbf16>
    %cst_15 = arith.constant dense<0.000000e+00> : vector<8x8xf32>
    %46 = tpu.matmul %45, %29, %cst_15 {dimension_numbers = #tpu.dot_dimension_numbers<[1], [0], [0], [1], [0, 0, 1, 1], [], []>} : vector<8x8xbf16>, vector<8x8xbf16>, vector<8x8xf32> -> vector<8x8xf32>
    %47 = vector.extract_strided_slice %2 {offsets = [0, 16], sizes = [8, 8], strides = [1, 1]} : vector<8x32xbf16> to vector<8x8xbf16>
    %48 = vector.extract_strided_slice %5 {offsets = [0, 16], sizes = [8, 8], strides = [1, 1]} : vector<8x32xbf16> to vector<8x8xbf16>
    %cst_16 = arith.constant dense<0.000000e+00> : vector<8x8xf32>
    %49 = tpu.matmul %47, %48, %cst_16 {dimension_numbers = #tpu.dot_dimension_numbers<[1], [1], [0], [0], [0, 0, 1, 0], [], []>} : vector<8x8xbf16>, vector<8x8xbf16>, vector<8x8xf32> -> vector<8x8xf32>
    %cst_17 = arith.constant 0xFF800000 : f32
    %50 = vector.broadcast %cst_17 : f32 to vector<8x8xf32>
    %51 = arith.select %8, %50, %49 : vector<8x8xi1>, vector<8x8xf32>
    %cst_18 = arith.constant 0.353553385 : f32
    %52 = vector.broadcast %cst_18 : f32 to vector<8x8xf32>
    %53 = arith.mulf %51, %52 : vector<8x8xf32>
    %cst_19 = arith.constant dense<0xFF800000> : vector<8xf32>
    %54 = vector.multi_reduction <maximumf>, %53, %cst_19 [1] : vector<8x8xf32> to vector<8xf32>
    %55 = vector.shape_cast %54 : vector<8xf32> to vector<8x1xf32>
    %56 = vector.broadcast %55 : vector<8x1xf32> to vector<8x8xf32>
    %57 = arith.subf %53, %56 : vector<8x8xf32>
    %58 = math.exp %57 : vector<8x8xf32>
    %cst_20 = arith.constant dense<0.000000e+00> : vector<8xf32>
    %59 = vector.multi_reduction <add>, %58, %cst_20 [1] : vector<8x8xf32> to vector<8xf32>
    %60 = vector.shape_cast %59 : vector<8xf32> to vector<8x1xf32>
    %61 = tpu.reciprocal %60 {approx = true} : vector<8x1xf32> -> vector<8x1xf32>
    %62 = vector.broadcast %61 : vector<8x1xf32> to vector<8x8xf32>
    %63 = arith.mulf %58, %62 : vector<8x8xf32>
    %64 = arith.truncf %63 : vector<8x8xf32> to vector<8x8xbf16>
    %cst_21 = arith.constant dense<0.000000e+00> : vector<8x8xf32>
    %65 = tpu.matmul %64, %48, %cst_21 {dimension_numbers = #tpu.dot_dimension_numbers<[1], [0], [0], [1], [0, 0, 1, 1], [], []>} : vector<8x8xbf16>, vector<8x8xbf16>, vector<8x8xf32> -> vector<8x8xf32>
    %66 = vector.extract_strided_slice %2 {offsets = [0, 24], sizes = [8, 8], strides = [1, 1]} : vector<8x32xbf16> to vector<8x8xbf16>
    %67 = vector.extract_strided_slice %5 {offsets = [0, 24], sizes = [8, 8], strides = [1, 1]} : vector<8x32xbf16> to vector<8x8xbf16>
    %cst_22 = arith.constant dense<0.000000e+00> : vector<8x8xf32>
    %68 = tpu.matmul %66, %67, %cst_22 {dimension_numbers = #tpu.dot_dimension_numbers<[1], [1], [0], [0], [0, 0, 1, 0], [], []>} : vector<8x8xbf16>, vector<8x8xbf16>, vector<8x8xf32> -> vector<8x8xf32>
    %cst_23 = arith.constant 0xFF800000 : f32
    %69 = vector.broadcast %cst_23 : f32 to vector<8x8xf32>
    %70 = arith.select %8, %69, %68 : vector<8x8xi1>, vector<8x8xf32>
    %cst_24 = arith.constant 0.353553385 : f32
    %71 = vector.broadcast %cst_24 : f32 to vector<8x8xf32>
    %72 = arith.mulf %70, %71 : vector<8x8xf32>
    %cst_25 = arith.constant dense<0xFF800000> : vector<8xf32>
    %73 = vector.multi_reduction <maximumf>, %72, %cst_25 [1] : vector<8x8xf32> to vector<8xf32>
    %74 = vector.shape_cast %73 : vector<8xf32> to vector<8x1xf32>
    %75 = vector.broadcast %74 : vector<8x1xf32> to vector<8x8xf32>
    %76 = arith.subf %72, %75 : vector<8x8xf32>
    %77 = math.exp %76 : vector<8x8xf32>
    %cst_26 = arith.constant dense<0.000000e+00> : vector<8xf32>
    %78 = vector.multi_reduction <add>, %77, %cst_26 [1] : vector<8x8xf32> to vector<8xf32>
    %79 = vector.shape_cast %78 : vector<8xf32> to vector<8x1xf32>
    %80 = tpu.reciprocal %79 {approx = true} : vector<8x1xf32> -> vector<8x1xf32>
    %81 = vector.broadcast %80 : vector<8x1xf32> to vector<8x8xf32>
    %82 = arith.mulf %77, %81 : vector<8x8xf32>
    %83 = arith.truncf %82 : vector<8x8xf32> to vector<8x8xbf16>
    %cst_27 = arith.constant dense<0.000000e+00> : vector<8x8xf32>
    %84 = tpu.matmul %83, %67, %cst_27 {dimension_numbers = #tpu.dot_dimension_numbers<[1], [0], [0], [1], [0, 0, 1, 1], [], []>} : vector<8x8xbf16>, vector<8x8xbf16>, vector<8x8xf32> -> vector<8x8xf32>
    %85 = tpu.concatenate %27, %46, %65, %84 in 1 : vector<8x8xf32>, vector<8x8xf32>, vector<8x8xf32>, vector<8x8xf32> -> vector<8x32xf32>
    %c0_28 = arith.constant 0 : index
    %c0_29 = arith.constant 0 : index
    %c0_30 = arith.constant 0 : index
    %86 = vector.load %arg4[%c0_28, %c0_29, %c0_30] : memref<1x8x32xf32, #tpu.memory_space<vmem>>, vector<1x8x32xf32>
    %87 = vector.shape_cast %86 : vector<1x8x32xf32> to vector<8x32xf32>
    %88 = vector.shape_cast %85 : vector<8x32xf32> to vector<1x8x32xf32>
    tpu.vector_store %arg4[%c0_28, %c0_29, %c0_30], %88 {strides = array<i32>} : memref<1x8x32xf32, #tpu.memory_space<vmem>>, vector<1x8x32xf32>,
    return
  }
  func.func @transform_0(%arg0: i32, %arg1: memref<2xi32, #tpu.memory_space<smem>>) -> (i32, i32, i32) {
    %c0_i32 = arith.constant 0 : i32
    %c0_i32_0 = arith.constant 0 : i32
    %c0_i32_1 = arith.constant 0 : i32
    return %arg0, %c0_i32, %c0_i32_0 : i32, i32, i32
  }
  func.func @transform_1(%arg0: i32, %arg1: memref<2xi32, #tpu.memory_space<smem>>) -> (i32, i32, i32) {
    %c0_i32 = arith.constant 0 : i32
    %c0_i32_0 = arith.constant 0 : i32
    %c0_i32_1 = arith.constant 0 : i32
    return %arg0, %c0_i32, %c0_i32_0 : i32, i32, i32
  }
  func.func @transform_2(%arg0: i32, %arg1: memref<2xi32, #tpu.memory_space<smem>>) -> (i32, i32, i32) {
    %c0_i32 = arith.constant 0 : i32
    %c0_i32_0 = arith.constant 0 : i32
    %c0_i32_1 = arith.constant 0 : i32
    return %arg0, %c0_i32, %c0_i32_0 : i32, i32, i32
  }
}

module attributes {stable_mosaic.version = 11 : i64} {
  func.func @_generator_kernel(%arg0: i32, %arg1: memref<16x32xf32, #tpu.memory_space<vmem>>, %arg2: memref<1x32xf32, #tpu.memory_space<vmem>>, %arg3: memref<1x32xf32, #tpu.memory_space<vmem>>, %arg4: memref<32x16xf32, #tpu.memory_space<vmem>>, %arg5: memref<1x16xf32, #tpu.memory_space<vmem>>, %arg6: memref<16x16xf32, #tpu.memory_space<vmem>>) attributes {dimension_semantics = [#tpu.dimension_semantics<parallel>], iteration_bounds = array<i64: 1>, scalar_prefetch = 0 : i64, scratch_operands = 0 : i64, tpu.core_type = #tpu.core_type<tc>, window_params = [{transform_indices = @transform_0, window_bounds = array<i64: 16, 32>}, {pipeline_mode = #tpu.pipeline_mode<synchronous>, transform_indices = @transform_1, window_bounds = array<i64: 1, 32>}, {pipeline_mode = #tpu.pipeline_mode<synchronous>, transform_indices = @transform_2, window_bounds = array<i64: 1, 32>}, {pipeline_mode = #tpu.pipeline_mode<synchronous>, transform_indices = @transform_3, window_bounds = array<i64: 32, 16>}, {pipeline_mode = #tpu.pipeline_mode<synchronous>, transform_indices = @transform_4, window_bounds = array<i64: 1, 16>}, {transform_indices = @transform_5, window_bounds = array<i64: 16, 16>}]} {
    %c0 = arith.constant 0 : index
    %c0_0 = arith.constant 0 : index
    %0 = vector.load %arg1[%c0, %c0_0] : memref<16x32xf32, #tpu.memory_space<vmem>>, vector<16x32xf32>
    %cst = arith.constant dense<0.000000e+00> : vector<16xf32>
    %1 = vector.multi_reduction <add>, %0, %cst [1] : vector<16x32xf32> to vector<16xf32>
    %2 = vector.shape_cast %1 : vector<16xf32> to vector<16x1xf32>
    %cst_1 = arith.constant 3.200000e+01 : f32
    %3 = vector.broadcast %cst_1 : f32 to vector<16x1xf32>
    %4 = arith.divf %2, %3 : vector<16x1xf32>
    %5 = vector.broadcast %4 : vector<16x1xf32> to vector<16x32xf32>
    %6 = arith.subf %0, %5 : vector<16x32xf32>
    %7 = arith.mulf %6, %6 : vector<16x32xf32>
    %cst_2 = arith.constant dense<0.000000e+00> : vector<16xf32>
    %8 = vector.multi_reduction <add>, %7, %cst_2 [1] : vector<16x32xf32> to vector<16xf32>
    %9 = vector.shape_cast %8 : vector<16xf32> to vector<16x1xf32>
    %cst_3 = arith.constant 3.200000e+01 : f32
    %10 = vector.broadcast %cst_3 : f32 to vector<16x1xf32>
    %11 = arith.divf %9, %10 : vector<16x1xf32>
    %12 = vector.broadcast %4 : vector<16x1xf32> to vector<16x32xf32>
    %13 = arith.subf %0, %12 : vector<16x32xf32>
    %cst_4 = arith.constant 9.99999974E-6 : f32
    %14 = vector.broadcast %cst_4 : f32 to vector<16x1xf32>
    %15 = arith.addf %11, %14 : vector<16x1xf32>
    %16 = math.rsqrt %15 : vector<16x1xf32>
    %17 = vector.broadcast %16 : vector<16x1xf32> to vector<16x32xf32>
    %18 = arith.mulf %13, %17 : vector<16x32xf32>
    %c0_5 = arith.constant 0 : index
    %c0_6 = arith.constant 0 : index
    %19 = vector.load %arg2[%c0_5, %c0_6] : memref<1x32xf32, #tpu.memory_space<vmem>>, vector<1x32xf32>
    %20 = vector.broadcast %19 : vector<1x32xf32> to vector<16x32xf32>
    %21 = arith.mulf %18, %20 : vector<16x32xf32>
    %c0_7 = arith.constant 0 : index
    %c0_8 = arith.constant 0 : index
    %22 = vector.load %arg3[%c0_7, %c0_8] : memref<1x32xf32, #tpu.memory_space<vmem>>, vector<1x32xf32>
    %23 = vector.broadcast %22 : vector<1x32xf32> to vector<16x32xf32>
    %24 = arith.addf %21, %23 : vector<16x32xf32>
    %25 = arith.truncf %24 : vector<16x32xf32> to vector<16x32xbf16>
    %c0_9 = arith.constant 0 : index
    %c0_10 = arith.constant 0 : index
    %26 = vector.load %arg4[%c0_9, %c0_10] : memref<32x16xf32, #tpu.memory_space<vmem>>, vector<32x16xf32>
    %27 = arith.truncf %26 : vector<32x16xf32> to vector<32x16xbf16>
    %cst_11 = arith.constant dense<0.000000e+00> : vector<16x16xf32>
    %28 = tpu.matmul %25, %27, %cst_11 {dimension_numbers = #tpu.dot_dimension_numbers<[1], [0], [0], [1], [0, 0, 1, 1], [], []>} : vector<16x32xbf16>, vector<32x16xbf16>, vector<16x16xf32> -> vector<16x16xf32>
    %c0_12 = arith.constant 0 : index
    %c0_13 = arith.constant 0 : index
    %29 = vector.load %arg5[%c0_12, %c0_13] : memref<1x16xf32, #tpu.memory_space<vmem>>, vector<1x16xf32>
    %30 = vector.broadcast %29 : vector<1x16xf32> to vector<16x16xf32>
    %31 = arith.addf %28, %30 : vector<16x16xf32>
    %cst_14 = arith.constant dense<0xFF800000> : vector<16xf32>
    %32 = vector.multi_reduction <maximumf>, %31, %cst_14 [1] : vector<16x16xf32> to vector<16xf32>
    %33 = vector.shape_cast %32 : vector<16xf32> to vector<16x1xf32>
    %34 = vector.broadcast %33 : vector<16x1xf32> to vector<16x16xf32>
    %35 = arith.subf %31, %34 : vector<16x16xf32>
    %36 = math.exp %35 : vector<16x16xf32>
    %cst_15 = arith.constant dense<0.000000e+00> : vector<16xf32>
    %37 = vector.multi_reduction <add>, %36, %cst_15 [1] : vector<16x16xf32> to vector<16xf32>
    %38 = vector.shape_cast %37 : vector<16xf32> to vector<16x1xf32>
    %39 = math.log %38 : vector<16x1xf32>
    %40 = vector.broadcast %39 : vector<16x1xf32> to vector<16x16xf32>
    %41 = arith.subf %35, %40 : vector<16x16xf32>
    %c0_16 = arith.constant 0 : index
    %c0_17 = arith.constant 0 : index
    %42 = vector.load %arg6[%c0_16, %c0_17] : memref<16x16xf32, #tpu.memory_space<vmem>>, vector<16x16xf32>
    tpu.vector_store %arg6[%c0_16, %c0_17], %41 {strides = array<i32>} : memref<16x16xf32, #tpu.memory_space<vmem>>, vector<16x16xf32>,
    return
  }
  func.func @transform_0(%arg0: i32) -> (i32, i32) {
    %c0_i32 = arith.constant 0 : i32
    %c0_i32_0 = arith.constant 0 : i32
    return %arg0, %c0_i32 : i32, i32
  }
  func.func @transform_1(%arg0: i32) -> (i32, i32) {
    %c0_i32 = arith.constant 0 : i32
    %c0_i32_0 = arith.constant 0 : i32
    %c0_i32_1 = arith.constant 0 : i32
    return %c0_i32, %c0_i32_0 : i32, i32
  }
  func.func @transform_2(%arg0: i32) -> (i32, i32) {
    %c0_i32 = arith.constant 0 : i32
    %c0_i32_0 = arith.constant 0 : i32
    %c0_i32_1 = arith.constant 0 : i32
    return %c0_i32, %c0_i32_0 : i32, i32
  }
  func.func @transform_3(%arg0: i32) -> (i32, i32) {
    %c0_i32 = arith.constant 0 : i32
    %c0_i32_0 = arith.constant 0 : i32
    %c0_i32_1 = arith.constant 0 : i32
    return %c0_i32, %c0_i32_0 : i32, i32
  }
  func.func @transform_4(%arg0: i32) -> (i32, i32) {
    %c0_i32 = arith.constant 0 : i32
    %c0_i32_0 = arith.constant 0 : i32
    %c0_i32_1 = arith.constant 0 : i32
    return %c0_i32, %c0_i32_0 : i32, i32
  }
  func.func @transform_5(%arg0: i32) -> (i32, i32) {
    %c0_i32 = arith.constant 0 : i32
    %c0_i32_0 = arith.constant 0 : i32
    return %arg0, %c0_i32 : i32, i32
  }
}

</mosaic_0001>

<llo_original>
// kernel: transformer_forward.27
$region0: #{transformer_forward.27}
  #allocation0 [shape = 'u32[]', space=smem, size = 0x4, offset = 0x4, fixed_abs, tag = 'smem constant byte address 0x4 - core index']
  #allocation1 [shape = 'u32[144,128]{1,0:T(1,128)}', space=vmem, size = 0x12000, scoped, tag = 'internal scratch']
  #allocation2 [shape = 'f32[16,32]{1,0:T(8,128)}', space=vmem, size = 0x2000, scoped, tag = 'scratch operand']
  %s0 = inlined_call_operand.hbm [shape: f32[16,32], index: 0, kind: input, shape index: {}]
  %s1 = inlined_call_operand.hbm [shape: f32[32,32], index: 1, kind: input, shape index: {}]
  %s2 = inlined_call_operand.hbm [shape: f32[16,32], index: 2, kind: input, shape index: {}]
  %s3 = inlined_call_operand.hbm [shape: f32[16,32], index: 3, kind: output, shape index: {}]
  %s4 = sld [smem:[#allocation0]]
  $region42: #{transformer_forward.27} parent=0
    _
  %s6 = ssub.s32 1, %s4
  %s7 = scalar_select 0, %s6, %s4
  $region1: #{transformer_forward.27} parent=0
    #allocation3 [shape = 'u8[8192]{0}', space=vmem, size = 0x2000, scoped, tag = 'input window, operand 0, single buffered']
    #allocation4 [shape = 's32[1]{0}', space=sflag, size = 0x4, scoped, tag = 'scoped memory for transformer_forward.27']
    #allocation5 [shape = 's32[1]{0}', space=sflag, size = 0x4, scoped, tag = 'scoped memory for transformer_forward.27']
    #allocation6 [shape = 'u8[16384]{0}', space=vmem, size = 0x4000, scoped, tag = 'input window, operand 1, single buffered']
    #allocation7 [shape = 's32[1]{0}', space=sflag, size = 0x4, scoped, tag = 'scoped memory for transformer_forward.27']
    #allocation8 [shape = 'u8[8192]{0}', space=vmem, size = 0x2000, scoped, tag = 'input window, operand 2, single buffered']
    #allocation9 [shape = 'u8[8192]{0}', space=vmem, size = 0x2000, scoped, tag = 'output window, operand 0, single buffered']
    %8 = vsyncpa [#allocation4], 0
    %9 = vsyncpa [#allocation7], 0
    %10 = vsyncpa [#allocation5], 0
    // Predicated region
    $region2: #{transformer_forward.27} parent=1 // pred_check
      _
    $region3: #{transformer_forward.27} parent=1 // pred_check_branch
      %12 = sbr.rel (0) target = $region5
    $region4: #{transformer_forward.27} parent=1 // pred_region
      %s14 = ssub.s32 256, 256
      %15 = vsyncadd [#allocation4], %s14
      %s16 = sshll.u32 [#allocation3], 4
      %s17 = int_to_ptr.vmem [resolvable:$true] %s16
      %22 = dma.hbm_to_vmem [thread:$0]  %s0, 256, %s17, [#allocation4], 128, 128, 8
    $region5: #{transformer_forward.27} parent=1 // pred_fallthru
      _
    // Predicated region
    $region6: #{transformer_forward.27} parent=1 // pred_check
      _
    $region7: #{transformer_forward.27} parent=1 // pred_check_branch
      %24 = sbr.rel (0) target = $region9
    $region8: #{transformer_forward.27} parent=1 // pred_region
      %s26 = ssub.s32 512, 512
      %27 = vsyncadd [#allocation7], %s26
      %s28 = sshll.u32 [#allocation6], 4
      %s29 = int_to_ptr.vmem [resolvable:$true] %s28
      %34 = dma.hbm_to_vmem [thread:$0]  %s1, 512, %s29, [#allocation7], 128, 128, 8
    $region9: #{transformer_forward.27} parent=1 // pred_fallthru
      _
    // Predicated region
    $region10: #{transformer_forward.27} parent=1 // pred_check
      _
    $region11: #{transformer_forward.27} parent=1 // pred_check_branch
      %36 = sbr.rel (0) target = $region13
    $region12: #{transformer_forward.27} parent=1 // pred_region
      %s38 = ssub.s32 256, 256
      %39 = vsyncadd [#allocation7], %s38
      %s40 = sshll.u32 [#allocation8], 4
      %s41 = int_to_ptr.vmem [resolvable:$true] %s40
      %46 = dma.hbm_to_vmem [thread:$0]  %s2, 256, %s41, [#allocation7], 128, 128, 8
    $region13: #{transformer_forward.27} parent=1 // pred_fallthru
      _
    // Predicated region
    $region14: #{transformer_forward.27} parent=1 // pred_check
      _
    $region15: #{transformer_forward.27} parent=1 // pred_check_branch
      %48 = sbr.rel (0) target = $region17
    $region16: #{transformer_forward.27} parent=1 // pred_region
      %49 = dma.done [#allocation4], 256
    $region17: #{transformer_forward.27} parent=1 // pred_fallthru
      _
    // Predicated region
    $region18: #{transformer_forward.27} parent=1 // pred_check
      _
    $region19: #{transformer_forward.27} parent=1 // pred_check_branch
      %51 = sbr.rel (0) target = $region21
    $region20: #{transformer_forward.27} parent=1 // pred_region
      %52 = dma.done [#allocation7], 512
    $region21: #{transformer_forward.27} parent=1 // pred_fallthru
      _
    // Predicated region
    $region22: #{transformer_forward.27} parent=1 // pred_check
      _
    $region23: #{transformer_forward.27} parent=1 // pred_check_branch
      %54 = sbr.rel (0) target = $region25
    $region24: #{transformer_forward.27} parent=1 // pred_region
      %55 = dma.done [#allocation7], 256
    $region25: #{transformer_forward.27} parent=1 // pred_fallthru
      _
    %p57 = scmp.eq.s32.totalorder 0, 0
    // Predicated region
    $region26: #{transformer_forward.27} parent=1 // pred_check
      %p58 = pneg %p57
    $region27: #{transformer_forward.27} parent=1 // pred_check_branch
      %60 = sbr.rel (%p58) target = $region29
    $region28: #{transformer_forward.27} parent=1 // pred_region
      %vm61 = vcmask 261120
      %62 = vst.msk [vmem:[#allocation2] sm:$0xff] %vm61, 0.0
      %63 = vst.msk [vmem:[#allocation2 + $0x8] sm:$0xff] %vm61, 0.0
    $region29: #{transformer_forward.27} parent=1 // pred_fallthru
      _
    %v64 = vld [vmem:[#allocation2] sm:$0xff]
    %v65 = vld [vmem:[#allocation2 + $0x8] sm:$0xff]
    %v66 = vld [vmem:[#allocation3] sm:$0xff]
    %v67 = vld [vmem:[#allocation3 + $0x8] sm:$0xff]
    %v68 = vpack.c.bf16 %v67, %v66
    %v69 = vld [vmem:[#allocation6] sm:$0xff]
    %v70 = vld [vmem:[#allocation6 + $0x8] sm:$0xff]
    %v71 = vld [vmem:[#allocation6 + $0x10] sm:$0xff]
    %v72 = vld [vmem:[#allocation6 + $0x18] sm:$0xff]
    %v73 = vpack.c.bf16 %v70, %v69
    %v74 = vpack.c.bf16 %v72, %v71
    %vm75 = vcmask 261120
    %v77 = vsel %vm75, %v68, 0
    %79 = vmatprep.subr.bf16.mxu0 0
    %80 = vmatpush1.bf16.msra.mxu0 %v73
    %81 = vmatprep.subr.bf16.mxu0 0
    %82 = vmatpush1.bf16.msra.mxu0 %v74
    %83 = vmatprep.subr.bf16.mxu0 0
    %84 = vmatpush1.bf16.msra.mxu0 0
    %85 = vmatprep.subr.bf16.mxu0 0
    %86 = vmatpush1.bf16.msra.mxu0 0
    %87 = vmatprep.subr.bf16.mxu0 0
    %88 = vmatpush1.bf16.msra.mxu0 0
    %89 = vmatprep.subr.bf16.mxu0 0
    %90 = vmatpush1.bf16.msra.mxu0 0
    %91 = vmatprep.subr.bf16.mxu0 0
    %92 = vmatpush1.bf16.msra.mxu0 0
    %93 = vmatprep.subr.bf16.mxu0 0
    %94 = vmatpush1.bf16.msra.mxu0 0
    %95 = vmatprep.subr.bf16.mxu0 0
    %96 = vmatpush1.bf16.msra.mxu0 0
    %97 = vmatprep.subr.bf16.mxu0 0
    %98 = vmatpush1.bf16.msra.mxu0 0
    %99 = vmatprep.subr.bf16.mxu0 0
    %100 = vmatpush1.bf16.msra.mxu0 0
    %101 = vmatprep.subr.bf16.mxu0 0
    %102 = vmatpush1.bf16.msra.mxu0 0
    %103 = vmatprep.subr.bf16.mxu0 0
    %104 = vmatpush1.bf16.msra.mxu0 0
    %105 = vmatprep.subr.bf16.mxu0 0
    %106 = vmatpush1.bf16.msra.mxu0 0
    %107 = vmatprep.subr.bf16.mxu0 0
    %108 = vmatpush1.bf16.msra.mxu0 0
    %109 = vmatprep.subr.bf16.mxu0 0
    %110 = vmatpush1.bf16.msra.mxu0 0
    %111 = vmatprep.mubr.bf16.mxu0 0
    %112 = vmatmul.mubr.bf16.gmra.mrb[0].mxu0 %v77
    %v113 = vpop.f32.mrb[0].mxu0
    %v114 = vadd.f32 0.0, %v113
    %v115 = vpop.f32.mrb[0].mxu0
    %v116 = vpop.f32.mrb[0].mxu0
    %v117 = vadd.f32 0.0, %v116
    %v118 = vpop.f32.mrb[0].mxu0
    %119 = vdwg.mxu0
    %v120 = vadd.f32 %v64, %v114
    %v121 = vadd.f32 %v65, %v117
    %122 = vst.msk [vmem:[#allocation2] sm:$0xff] %vm75, %v120
    %123 = vst.msk [vmem:[#allocation2 + $0x8] sm:$0xff] %vm75, %v121
    // Predicated region
    $region30: #{transformer_forward.27} parent=1 // pred_check
      %p124 = pneg %p57
    $region31: #{transformer_forward.27} parent=1 // pred_check_branch
      %126 = sbr.rel (%p124) target = $region33
    $region32: #{transformer_forward.27} parent=1 // pred_region
      %v127 = vld [vmem:[#allocation2] sm:$0xff]
      %v128 = vld [vmem:[#allocation2 + $0x8] sm:$0xff]
      %v129 = vld [vmem:[#allocation8] sm:$0xff]
      %v130 = vld [vmem:[#allocation8 + $0x8] sm:$0xff]
      %v131 = vadd.f32 %v127, %v129
      %v132 = vadd.f32 %v128, %v130
      %133 = vst.msk [vmem:[#allocation9] sm:$0xff] %vm75, %v131
      %134 = vst.msk [vmem:[#allocation9 + $0x8] sm:$0xff] %vm75, %v132
    $region33: #{transformer_forward.27} parent=1 // pred_fallthru
      _
    // Predicated region
    $region34: #{transformer_forward.27} parent=1 // pred_check
      _
    $region35: #{transformer_forward.27} parent=1 // pred_check_branch
      %136 = sbr.rel (0) target = $region37
    $region36: #{transformer_forward.27} parent=1 // pred_region
      %s138 = ssub.s32 256, 256
      %139 = vsyncadd [#allocation5], %s138
      %s140 = sshll.u32 [#allocation9], 4
      %s141 = int_to_ptr.vmem [resolvable:$true] %s140
      %146 = dma.vmem_to_hbm [thread:$0]  %s141, 256, %s3, [#allocation5], 128, 128, 8
    $region37: #{transformer_forward.27} parent=1 // pred_fallthru
      _
    // Predicated region
    $region38: #{transformer_forward.27} parent=1 // pred_check
      _
    $region39: #{transformer_forward.27} parent=1 // pred_check_branch
      %148 = sbr.rel (0) target = $region41
    $region40: #{transformer_forward.27} parent=1 // pred_region
      %149 = dma.done [#allocation5], 256
    $region41: #{transformer_forward.27} parent=1 // pred_fallthru
      _
    %150 = vsyncpa [#allocation4], 1
    %151 = vsyncpa [#allocation7], 1
    %152 = vsyncpa [#allocation5], 1

// kernel: transformer_forward.25
$region0: #{transformer_forward.25}
  #allocation0 [shape = 'u32[]', space=smem, size = 0x4, offset = 0x4, fixed_abs, tag = 'smem constant byte address 0x4 - core index']
  #allocation1 [shape = 'u32[144,128]{1,0:T(1,128)}', space=vmem, size = 0x12000, scoped, tag = 'internal scratch']
  %s0 = inlined_call_operand.hbm [shape: f32[16,32], index: 0, kind: input, shape index: {}]
  %s1 = inlined_call_operand.hbm [shape: f32[1,32], index: 1, kind: input, shape index: {}]
  %s2 = inlined_call_operand.hbm [shape: f32[1,32], index: 2, kind: input, shape index: {}]
  %s3 = inlined_call_operand.hbm [shape: f32[32,64], index: 3, kind: input, shape index: {}]
  %s4 = inlined_call_operand.hbm [shape: f32[16,64], index: 4, kind: output, shape index: {}]
  %s5 = sld [smem:[#allocation0]]
  $region42: #{transformer_forward.25} parent=0
    _
  %s7 = ssub.s32 1, %s5
  %s8 = scalar_select 0, %s7, %s5
  $region1: #{transformer_forward.25} parent=0
    #allocation2 [shape = 'u8[8192]{0}', space=vmem, size = 0x2000, scoped, tag = 'input window, operand 0, single buffered']
    #allocation3 [shape = 's32[1]{0}', space=sflag, size = 0x4, scoped, tag = 'scoped memory for transformer_forward.25']
    #allocation4 [shape = 's32[1]{0}', space=sflag, size = 0x4, scoped, tag = 'scoped memory for transformer_forward.25']
    #allocation5 [shape = 'u8[512]{0}', space=vmem, size = 0x400, scoped, tag = 'input window, operand 1, single buffered']
    #allocation6 [shape = 's32[1]{0}', space=sflag, size = 0x4, scoped, tag = 'scoped memory for transformer_forward.25']
    #allocation7 [shape = 'u8[512]{0}', space=vmem, size = 0x400, scoped, tag = 'input window, operand 2, single buffered']
    #allocation8 [shape = 'u8[16384]{0}', space=vmem, size = 0x4000, scoped, tag = 'input window, operand 3, single buffered']
    #allocation9 [shape = 's32[1]{0}', space=sflag, size = 0x4, scoped, tag = 'scoped memory for transformer_forward.25']
    #allocation10 [shape = 'u8[8192]{0}', space=vmem, size = 0x2000, scoped, tag = 'output window, operand 0, single buffered']
    %9 = vsyncpa [#allocation3], 0
    %10 = vsyncpa [#allocation6], 0
    %11 = vsyncpa [#allocation9], 0
    %12 = vsyncpa [#allocation4], 0
    // Predicated region
    $region2: #{transformer_forward.25} parent=1 // pred_check
      _
    $region3: #{transformer_forward.25} parent=1 // pred_check_branch
      %14 = sbr.rel (0) target = $region5
    $region4: #{transformer_forward.25} parent=1 // pred_region
      %s16 = ssub.s32 256, 256
      %17 = vsyncadd [#allocation3], %s16
      %s18 = sshll.u32 [#allocation2], 4
      %s19 = int_to_ptr.vmem [resolvable:$true] %s18
      %24 = dma.hbm_to_vmem [thread:$0]  %s0, 256, %s19, [#allocation3], 128, 128, 8
    $region5: #{transformer_forward.25} parent=1 // pred_fallthru
      _
    // Predicated region
    $region6: #{transformer_forward.25} parent=1 // pred_check
      _
    $region7: #{transformer_forward.25} parent=1 // pred_check_branch
      %26 = sbr.rel (0) target = $region9
    $region8: #{transformer_forward.25} parent=1 // pred_region
      %s28 = ssub.s32 16, 16
      %29 = vsyncadd [#allocation6], %s28
      %s31 = sshll.u32 [#allocation5], 4
      %s32 = int_to_ptr.vmem [resolvable:$true] %s31
      %34 = dma.hbm_to_vmem [thread:$0]  %s1, 16, %s32, [#allocation6]
    $region9: #{transformer_forward.25} parent=1 // pred_fallthru
      _
    // Predicated region
    $region10: #{transformer_forward.25} parent=1 // pred_check
      _
    $region11: #{transformer_forward.25} parent=1 // pred_check_branch
      %36 = sbr.rel (0) target = $region13
    $region12: #{transformer_forward.25} parent=1 // pred_region
      %s38 = ssub.s32 16, 16
      %39 = vsyncadd [#allocation6], %s38
      %s41 = sshll.u32 [#allocation7], 4
      %s42 = int_to_ptr.vmem [resolvable:$true] %s41
      %44 = dma.hbm_to_vmem [thread:$0]  %s2, 16, %s42, [#allocation6]
    $region13: #{transformer_forward.25} parent=1 // pred_fallthru
      _
    // Predicated region
    $region14: #{transformer_forward.25} parent=1 // pred_check
      _
    $region15: #{transformer_forward.25} parent=1 // pred_check_branch
      %46 = sbr.rel (0) target = $region17
    $region16: #{transformer_forward.25} parent=1 // pred_region
      %s48 = ssub.s32 512, 512
      %49 = vsyncadd [#allocation9], %s48
      %s50 = sshll.u32 [#allocation8], 4
      %s51 = int_to_ptr.vmem [resolvable:$true] %s50
      %56 = dma.hbm_to_vmem [thread:$0]  %s3, 512, %s51, [#allocation9], 128, 128, 8
    $region17: #{transformer_forward.25} parent=1 // pred_fallthru
      _
    // Predicated region
    $region18: #{transformer_forward.25} parent=1 // pred_check
      _
    $region19: #{transformer_forward.25} parent=1 // pred_check_branch
      %58 = sbr.rel (0) target = $region21
    $region20: #{transformer_forward.25} parent=1 // pred_region
      %59 = dma.done [#allocation3], 256
    $region21: #{transformer_forward.25} parent=1 // pred_fallthru
      _
    // Predicated region
    $region22: #{transformer_forward.25} parent=1 // pred_check
      _
    $region23: #{transformer_forward.25} parent=1 // pred_check_branch
      %61 = sbr.rel (0) target = $region25
    $region24: #{transformer_forward.25} parent=1 // pred_region
      %62 = dma.done [#allocation6], 16
    $region25: #{transformer_forward.25} parent=1 // pred_fallthru
      _
    // Predicated region
    $region26: #{transformer_forward.25} parent=1 // pred_check
      _
    $region27: #{transformer_forward.25} parent=1 // pred_check_branch
      %64 = sbr.rel (0) target = $region29
    $region28: #{transformer_forward.25} parent=1 // pred_region
      %65 = dma.done [#allocation6], 16
    $region29: #{transformer_forward.25} parent=1 // pred_fallthru
      _
    // Predicated region
    $region30: #{transformer_forward.25} parent=1 // pred_check
      _
    $region31: #{transformer_forward.25} parent=1 // pred_check_branch
      %67 = sbr.rel (0) target = $region33
    $region32: #{transformer_forward.25} parent=1 // pred_region
      %68 = dma.done [#allocation9], 512
    $region33: #{transformer_forward.25} parent=1 // pred_fallthru
      _
    %v70 = vld [vmem:[#allocation2] sm:$0xff]
    %v71 = vld [vmem:[#allocation2 + $0x8] sm:$0xff]
    %vm72 = vcmask 261120
    %v73 = vsel %vm72, %v70, 0.0
    %74 = vadd.xlane.f32.xlu0 %v73
    %v75 = vpop.xlane.xlu0 %74
    %v76 = vsel %vm72, %v71, 0.0
    %77 = vadd.xlane.f32.xlu0 %v76
    %v78 = vpop.xlane.xlu0 %77
    %v79 = vrcp.pop 32.0
    %v80 = vmul.f32 %v75, %v79
    %v81 = vmul.f32 %v78, %v79
    %v82 = vsub.f32 %v70, %v80
    %v83 = vsub.f32 %v71, %v81
    %v84 = vmul.f32 %v82, %v82
    %v85 = vmul.f32 %v83, %v83
    %v86 = vsel %vm72, %v84, 0.0
    %87 = vadd.xlane.f32.xlu0 %v86
    %v88 = vpop.xlane.xlu0 %87
    %v89 = vsel %vm72, %v85, 0.0
    %90 = vadd.xlane.f32.xlu0 %v89
    %v91 = vpop.xlane.xlu0 %90
    %v92 = vmul.f32 %v88, %v79
    %v93 = vmul.f32 %v91, %v79
    %v94 = vadd.f32 %v92, 1e-05
    %v95 = vadd.f32 %v93, 1e-05
    %v96 = vrsqrt.pop %v94
    %v97 = vrsqrt.pop %v95
    %v98 = vmul.f32 %v82, %v96
    %v99 = vmul.f32 %v83, %v97
    %v100 = vld [vmem:[#allocation5] sm:$0x1]
    %v102 = vlaneseq
    %v103 = vshrl.u32 %v102, 7
    %v104 = vsub.s32 0, %v103
    %v105 = vrot.slane %v100, %v104
    %v107 = vmul.f32 %v98, %v105
    %v108 = vmul.f32 %v99, %v105
    %v109 = vld [vmem:[#allocation7] sm:$0x1]
    %v111 = vlaneseq
    %v112 = vshrl.u32 %v111, 7
    %v113 = vsub.s32 0, %v112
    %v114 = vrot.slane %v109, %v113
    %v116 = vadd.f32 %v107, %v114
    %v117 = vadd.f32 %v108, %v114
    %v118 = vpack.c.bf16 %v117, %v116
    %v119 = vld [vmem:[#allocation8] sm:$0xff]
    %v120 = vld [vmem:[#allocation8 + $0x8] sm:$0xff]
    %v121 = vld [vmem:[#allocation8 + $0x10] sm:$0xff]
    %v122 = vld [vmem:[#allocation8 + $0x18] sm:$0xff]
    %v123 = vpack.c.bf16 %v120, %v119
    %v124 = vpack.c.bf16 %v122, %v121
    %v126 = vsel %vm72, %v118, 0
    %128 = vmatprep.subr.bf16.mxu0 0
    %129 = vmatpush1.bf16.msra.mxu0 %v123
    %130 = vmatprep.subr.bf16.mxu0 0
    %131 = vmatpush1.bf16.msra.mxu0 %v124
    %132 = vmatprep.subr.bf16.mxu0 0
    %133 = vmatpush1.bf16.msra.mxu0 0
    %134 = vmatprep.subr.bf16.mxu0 0
    %135 = vmatpush1.bf16.msra.mxu0 0
    %136 = vmatprep.subr.bf16.mxu0 0
    %137 = vmatpush1.bf16.msra.mxu0 0
    %138 = vmatprep.subr.bf16.mxu0 0
    %139 = vmatpush1.bf16.msra.mxu0 0
    %140 = vmatprep.subr.bf16.mxu0 0
    %141 = vmatpush1.bf16.msra.mxu0 0
    %142 = vmatprep.subr.bf16.mxu0 0
    %143 = vmatpush1.bf16.msra.mxu0 0
    %144 = vmatprep.subr.bf16.mxu0 0
    %145 = vmatpush1.bf16.msra.mxu0 0
    %146 = vmatprep.subr.bf16.mxu0 0
    %147 = vmatpush1.bf16.msra.mxu0 0
    %148 = vmatprep.subr.bf16.mxu0 0
    %149 = vmatpush1.bf16.msra.mxu0 0
    %150 = vmatprep.subr.bf16.mxu0 0
    %151 = vmatpush1.bf16.msra.mxu0 0
    %152 = vmatprep.subr.bf16.mxu0 0
    %153 = vmatpush1.bf16.msra.mxu0 0
    %154 = vmatprep.subr.bf16.mxu0 0
    %155 = vmatpush1.bf16.msra.mxu0 0
    %156 = vmatprep.subr.bf16.mxu0 0
    %157 = vmatpush1.bf16.msra.mxu0 0
    %158 = vmatprep.subr.bf16.mxu0 0
    %159 = vmatpush1.bf16.msra.mxu0 0
    %160 = vmatprep.mubr.bf16.mxu0 0
    %161 = vmatmul.mubr.bf16.gmra.mrb[0].mxu0 %v126
    %v162 = vpop.f32.mrb[0].mxu0
    %v163 = vadd.f32 0.0, %v162
    %v164 = vpop.f32.mrb[0].mxu0
    %v165 = vpop.f32.mrb[0].mxu0
    %v166 = vadd.f32 0.0, %v165
    %v167 = vpop.f32.mrb[0].mxu0
    %168 = vdwg.mxu0
    %vm169 = vcmask 523264
    %170 = vst.msk [vmem:[#allocation10] sm:$0xff] %vm169, %v163
    %171 = vst.msk [vmem:[#allocation10 + $0x8] sm:$0xff] %vm169, %v166
    // Predicated region
    $region34: #{transformer_forward.25} parent=1 // pred_check
      _
    $region35: #{transformer_forward.25} parent=1 // pred_check_branch
      %173 = sbr.rel (0) target = $region37
    $region36: #{transformer_forward.25} parent=1 // pred_region
      %s175 = ssub.s32 256, 256
      %176 = vsyncadd [#allocation4], %s175
      %s177 = sshll.u32 [#allocation10], 4
      %s178 = int_to_ptr.vmem [resolvable:$true] %s177
      %183 = dma.vmem_to_hbm [thread:$0]  %s178, 256, %s4, [#allocation4], 128, 128, 8
    $region37: #{transformer_forward.25} parent=1 // pred_fallthru
      _
    // Predicated region
    $region38: #{transformer_forward.25} parent=1 // pred_check
      _
    $region39: #{transformer_forward.25} parent=1 // pred_check_branch
      %185 = sbr.rel (0) target = $region41
    $region40: #{transformer_forward.25} parent=1 // pred_region
      %186 = dma.done [#allocation4], 256
    $region41: #{transformer_forward.25} parent=1 // pred_fallthru
      _
    %187 = vsyncpa [#allocation3], 1
    %188 = vsyncpa [#allocation6], 1
    %189 = vsyncpa [#allocation9], 1
    %190 = vsyncpa [#allocation4], 1

// kernel: transformer_forward.26
$region0: #{transformer_forward.26}
  #allocation0 [shape = 'u32[]', space=smem, size = 0x4, offset = 0x4, fixed_abs, tag = 'smem constant byte address 0x4 - core index']
  #allocation1 [shape = 'u32[144,128]{1,0:T(1,128)}', space=vmem, size = 0x12000, scoped, tag = 'internal scratch']
  #allocation2 [shape = 's32[1]{0}', space=sflag, size = 0x4, scoped, tag = 'scoped memory for transformer_forward.26']
  #allocation3 [shape = 'u8[512]{0}', space=smem, size = 0x200, scoped, tag = 'prefetched SMEM operand 0']
  %s0 = inlined_call_operand.hbm [shape: s32[2], index: 0, kind: input, shape index: {}]
  %s1 = inlined_call_operand.hbm [shape: f32[2,8,32], index: 1, kind: input, shape index: {}]
  %s2 = inlined_call_operand.hbm [shape: f32[2,8,32], index: 2, kind: input, shape index: {}]
  %s3 = inlined_call_operand.hbm [shape: f32[2,8,32], index: 3, kind: output, shape index: {}]
  %s4 = sld [smem:[#allocation0]]
  $region49: #{transformer_forward.26} parent=0
    _
  %s6 = ssub.s32 1, %s4
  %s7 = scalar_select 0, %s6, %s4
  %9 = dma.hbm_to_smem %s0, 16, [#allocation3], [#allocation2]
  %10 = dma.done [#allocation2], 16
  %11 = sfence
  $region1: #{transformer_forward.26} parent=0
    #allocation4 [shape = 'u8[8192]{0}', space=vmem, size = 0x2000, scoped, tag = 'input window, operand 1']
    #allocation5 [shape = 's32[2]{0}', space=sflag, size = 0x8, scoped, tag = 'scoped memory for transformer_forward.26']
    #allocation6 [shape = 's32[2]{0}', space=sflag, size = 0x8, scoped, tag = 'scoped memory for transformer_forward.26']
    #allocation7 [shape = 'u8[8192]{0}', space=vmem, size = 0x2000, scoped, tag = 'input window, operand 2']
    #allocation8 [shape = 's32[2]{0}', space=sflag, size = 0x8, scoped, tag = 'scoped memory for transformer_forward.26']
    #allocation9 [shape = 'u8[8192]{0}', space=vmem, size = 0x2000, scoped, tag = 'output window, operand 0']
    %12 = vsyncpa [#allocation5], 0
    %s13 = scalar_lea.sflag [#allocation5], 1
    %14 = vsyncpa %s13, 0
    %15 = vsyncpa [#allocation8], 0
    %s16 = scalar_lea.sflag [#allocation8], 1
    %17 = vsyncpa %s16, 0
    %18 = vsyncpa [#allocation6], 0
    %s19 = scalar_lea.sflag [#allocation6], 1
    %20 = vsyncpa %s19, 0
    loop: start=0, step=1, limit=4
    $region2: #{transformer_forward.26} parent=1 // loop_pre_header
      _
    $region3: #{transformer_forward.26} parent=1 // loop_header
      %s22 = sphi 0, %s26
      %p23 = scmp.ge.s32.totalorder %s22, 4
      %s32 = sphi 0, %s34
      %s35 = sphi 0, %s32
      %s36 = sphi 0, %s35
      %s52 = sphi 0, %s36
      %s58 = sphi 0, %s60
      %s61 = sphi 0, %s58
      %s62 = sphi 0, %s61
      %s78 = sphi 0, %s62
      %s84 = sphi 0, %s86
      %s87 = sphi 0, %s84
      %s88 = sphi 0, %s87
      %s104 = sphi 0, %s88
    $region4: #{transformer_forward.26} parent=1 // loop_header_branch
      %25 = sbr.rel (%p23) target = $region8
    $region5: #{transformer_forward.26} parent=1 // loop_body
      %s27 = ssub.s32 %s22, 1
      %s28 = ssub.s32 %s22, 2
      %s29 = sadd.s32 %s22, 1
      %s30 = ssub.s32 %s22, %s29
      %p31 = scmp.eq.s32.totalorder %s30, 0
      %s33 = sadd.s32 %s32, 1
      %s34 = scalar_select %p31, %s32, %s33
      %p37 = pneg %p31
      %p38 = scmp.eq.s32.totalorder %s22, 1
      %p39 = por %p37, %p38
      %p40 = scmp.ne.s32.totalorder %s32, %s35
      %p41 = scmp.eq.s32.totalorder %s22, 0
      %p42 = por %p40, %p41
      %p43 = scmp.ne.s32.totalorder %s32, %s35
      %p44 = scmp.eq.s32.totalorder %s27, 1
      %p45 = por %p43, %p44
      %p46 = scmp.ne.s32.totalorder %s35, %s36
      %p47 = scmp.eq.s32.totalorder %s27, 0
      %p48 = por %p46, %p47
      %p49 = scmp.ne.s32.totalorder %s35, %s36
      %p50 = scmp.eq.s32.totalorder %s28, 1
      %p51 = por %p49, %p50
      %p53 = scmp.ne.s32.totalorder %s36, %s52
      %p54 = scmp.eq.s32.totalorder %s28, 0
      %p55 = por %p53, %p54
      %s56 = ssub.s32 %s22, %s29
      %p57 = scmp.eq.s32.totalorder %s56, 0
      %s59 = sadd.s32 %s58, 1
      %s60 = scalar_select %p57, %s58, %s59
      %p63 = pneg %p57
      %p64 = scmp.eq.s32.totalorder %s22, 1
      %p65 = por %p63, %p64
      %p66 = scmp.ne.s32.totalorder %s58, %s61
      %p67 = scmp.eq.s32.totalorder %s22, 0
      %p68 = por %p66, %p67
      %p69 = scmp.ne.s32.totalorder %s58, %s61
      %p70 = scmp.eq.s32.totalorder %s27, 1
      %p71 = por %p69, %p70
      %p72 = scmp.ne.s32.totalorder %s61, %s62
      %p73 = scmp.eq.s32.totalorder %s27, 0
      %p74 = por %p72, %p73
      %p75 = scmp.ne.s32.totalorder %s61, %s62
      %p76 = scmp.eq.s32.totalorder %s28, 1
      %p77 = por %p75, %p76
      %p79 = scmp.ne.s32.totalorder %s62, %s78
      %p80 = scmp.eq.s32.totalorder %s28, 0
      %p81 = por %p79, %p80
      %s82 = ssub.s32 %s22, %s29
      %p83 = scmp.eq.s32.totalorder %s82, 0
      %s85 = sadd.s32 %s84, 1
      %s86 = scalar_select %p83, %s84, %s85
      %p89 = pneg %p83
      %p90 = scmp.eq.s32.totalorder %s22, 1
      %p91 = por %p89, %p90
      %p92 = scmp.ne.s32.totalorder %s84, %s87
      %p93 = scmp.eq.s32.totalorder %s22, 0
      %p94 = por %p92, %p93
      %p95 = scmp.ne.s32.totalorder %s84, %s87
      %p96 = scmp.eq.s32.totalorder %s27, 1
      %p97 = por %p95, %p96
      %p98 = scmp.ne.s32.totalorder %s87, %s88
      %p99 = scmp.eq.s32.totalorder %s27, 0
      %p100 = por %p98, %p99
      %p101 = scmp.ne.s32.totalorder %s87, %s88
      %p102 = scmp.eq.s32.totalorder %s28, 1
      %p103 = por %p101, %p102
      %p105 = scmp.ne.s32.totalorder %s88, %s104
      %p106 = scmp.eq.s32.totalorder %s28, 0
      %p107 = por %p105, %p106
      %p108 = scmp.le.s32.totalorder 1, %s22
      %p109 = scmp.lt.s32.totalorder %s22, 3
      %p110 = pnand %p108, %p109
      %p111 = pneg %p110
      // Predicated region
      $region9: #{transformer_forward.26} parent=5 // pred_check
        _
      $region10: #{transformer_forward.26} parent=5 // pred_check_branch
        %113 = sbr.rel (%p110) target = $region12
      $region11: #{transformer_forward.26} parent=5 // pred_region
        %s114 = ssub.s32 %s22, 1
      $region12: #{transformer_forward.26} parent=5 // pred_fallthru
        _
      %p115 = scmp.lt.s32.totalorder %s22, 2
      // Predicated region
      $region13: #{transformer_forward.26} parent=5 // pred_check
        %p116 = pneg %p115
      $region14: #{transformer_forward.26} parent=5 // pred_check_branch
        %118 = sbr.rel (%p116) target = $region16
      $region15: #{transformer_forward.26} parent=5 // pred_region
        // Predicated region
        $region17: #{transformer_forward.26} parent=15 // pred_check
          %p119 = pneg %p42
        $region18: #{transformer_forward.26} parent=15 // pred_check_branch
          %121 = sbr.rel (%p119) target = $region20
        $region19: #{transformer_forward.26} parent=15 // pred_region
          %s122 = sand.u32 %s32, 1
          %s123 = scalar_lea.sflag [#allocation5], %s122
          %s124 = sand.u32 %s32, 1
          %s125 = smul.addr %s124, 8
          %s126 = scalar_lea.vmem [#allocation4], %s125
          %s128 = ssub.s32 128, 128
          %129 = vsyncadd %s123, %s128
          %s130 = smul.addr %s22, 128
          %s131 = scalar_lea.hbm %s1, %s130
          %s133 = sshll.u32 %s126, 4
          %s134 = int_to_ptr.vmem [resolvable:$true] %s133
          %136 = dma.hbm_to_vmem [thread:$0]  %s131, 128, %s134, %s123
        $region20: #{transformer_forward.26} parent=15 // pred_fallthru
          _
        // Predicated region
        $region21: #{transformer_forward.26} parent=15 // pred_check
          %p137 = pneg %p68
        $region22: #{transformer_forward.26} parent=15 // pred_check_branch
          %139 = sbr.rel (%p137) target = $region24
        $region23: #{transformer_forward.26} parent=15 // pred_region
          %s140 = sand.u32 %s58, 1
          %s141 = scalar_lea.sflag [#allocation8], %s140
          %s142 = sand.u32 %s58, 1
          %s143 = smul.addr %s142, 8
          %s144 = scalar_lea.vmem [#allocation7], %s143
          %s146 = ssub.s32 128, 128
          %147 = vsyncadd %s141, %s146
          %s148 = smul.addr %s22, 128
          %s149 = scalar_lea.hbm %s2, %s148
          %s151 = sshll.u32 %s144, 4
          %s152 = int_to_ptr.vmem [resolvable:$true] %s151
          %154 = dma.hbm_to_vmem [thread:$0]  %s149, 128, %s152, %s141
        $region24: #{transformer_forward.26} parent=15 // pred_fallthru
          _
      $region16: #{transformer_forward.26} parent=5 // pred_fallthru
        _
      %p155 = scmp.le.s32.totalorder 1, %s22
      %p156 = scmp.lt.s32.totalorder %s22, 3
      %p157 = pnand %p155, %p156
      %p158 = pneg %p157
      // Predicated region
      $region25: #{transformer_forward.26} parent=5 // pred_check
        _
      $region26: #{transformer_forward.26} parent=5 // pred_check_branch
        %160 = sbr.rel (%p157) target = $region28
      $region27: #{transformer_forward.26} parent=5 // pred_region
        %s161 = ssub.s32 %s22, 1
        %s162 = sand.u32 %s35, 1
        %s163 = scalar_lea.sflag [#allocation5], %s162
        %s164 = sand.u32 %s35, 1
        %s165 = smul.addr %s164, 8
        %s166 = scalar_lea.vmem [#allocation4], %s165
        // Predicated region
        $region29: #{transformer_forward.26} parent=27 // pred_check
          %p167 = pneg %p48
        $region30: #{transformer_forward.26} parent=27 // pred_check_branch
          %169 = sbr.rel (%p167) target = $region32
        $region31: #{transformer_forward.26} parent=27 // pred_region
          %170 = dma.done %s163, 128
        $region32: #{transformer_forward.26} parent=27 // pred_fallthru
          _
        %s171 = sand.u32 %s61, 1
        %s172 = scalar_lea.sflag [#allocation8], %s171
        %s173 = sand.u32 %s61, 1
        %s174 = smul.addr %s173, 8
        %s175 = scalar_lea.vmem [#allocation7], %s174
        // Predicated region
        $region33: #{transformer_forward.26} parent=27 // pred_check
          %p176 = pneg %p74
        $region34: #{transformer_forward.26} parent=27 // pred_check_branch
          %178 = sbr.rel (%p176) target = $region36
        $region35: #{transformer_forward.26} parent=27 // pred_region
          %179 = dma.done %s172, 128
        $region36: #{transformer_forward.26} parent=27 // pred_fallthru
          _
        %s180 = sand.u32 %s35, 1
        %s181 = scalar_lea.sflag [#allocation5], %s180
        %s182 = sand.u32 %s35, 1
        %s183 = smul.addr %s182, 8
        %s184 = scalar_lea.vmem [#allocation4], %s183
        %p185 = pneg %p48
        %p186 = pneg %p45
        %s187 = sand.u32 %s61, 1
        %s188 = scalar_lea.sflag [#allocation8], %s187
        %s189 = sand.u32 %s61, 1
        %s190 = smul.addr %s189, 8
        %s191 = scalar_lea.vmem [#allocation7], %s190
        %p192 = pneg %p74
        %p193 = pneg %p71
        %p194 = pneg %p100
        %p195 = pneg %p97
        %s196 = sand.u32 %s87, 1
        %s197 = scalar_lea.sflag [#allocation6], %s196
        %s198 = sand.u32 %s87, 1
        %s199 = smul.addr %s198, 8
        %s200 = scalar_lea.vmem [#allocation9], %s199
        %v202 = vld [vmem:[%s166] sm:$0xff]
        %v203 = vpack.c.bf16 %v202, %v202
        %v204 = vld [vmem:[%s175] sm:$0xff]
        %v205 = vpack.c.bf16 %v204, %v204
        %v206 = vlaneseq
        %v207 = vand.u32 %v206, 127
        %s208 = sld [smem:[#allocation3 + %s27]]
        %v209 = vstv %s208
        %vm210 = vcmp.ge.s32.totalorder %v207, %v209
        %vm211 = vcmask 64512
        %v213 = vsel %vm211, %v203, 0
        %v216 = vsel %vm211, %v205, 0
        %218 = vmatprep.subr.bf16.mxu0 0
        %219 = vmatpush1.bf16.xpose.msra.mxu0 %v216
        %220 = vmatprep.subr.bf16.mxu0 0
        %221 = vmatpush1.bf16.xpose.msra.mxu0 0
        %222 = vmatprep.subr.bf16.mxu0 0
        %223 = vmatpush1.bf16.xpose.msra.mxu0 0
        %224 = vmatprep.subr.bf16.mxu0 0
        %225 = vmatpush1.bf16.xpose.msra.mxu0 0
        %226 = vmatprep.subr.bf16.mxu0 0
        %227 = vmatpush1.bf16.xpose.msra.mxu0 0
        %228 = vmatprep.subr.bf16.mxu0 0
        %229 = vmatpush1.bf16.xpose.msra.mxu0 0
        %230 = vmatprep.subr.bf16.mxu0 0
        %231 = vmatpush1.bf16.xpose.msra.mxu0 0
        %232 = vmatprep.subr.bf16.mxu0 0
        %233 = vmatpush1.bf16.xpose.msra.mxu0 0
        %234 = vmatprep.subr.bf16.mxu0 0
        %235 = vmatpush1.bf16.xpose.msra.mxu0 0
        %236 = vmatprep.subr.bf16.mxu0 0
        %237 = vmatpush1.bf16.xpose.msra.mxu0 0
        %238 = vmatprep.subr.bf16.mxu0 0
        %239 = vmatpush1.bf16.xpose.msra.mxu0 0
        %240 = vmatprep.subr.bf16.mxu0 0
        %241 = vmatpush1.bf16.xpose.msra.mxu0 0
        %242 = vmatprep.subr.bf16.mxu0 0
        %243 = vmatpush1.bf16.xpose.msra.mxu0 0
        %244 = vmatprep.subr.bf16.mxu0 0
        %245 = vmatpush1.bf16.xpose.msra.mxu0 0
        %246 = vmatprep.subr.bf16.mxu0 0
        %247 = vmatpush1.bf16.xpose.msra.mxu0 0
        %248 = vmatprep.subr.bf16.mxu0 0
        %249 = vmatpush1.bf16.xpose.msra.mxu0 0
        %250 = vmatprep.mubr.bf16.mxu0 0
        %251 = vmatmul.mubr.bf16.gmra.mrb[0].mxu0 %v213
        %v252 = vpop.f32.mrb[0].mxu0
        %v253 = vadd.f32 0.0, %v252
        %v254 = vpop.f32.mrb[0].mxu0
        %v255 = vpop.f32.mrb[0].mxu0
        %v256 = vpop.f32.mrb[0].mxu0
        %257 = vdwg.mxu0
        %v258 = vsel %vm210, -inf, %v253
        %v259 = vmul.f32 %v258, 0.35355338
        %v260 = vsel %vm211, %v259, -inf
        %261 = vmax.xlane.f32.xlu0 %v260
        %v262 = vpop.xlane.xlu0 %261
        %v263 = vsub.f32 %v259, %v262
        %v264 = vmul.f32 %v263, 1.442695
        %v265 = vpow.pop %v264
        %v266 = vsel %vm211, %v265, 0.0
        %267 = vadd.xlane.f32.xlu0 %v266
        %v268 = vpop.xlane.xlu0 %267
        %v269 = vrcp.pop %v268
        %v270 = vmul.f32 %v265, %v269
        %v271 = vpack.c.bf16 %v270, %v270
        %v273 = vsel %vm211, %v271, 0
        %vm275 = vcmask 1043456
        %v276 = vsel %vm275, %v205, 0
        %278 = vmatprep.subr.bf16.mxu0 0
        %279 = vmatpush1.bf16.msra.mxu0 %v276
        %280 = vmatprep.subr.bf16.mxu0 0
        %281 = vmatpush1.bf16.msra.mxu0 0
        %282 = vmatprep.subr.bf16.mxu0 0
        %283 = vmatpush1.bf16.msra.mxu0 0
        %284 = vmatprep.subr.bf16.mxu0 0
        %285 = vmatpush1.bf16.msra.mxu0 0
        %286 = vmatprep.subr.bf16.mxu0 0
        %287 = vmatpush1.bf16.msra.mxu0 0
        %288 = vmatprep.subr.bf16.mxu0 0
        %289 = vmatpush1.bf16.msra.mxu0 0
        %290 = vmatprep.subr.bf16.mxu0 0
        %291 = vmatpush1.bf16.msra.mxu0 0
        %292 = vmatprep.subr.bf16.mxu0 0
        %293 = vmatpush1.bf16.msra.mxu0 0
        %294 = vmatprep.subr.bf16.mxu0 0
        %295 = vmatpush1.bf16.msra.mxu0 0
        %296 = vmatprep.subr.bf16.mxu0 0
        %297 = vmatpush1.bf16.msra.mxu0 0
        %298 = vmatprep.subr.bf16.mxu0 0
        %299 = vmatpush1.bf16.msra.mxu0 0
        %300 = vmatprep.subr.bf16.mxu0 0
        %301 = vmatpush1.bf16.msra.mxu0 0
        %302 = vmatprep.subr.bf16.mxu0 0
        %303 = vmatpush1.bf16.msra.mxu0 0
        %304 = vmatprep.subr.bf16.mxu0 0
        %305 = vmatpush1.bf16.msra.mxu0 0
        %306 = vmatprep.subr.bf16.mxu0 0
        %307 = vmatpush1.bf16.msra.mxu0 0
        %308 = vmatprep.subr.bf16.mxu0 0
        %309 = vmatpush1.bf16.msra.mxu0 0
        %310 = vmatprep.mubr.bf16.mxu0 0
        %311 = vmatmul.mubr.bf16.gmra.mrb[0].mxu0 %v273
        %v312 = vpop.f32.mrb[0].mxu0
        %v313 = vadd.f32 0.0, %v312
        %v314 = vpop.f32.mrb[0].mxu0
        %v315 = vpop.f32.mrb[0].mxu0
        %v316 = vpop.f32.mrb[0].mxu0
        %317 = vdwg.mxu0
        %319 = vrot.lane.b32.xlu0 %v203, 120
        %v320 = vpop.permute.xlu0 %319
        %322 = vrot.lane.b32.xlu0 %v205, 120
        %v323 = vpop.permute.xlu0 %322
        %v325 = vsel %vm211, %v320, 0
        %v328 = vsel %vm211, %v323, 0
        %330 = vmatprep.subr.bf16.mxu0 0
        %331 = vmatpush1.bf16.xpose.msra.mxu0 %v328
        %332 = vmatprep.subr.bf16.mxu0 0
        %333 = vmatpush1.bf16.xpose.msra.mxu0 0
        %334 = vmatprep.subr.bf16.mxu0 0
        %335 = vmatpush1.bf16.xpose.msra.mxu0 0
        %336 = vmatprep.subr.bf16.mxu0 0
        %337 = vmatpush1.bf16.xpose.msra.mxu0 0
        %338 = vmatprep.subr.bf16.mxu0 0
        %339 = vmatpush1.bf16.xpose.msra.mxu0 0
        %340 = vmatprep.subr.bf16.mxu0 0
        %341 = vmatpush1.bf16.xpose.msra.mxu0 0
        %342 = vmatprep.subr.bf16.mxu0 0
        %343 = vmatpush1.bf16.xpose.msra.mxu0 0
        %344 = vmatprep.subr.bf16.mxu0 0
        %345 = vmatpush1.bf16.xpose.msra.mxu0 0
        %346 = vmatprep.subr.bf16.mxu0 0
        %347 = vmatpush1.bf16.xpose.msra.mxu0 0
        %348 = vmatprep.subr.bf16.mxu0 0
        %349 = vmatpush1.bf16.xpose.msra.mxu0 0
        %350 = vmatprep.subr.bf16.mxu0 0
        %351 = vmatpush1.bf16.xpose.msra.mxu0 0
        %352 = vmatprep.subr.bf16.mxu0 0
        %353 = vmatpush1.bf16.xpose.msra.mxu0 0
        %354 = vmatprep.subr.bf16.mxu0 0
        %355 = vmatpush1.bf16.xpose.msra.mxu0 0
        %356 = vmatprep.subr.bf16.mxu0 0
        %357 = vmatpush1.bf16.xpose.msra.mxu0 0
        %358 = vmatprep.subr.bf16.mxu0 0
        %359 = vmatpush1.bf16.xpose.msra.mxu0 0
        %360 = vmatprep.subr.bf16.mxu0 0
        %361 = vmatpush1.bf16.xpose.msra.mxu0 0
        %362 = vmatprep.mubr.bf16.mxu0 0
        %363 = vmatmul.mubr.bf16.gmra.mrb[0].mxu0 %v325
        %v364 = vpop.f32.mrb[0].mxu0
        %v365 = vadd.f32 0.0, %v364
        %v366 = vpop.f32.mrb[0].mxu0
        %v367 = vpop.f32.mrb[0].mxu0
        %v368 = vpop.f32.mrb[0].mxu0
        %369 = vdwg.mxu0
        %v370 = vsel %vm210, -inf, %v365
        %v371 = vmul.f32 %v370, 0.35355338
        %v372 = vsel %vm211, %v371, -inf
        %373 = vmax.xlane.f32.xlu0 %v372
        %v374 = vpop.xlane.xlu0 %373
        %v375 = vsub.f32 %v371, %v374
        %v376 = vmul.f32 %v375, 1.442695
        %v377 = vpow.pop %v376
        %v378 = vsel %vm211, %v377, 0.0
        %379 = vadd.xlane.f32.xlu0 %v378
        %v380 = vpop.xlane.xlu0 %379
        %v381 = vrcp.pop %v380
        %v382 = vmul.f32 %v377, %v381
        %v383 = vpack.c.bf16 %v382, %v382
        %v385 = vsel %vm211, %v383, 0
        %v387 = vsel %vm275, %v323, 0
        %389 = vmatprep.subr.bf16.mxu0 0
        %390 = vmatpush1.bf16.msra.mxu0 %v387
        %391 = vmatprep.subr.bf16.mxu0 0
        %392 = vmatpush1.bf16.msra.mxu0 0
        %393 = vmatprep.subr.bf16.mxu0 0
        %394 = vmatpush1.bf16.msra.mxu0 0
        %395 = vmatprep.subr.bf16.mxu0 0
        %396 = vmatpush1.bf16.msra.mxu0 0
        %397 = vmatprep.subr.bf16.mxu0 0
        %398 = vmatpush1.bf16.msra.mxu0 0
        %399 = vmatprep.subr.bf16.mxu0 0
        %400 = vmatpush1.bf16.msra.mxu0 0
        %401 = vmatprep.subr.bf16.mxu0 0
        %402 = vmatpush1.bf16.msra.mxu0 0
        %403 = vmatprep.subr.bf16.mxu0 0
        %404 = vmatpush1.bf16.msra.mxu0 0
        %405 = vmatprep.subr.bf16.mxu0 0
        %406 = vmatpush1.bf16.msra.mxu0 0
        %407 = vmatprep.subr.bf16.mxu0 0
        %408 = vmatpush1.bf16.msra.mxu0 0
        %409 = vmatprep.subr.bf16.mxu0 0
        %410 = vmatpush1.bf16.msra.mxu0 0
        %411 = vmatprep.subr.bf16.mxu0 0
        %412 = vmatpush1.bf16.msra.mxu0 0
        %413 = vmatprep.subr.bf16.mxu0 0
        %414 = vmatpush1.bf16.msra.mxu0 0
        %415 = vmatprep.subr.bf16.mxu0 0
        %416 = vmatpush1.bf16.msra.mxu0 0
        %417 = vmatprep.subr.bf16.mxu0 0
        %418 = vmatpush1.bf16.msra.mxu0 0
        %419 = vmatprep.subr.bf16.mxu0 0
        %420 = vmatpush1.bf16.msra.mxu0 0
        %421 = vmatprep.mubr.bf16.mxu0 0
        %422 = vmatmul.mubr.bf16.gmra.mrb[0].mxu0 %v385
        %v423 = vpop.f32.mrb[0].mxu0
        %v424 = vadd.f32 0.0, %v423
        %v425 = vpop.f32.mrb[0].mxu0
        %v426 = vpop.f32.mrb[0].mxu0
        %v427 = vpop.f32.mrb[0].mxu0
        %428 = vdwg.mxu0
        %429 = vrot.lane.b32.xlu0 %v203, 112
        %v430 = vpop.permute.xlu0 %429
        %431 = vrot.lane.b32.xlu0 %v205, 112
        %v432 = vpop.permute.xlu0 %431
        %v434 = vsel %vm211, %v430, 0
        %v437 = vsel %vm211, %v432, 0
        %439 = vmatprep.subr.bf16.mxu0 0
        %440 = vmatpush1.bf16.xpose.msra.mxu0 %v437
        %441 = vmatprep.subr.bf16.mxu0 0
        %442 = vmatpush1.bf16.xpose.msra.mxu0 0
        %443 = vmatprep.subr.bf16.mxu0 0
        %444 = vmatpush1.bf16.xpose.msra.mxu0 0
        %445 = vmatprep.subr.bf16.mxu0 0
        %446 = vmatpush1.bf16.xpose.msra.mxu0 0
        %447 = vmatprep.subr.bf16.mxu0 0
        %448 = vmatpush1.bf16.xpose.msra.mxu0 0
        %449 = vmatprep.subr.bf16.mxu0 0
        %450 = vmatpush1.bf16.xpose.msra.mxu0 0
        %451 = vmatprep.subr.bf16.mxu0 0
        %452 = vmatpush1.bf16.xpose.msra.mxu0 0
        %453 = vmatprep.subr.bf16.mxu0 0
        %454 = vmatpush1.bf16.xpose.msra.mxu0 0
        %455 = vmatprep.subr.bf16.mxu0 0
        %456 = vmatpush1.bf16.xpose.msra.mxu0 0
        %457 = vmatprep.subr.bf16.mxu0 0
        %458 = vmatpush1.bf16.xpose.msra.mxu0 0
        %459 = vmatprep.subr.bf16.mxu0 0
        %460 = vmatpush1.bf16.xpose.msra.mxu0 0
        %461 = vmatprep.subr.bf16.mxu0 0
        %462 = vmatpush1.bf16.xpose.msra.mxu0 0
        %463 = vmatprep.subr.bf16.mxu0 0
        %464 = vmatpush1.bf16.xpose.msra.mxu0 0
        %465 = vmatprep.subr.bf16.mxu0 0
        %466 = vmatpush1.bf16.xpose.msra.mxu0 0
        %467 = vmatprep.subr.bf16.mxu0 0
        %468 = vmatpush1.bf16.xpose.msra.mxu0 0
        %469 = vmatprep.subr.bf16.mxu0 0
        %470 = vmatpush1.bf16.xpose.msra.mxu0 0
        %471 = vmatprep.mubr.bf16.mxu0 0
        %472 = vmatmul.mubr.bf16.gmra.mrb[0].mxu0 %v434
        %v473 = vpop.f32.mrb[0].mxu0
        %v474 = vadd.f32 0.0, %v473
        %v475 = vpop.f32.mrb[0].mxu0
        %v476 = vpop.f32.mrb[0].mxu0
        %v477 = vpop.f32.mrb[0].mxu0
        %478 = vdwg.mxu0
        %v479 = vsel %vm210, -inf, %v474
        %v480 = vmul.f32 %v479, 0.35355338
        %v481 = vsel %vm211, %v480, -inf
        %482 = vmax.xlane.f32.xlu0 %v481
        %v483 = vpop.xlane.xlu0 %482
        %v484 = vsub.f32 %v480, %v483
        %v485 = vmul.f32 %v484, 1.442695
        %v486 = vpow.pop %v485
        %v487 = vsel %vm211, %v486, 0.0
        %488 = vadd.xlane.f32.xlu0 %v487
        %v489 = vpop.xlane.xlu0 %488
        %v490 = vrcp.pop %v489
        %v491 = vmul.f32 %v486, %v490
        %v492 = vpack.c.bf16 %v491, %v491
        %v494 = vsel %vm211, %v492, 0
        %v496 = vsel %vm275, %v432, 0
        %498 = vmatprep.subr.bf16.mxu0 0
        %499 = vmatpush1.bf16.msra.mxu0 %v496
        %500 = vmatprep.subr.bf16.mxu0 0
        %501 = vmatpush1.bf16.msra.mxu0 0
        %502 = vmatprep.subr.bf16.mxu0 0
        %503 = vmatpush1.bf16.msra.mxu0 0
        %504 = vmatprep.subr.bf16.mxu0 0
        %505 = vmatpush1.bf16.msra.mxu0 0
        %506 = vmatprep.subr.bf16.mxu0 0
        %507 = vmatpush1.bf16.msra.mxu0 0
        %508 = vmatprep.subr.bf16.mxu0 0
        %509 = vmatpush1.bf16.msra.mxu0 0
        %510 = vmatprep.subr.bf16.mxu0 0
        %511 = vmatpush1.bf16.msra.mxu0 0
        %512 = vmatprep.subr.bf16.mxu0 0
        %513 = vmatpush1.bf16.msra.mxu0 0
        %514 = vmatprep.subr.bf16.mxu0 0
        %515 = vmatpush1.bf16.msra.mxu0 0
        %516 = vmatprep.subr.bf16.mxu0 0
        %517 = vmatpush1.bf16.msra.mxu0 0
        %518 = vmatprep.subr.bf16.mxu0 0
        %519 = vmatpush1.bf16.msra.mxu0 0
        %520 = vmatprep.subr.bf16.mxu0 0
        %521 = vmatpush1.bf16.msra.mxu0 0
        %522 = vmatprep.subr.bf16.mxu0 0
        %523 = vmatpush1.bf16.msra.mxu0 0
        %524 = vmatprep.subr.bf16.mxu0 0
        %525 = vmatpush1.bf16.msra.mxu0 0
        %526 = vmatprep.subr.bf16.mxu0 0
        %527 = vmatpush1.bf16.msra.mxu0 0
        %528 = vmatprep.subr.bf16.mxu0 0
        %529 = vmatpush1.bf16.msra.mxu0 0
        %530 = vmatprep.mubr.bf16.mxu0 0
        %531 = vmatmul.mubr.bf16.gmra.mrb[0].mxu0 %v494
        %v532 = vpop.f32.mrb[0].mxu0
        %v533 = vadd.f32 0.0, %v532
        %v534 = vpop.f32.mrb[0].mxu0
        %v535 = vpop.f32.mrb[0].mxu0
        %v536 = vpop.f32.mrb[0].mxu0
        %537 = vdwg.mxu0
        %538 = vrot.lane.b32.xlu0 %v203, 104
        %v539 = vpop.permute.xlu0 %538
        %540 = vrot.lane.b32.xlu0 %v205, 104
        %v541 = vpop.permute.xlu0 %540
        %v543 = vsel %vm211, %v539, 0
        %v546 = vsel %vm211, %v541, 0
        %548 = vmatprep.subr.bf16.mxu0 0
        %549 = vmatpush1.bf16.xpose.msra.mxu0 %v546
        %550 = vmatprep.subr.bf16.mxu0 0
        %551 = vmatpush1.bf16.xpose.msra.mxu0 0
        %552 = vmatprep.subr.bf16.mxu0 0
        %553 = vmatpush1.bf16.xpose.msra.mxu0 0
        %554 = vmatprep.subr.bf16.mxu0 0
        %555 = vmatpush1.bf16.xpose.msra.mxu0 0
        %556 = vmatprep.subr.bf16.mxu0 0
        %557 = vmatpush1.bf16.xpose.msra.mxu0 0
        %558 = vmatprep.subr.bf16.mxu0 0
        %559 = vmatpush1.bf16.xpose.msra.mxu0 0
        %560 = vmatprep.subr.bf16.mxu0 0
        %561 = vmatpush1.bf16.xpose.msra.mxu0 0
        %562 = vmatprep.subr.bf16.mxu0 0
        %563 = vmatpush1.bf16.xpose.msra.mxu0 0
        %564 = vmatprep.subr.bf16.mxu0 0
        %565 = vmatpush1.bf16.xpose.msra.mxu0 0
        %566 = vmatprep.subr.bf16.mxu0 0
        %567 = vmatpush1.bf16.xpose.msra.mxu0 0
        %568 = vmatprep.subr.bf16.mxu0 0
        %569 = vmatpush1.bf16.xpose.msra.mxu0 0
        %570 = vmatprep.subr.bf16.mxu0 0
        %571 = vmatpush1.bf16.xpose.msra.mxu0 0
        %572 = vmatprep.subr.bf16.mxu0 0
        %573 = vmatpush1.bf16.xpose.msra.mxu0 0
        %574 = vmatprep.subr.bf16.mxu0 0
        %575 = vmatpush1.bf16.xpose.msra.mxu0 0
        %576 = vmatprep.subr.bf16.mxu0 0
        %577 = vmatpush1.bf16.xpose.msra.mxu0 0
        %578 = vmatprep.subr.bf16.mxu0 0
        %579 = vmatpush1.bf16.xpose.msra.mxu0 0
        %580 = vmatprep.mubr.bf16.mxu0 0
        %581 = vmatmul.mubr.bf16.gmra.mrb[0].mxu0 %v543
        %v582 = vpop.f32.mrb[0].mxu0
        %v583 = vadd.f32 0.0, %v582
        %v584 = vpop.f32.mrb[0].mxu0
        %v585 = vpop.f32.mrb[0].mxu0
        %v586 = vpop.f32.mrb[0].mxu0
        %587 = vdwg.mxu0
        %v588 = vsel %vm210, -inf, %v583
        %v589 = vmul.f32 %v588, 0.35355338
        %v590 = vsel %vm211, %v589, -inf
        %591 = vmax.xlane.f32.xlu0 %v590
        %v592 = vpop.xlane.xlu0 %591
        %v593 = vsub.f32 %v589, %v592
        %v594 = vmul.f32 %v593, 1.442695
        %v595 = vpow.pop %v594
        %v596 = vsel %vm211, %v595, 0.0
        %597 = vadd.xlane.f32.xlu0 %v596
        %v598 = vpop.xlane.xlu0 %597
        %v599 = vrcp.pop %v598
        %v600 = vmul.f32 %v595, %v599
        %v601 = vpack.c.bf16 %v600, %v600
        %v603 = vsel %vm211, %v601, 0
        %v605 = vsel %vm275, %v541, 0
        %607 = vmatprep.subr.bf16.mxu0 0
        %608 = vmatpush1.bf16.msra.mxu0 %v605
        %609 = vmatprep.subr.bf16.mxu0 0
        %610 = vmatpush1.bf16.msra.mxu0 0
        %611 = vmatprep.subr.bf16.mxu0 0
        %612 = vmatpush1.bf16.msra.mxu0 0
        %613 = vmatprep.subr.bf16.mxu0 0
        %614 = vmatpush1.bf16.msra.mxu0 0
        %615 = vmatprep.subr.bf16.mxu0 0
        %616 = vmatpush1.bf16.msra.mxu0 0
        %617 = vmatprep.subr.bf16.mxu0 0
        %618 = vmatpush1.bf16.msra.mxu0 0
        %619 = vmatprep.subr.bf16.mxu0 0
        %620 = vmatpush1.bf16.msra.mxu0 0
        %621 = vmatprep.subr.bf16.mxu0 0
        %622 = vmatpush1.bf16.msra.mxu0 0
        %623 = vmatprep.subr.bf16.mxu0 0
        %624 = vmatpush1.bf16.msra.mxu0 0
        %625 = vmatprep.subr.bf16.mxu0 0
        %626 = vmatpush1.bf16.msra.mxu0 0
        %627 = vmatprep.subr.bf16.mxu0 0
        %628 = vmatpush1.bf16.msra.mxu0 0
        %629 = vmatprep.subr.bf16.mxu0 0
        %630 = vmatpush1.bf16.msra.mxu0 0
        %631 = vmatprep.subr.bf16.mxu0 0
        %632 = vmatpush1.bf16.msra.mxu0 0
        %633 = vmatprep.subr.bf16.mxu0 0
        %634 = vmatpush1.bf16.msra.mxu0 0
        %635 = vmatprep.subr.bf16.mxu0 0
        %636 = vmatpush1.bf16.msra.mxu0 0
        %637 = vmatprep.subr.bf16.mxu0 0
        %638 = vmatpush1.bf16.msra.mxu0 0
        %639 = vmatprep.mubr.bf16.mxu0 0
        %640 = vmatmul.mubr.bf16.gmra.mrb[0].mxu0 %v603
        %v641 = vpop.f32.mrb[0].mxu0
        %v642 = vadd.f32 0.0, %v641
        %v643 = vpop.f32.mrb[0].mxu0
        %v644 = vpop.f32.mrb[0].mxu0
        %v645 = vpop.f32.mrb[0].mxu0
        %646 = vdwg.mxu0
        %648 = vrot.lane.b32.xlu0 %v424, 8
        %v649 = vpop.permute.xlu0 %648
        %652 = vrot.lane.b32.xlu0 %v533, 16
        %v653 = vpop.permute.xlu0 %652
        %656 = vrot.lane.b32.xlu0 %v642, 24
        %v657 = vpop.permute.xlu0 %656
        %v659 = vsel %vm211, %v313, %v649
        %vm660 = vcmask 130048
        %v661 = vsel %vm660, %v659, %v653
        %vm662 = vcmask 195584
        %v663 = vsel %vm662, %v661, %v657
        %vm664 = vcmask 261120
        %665 = vst.msk [vmem:[%s200] sm:$0xff] %vm664, %v663
        %s666 = sand.u32 %s87, 1
        %s667 = scalar_lea.sflag [#allocation6], %s666
        %s668 = sand.u32 %s87, 1
        %s669 = smul.addr %s668, 8
        %s670 = scalar_lea.vmem [#allocation9], %s669
        // Predicated region
        $region37: #{transformer_forward.26} parent=27 // pred_check
          %p671 = pneg %p97
        $region38: #{transformer_forward.26} parent=27 // pred_check_branch
          %673 = sbr.rel (%p671) target = $region40
        $region39: #{transformer_forward.26} parent=27 // pred_region
          %s675 = ssub.s32 128, 128
          %676 = vsyncadd %s667, %s675
          %s677 = smul.addr %s27, 128
          %s678 = scalar_lea.hbm %s3, %s677
          %s680 = sshll.u32 %s670, 4
          %s681 = int_to_ptr.vmem [resolvable:$true] %s680
          %683 = dma.vmem_to_hbm [thread:$0]  %s681, 128, %s678, %s667
        $region40: #{transformer_forward.26} parent=27 // pred_fallthru
          _
      $region28: #{transformer_forward.26} parent=5 // pred_fallthru
        _
      %p684 = scmp.le.s32.totalorder 2, %s22
      // Predicated region
      $region41: #{transformer_forward.26} parent=5 // pred_check
        %p685 = pneg %p684
      $region42: #{transformer_forward.26} parent=5 // pred_check_branch
        %687 = sbr.rel (%p685) target = $region44
      $region43: #{transformer_forward.26} parent=5 // pred_region
        %s688 = ssub.s32 %s22, 2
        // Predicated region
        $region45: #{transformer_forward.26} parent=43 // pred_check
          %p689 = pneg %p103
        $region46: #{transformer_forward.26} parent=43 // pred_check_branch
          %691 = sbr.rel (%p689) target = $region48
        $region47: #{transformer_forward.26} parent=43 // pred_region
          %s692 = sand.u32 %s88, 1
          %s693 = scalar_lea.sflag [#allocation6], %s692
          %s694 = sand.u32 %s88, 1
          %s695 = smul.addr %s694, 8
          %s696 = scalar_lea.vmem [#allocation9], %s695
          %697 = dma.done %s693, 128
        $region48: #{transformer_forward.26} parent=43 // pred_fallthru
          _
      $region44: #{transformer_forward.26} parent=5 // pred_fallthru
        _
    $region6: #{transformer_forward.26} parent=1 // loop_footer
      %s26 = sadd.s32 1, %s22
    $region7: #{transformer_forward.26} parent=1 // loop_footer_branch
      %21 = sbr.rel target = $region3
    $region8: #{transformer_forward.26} parent=1 // loop_exit
      _
    %698 = vsyncpa [#allocation5], 1
    %s699 = scalar_lea.sflag [#allocation5], 1
    %700 = vsyncpa %s699, 1
    %701 = vsyncpa [#allocation8], 1
    %s702 = scalar_lea.sflag [#allocation8], 1
    %703 = vsyncpa %s702, 1
    %704 = vsyncpa [#allocation6], 1
    %s705 = scalar_lea.sflag [#allocation6], 1
    %706 = vsyncpa %s705, 1

// kernel: transformer_forward.28
$region0: #{transformer_forward.28}
  #allocation0 [shape = 'u32[]', space=smem, size = 0x4, offset = 0x4, fixed_abs, tag = 'smem constant byte address 0x4 - core index']
  #allocation1 [shape = 'u32[144,128]{1,0:T(1,128)}', space=vmem, size = 0x12000, scoped, tag = 'internal scratch']
  %s0 = inlined_call_operand.hbm [shape: f32[16,32], index: 0, kind: input, shape index: {}]
  %s1 = inlined_call_operand.hbm [shape: f32[1,32], index: 1, kind: input, shape index: {}]
  %s2 = inlined_call_operand.hbm [shape: f32[1,32], index: 2, kind: input, shape index: {}]
  %s3 = inlined_call_operand.hbm [shape: f32[32,128], index: 3, kind: input, shape index: {}]
  %s4 = inlined_call_operand.hbm [shape: f32[1,128], index: 4, kind: input, shape index: {}]
  %s5 = inlined_call_operand.hbm [shape: f32[128,32], index: 5, kind: input, shape index: {}]
  %s6 = inlined_call_operand.hbm [shape: f32[1,32], index: 6, kind: input, shape index: {}]
  %s7 = inlined_call_operand.hbm [shape: f32[16,32], index: 7, kind: output, shape index: {}]
  %s8 = sld [smem:[#allocation0]]
  $region66: #{transformer_forward.28} parent=0
    _
  %s10 = ssub.s32 1, %s8
  %s11 = scalar_select 0, %s10, %s8
  $region1: #{transformer_forward.28} parent=0
    #allocation2 [shape = 'u8[8192]{0}', space=vmem, size = 0x2000, scoped, tag = 'input window, operand 0, single buffered']
    #allocation3 [shape = 's32[1]{0}', space=sflag, size = 0x4, scoped, tag = 'scoped memory for transformer_forward.28']
    #allocation4 [shape = 's32[1]{0}', space=sflag, size = 0x4, scoped, tag = 'scoped memory for transformer_forward.28']
    #allocation5 [shape = 'u8[512]{0}', space=vmem, size = 0x400, scoped, tag = 'input window, operand 1, single buffered']
    #allocation6 [shape = 's32[1]{0}', space=sflag, size = 0x4, scoped, tag = 'scoped memory for transformer_forward.28']
    #allocation7 [shape = 'u8[512]{0}', space=vmem, size = 0x400, scoped, tag = 'input window, operand 2, single buffered']
    #allocation8 [shape = 'u8[16384]{0}', space=vmem, size = 0x4000, scoped, tag = 'input window, operand 3, single buffered']
    #allocation9 [shape = 's32[1]{0}', space=sflag, size = 0x4, scoped, tag = 'scoped memory for transformer_forward.28']
    #allocation10 [shape = 'u8[512]{0}', space=vmem, size = 0x400, scoped, tag = 'input window, operand 4, single buffered']
    #allocation11 [shape = 'u8[65536]{0}', space=vmem, size = 0x10000, scoped, tag = 'input window, operand 5, single buffered']
    #allocation12 [shape = 's32[1]{0}', space=sflag, size = 0x4, scoped, tag = 'scoped memory for transformer_forward.28']
    #allocation13 [shape = 'u8[512]{0}', space=vmem, size = 0x400, scoped, tag = 'input window, operand 6, single buffered']
    #allocation14 [shape = 'u8[8192]{0}', space=vmem, size = 0x2000, scoped, tag = 'output window, operand 0, single buffered']
    %12 = vsyncpa [#allocation3], 0
    %13 = vsyncpa [#allocation6], 0
    %14 = vsyncpa [#allocation9], 0
    %15 = vsyncpa [#allocation12], 0
    %16 = vsyncpa [#allocation4], 0
    // Predicated region
    $region2: #{transformer_forward.28} parent=1 // pred_check
      _
    $region3: #{transformer_forward.28} parent=1 // pred_check_branch
      %18 = sbr.rel (0) target = $region5
    $region4: #{transformer_forward.28} parent=1 // pred_region
      %s20 = ssub.s32 256, 256
      %21 = vsyncadd [#allocation3], %s20
      %s22 = sshll.u32 [#allocation2], 4
      %s23 = int_to_ptr.vmem [resolvable:$true] %s22
      %28 = dma.hbm_to_vmem [thread:$0]  %s0, 256, %s23, [#allocation3], 128, 128, 8
    $region5: #{transformer_forward.28} parent=1 // pred_fallthru
      _
    // Predicated region
    $region6: #{transformer_forward.28} parent=1 // pred_check
      _
    $region7: #{transformer_forward.28} parent=1 // pred_check_branch
      %30 = sbr.rel (0) target = $region9
    $region8: #{transformer_forward.28} parent=1 // pred_region
      %s32 = ssub.s32 16, 16
      %33 = vsyncadd [#allocation6], %s32
      %s35 = sshll.u32 [#allocation5], 4
      %s36 = int_to_ptr.vmem [resolvable:$true] %s35
      %38 = dma.hbm_to_vmem [thread:$0]  %s1, 16, %s36, [#allocation6]
    $region9: #{transformer_forward.28} parent=1 // pred_fallthru
      _
    // Predicated region
    $region10: #{transformer_forward.28} parent=1 // pred_check
      _
    $region11: #{transformer_forward.28} parent=1 // pred_check_branch
      %40 = sbr.rel (0) target = $region13
    $region12: #{transformer_forward.28} parent=1 // pred_region
      %s42 = ssub.s32 16, 16
      %43 = vsyncadd [#allocation6], %s42
      %s45 = sshll.u32 [#allocation7], 4
      %s46 = int_to_ptr.vmem [resolvable:$true] %s45
      %48 = dma.hbm_to_vmem [thread:$0]  %s2, 16, %s46, [#allocation6]
    $region13: #{transformer_forward.28} parent=1 // pred_fallthru
      _
    // Predicated region
    $region14: #{transformer_forward.28} parent=1 // pred_check
      _
    $region15: #{transformer_forward.28} parent=1 // pred_check_branch
      %50 = sbr.rel (0) target = $region17
    $region16: #{transformer_forward.28} parent=1 // pred_region
      %s52 = ssub.s32 512, 512
      %53 = vsyncadd [#allocation9], %s52
      %s54 = sshll.u32 [#allocation8], 4
      %s55 = int_to_ptr.vmem [resolvable:$true] %s54
      %60 = dma.hbm_to_vmem [thread:$0]  %s3, 512, %s55, [#allocation9], 128, 128, 8
    $region17: #{transformer_forward.28} parent=1 // pred_fallthru
      _
    // Predicated region
    $region18: #{transformer_forward.28} parent=1 // pred_check
      _
    $region19: #{transformer_forward.28} parent=1 // pred_check_branch
      %62 = sbr.rel (0) target = $region21
    $region20: #{transformer_forward.28} parent=1 // pred_region
      %s64 = ssub.s32 16, 16
      %65 = vsyncadd [#allocation9], %s64
      %s67 = sshll.u32 [#allocation10], 4
      %s68 = int_to_ptr.vmem [resolvable:$true] %s67
      %70 = dma.hbm_to_vmem [thread:$0]  %s4, 16, %s68, [#allocation9]
    $region21: #{transformer_forward.28} parent=1 // pred_fallthru
      _
    // Predicated region
    $region22: #{transformer_forward.28} parent=1 // pred_check
      _
    $region23: #{transformer_forward.28} parent=1 // pred_check_branch
      %72 = sbr.rel (0) target = $region25
    $region24: #{transformer_forward.28} parent=1 // pred_region
      %s74 = ssub.s32 2048, 2048
      %75 = vsyncadd [#allocation12], %s74
      %s76 = sshll.u32 [#allocation11], 4
      %s77 = int_to_ptr.vmem [resolvable:$true] %s76
      %82 = dma.hbm_to_vmem [thread:$0]  %s5, 2048, %s77, [#allocation12], 128, 128, 8
    $region25: #{transformer_forward.28} parent=1 // pred_fallthru
      _
    // Predicated region
    $region26: #{transformer_forward.28} parent=1 // pred_check
      _
    $region27: #{transformer_forward.28} parent=1 // pred_check_branch
      %84 = sbr.rel (0) target = $region29
    $region28: #{transformer_forward.28} parent=1 // pred_region
      %s86 = ssub.s32 16, 16
      %87 = vsyncadd [#allocation12], %s86
      %s89 = sshll.u32 [#allocation13], 4
      %s90 = int_to_ptr.vmem [resolvable:$true] %s89
      %92 = dma.hbm_to_vmem [thread:$0]  %s6, 16, %s90, [#allocation12]
    $region29: #{transformer_forward.28} parent=1 // pred_fallthru
      _
    // Predicated region
    $region30: #{transformer_forward.28} parent=1 // pred_check
      _
    $region31: #{transformer_forward.28} parent=1 // pred_check_branch
      %94 = sbr.rel (0) target = $region33
    $region32: #{transformer_forward.28} parent=1 // pred_region
      %95 = dma.done [#allocation3], 256
    $region33: #{transformer_forward.28} parent=1 // pred_fallthru
      _
    // Predicated region
    $region34: #{transformer_forward.28} parent=1 // pred_check
      _
    $region35: #{transformer_forward.28} parent=1 // pred_check_branch
      %97 = sbr.rel (0) target = $region37
    $region36: #{transformer_forward.28} parent=1 // pred_region
      %98 = dma.done [#allocation6], 16
    $region37: #{transformer_forward.28} parent=1 // pred_fallthru
      _
    // Predicated region
    $region38: #{transformer_forward.28} parent=1 // pred_check
      _
    $region39: #{transformer_forward.28} parent=1 // pred_check_branch
      %100 = sbr.rel (0) target = $region41
    $region40: #{transformer_forward.28} parent=1 // pred_region
      %101 = dma.done [#allocation6], 16
    $region41: #{transformer_forward.28} parent=1 // pred_fallthru
      _
    // Predicated region
    $region42: #{transformer_forward.28} parent=1 // pred_check
      _
    $region43: #{transformer_forward.28} parent=1 // pred_check_branch
      %103 = sbr.rel (0) target = $region45
    $region44: #{transformer_forward.28} parent=1 // pred_region
      %104 = dma.done [#allocation9], 512
    $region45: #{transformer_forward.28} parent=1 // pred_fallthru
      _
    // Predicated region
    $region46: #{transformer_forward.28} parent=1 // pred_check
      _
    $region47: #{transformer_forward.28} parent=1 // pred_check_branch
      %106 = sbr.rel (0) target = $region49
    $region48: #{transformer_forward.28} parent=1 // pred_region
      %107 = dma.done [#allocation9], 16
    $region49: #{transformer_forward.28} parent=1 // pred_fallthru
      _
    // Predicated region
    $region50: #{transformer_forward.28} parent=1 // pred_check
      _
    $region51: #{transformer_forward.28} parent=1 // pred_check_branch
      %109 = sbr.rel (0) target = $region53
    $region52: #{transformer_forward.28} parent=1 // pred_region
      %110 = dma.done [#allocation12], 2048
    $region53: #{transformer_forward.28} parent=1 // pred_fallthru
      _
    // Predicated region
    $region54: #{transformer_forward.28} parent=1 // pred_check
      _
    $region55: #{transformer_forward.28} parent=1 // pred_check_branch
      %112 = sbr.rel (0) target = $region57
    $region56: #{transformer_forward.28} parent=1 // pred_region
      %113 = dma.done [#allocation12], 16
    $region57: #{transformer_forward.28} parent=1 // pred_fallthru
      _
    %v115 = vld [vmem:[#allocation2] sm:$0xff]
    %v116 = vld [vmem:[#allocation2 + $0x8] sm:$0xff]
    %vm117 = vcmask 261120
    %v118 = vsel %vm117, %v115, 0.0
    %119 = vadd.xlane.f32.xlu0 %v118
    %v120 = vpop.xlane.xlu0 %119
    %v121 = vsel %vm117, %v116, 0.0
    %122 = vadd.xlane.f32.xlu0 %v121
    %v123 = vpop.xlane.xlu0 %122
    %v124 = vrcp.pop 32.0
    %v125 = vmul.f32 %v120, %v124
    %v126 = vmul.f32 %v123, %v124
    %v127 = vsub.f32 %v115, %v125
    %v128 = vsub.f32 %v116, %v126
    %v129 = vmul.f32 %v127, %v127
    %v130 = vmul.f32 %v128, %v128
    %v131 = vsel %vm117, %v129, 0.0
    %132 = vadd.xlane.f32.xlu0 %v131
    %v133 = vpop.xlane.xlu0 %132
    %v134 = vsel %vm117, %v130, 0.0
    %135 = vadd.xlane.f32.xlu0 %v134
    %v136 = vpop.xlane.xlu0 %135
    %v137 = vmul.f32 %v133, %v124
    %v138 = vmul.f32 %v136, %v124
    %v139 = vadd.f32 %v137, 1e-05
    %v140 = vadd.f32 %v138, 1e-05
    %v141 = vrsqrt.pop %v139
    %v142 = vrsqrt.pop %v140
    %v143 = vmul.f32 %v127, %v141
    %v144 = vmul.f32 %v128, %v142
    %v145 = vld [vmem:[#allocation5] sm:$0x1]
    %v147 = vlaneseq
    %v148 = vshrl.u32 %v147, 7
    %v149 = vsub.s32 0, %v148
    %v150 = vrot.slane %v145, %v149
    %v152 = vmul.f32 %v143, %v150
    %v153 = vmul.f32 %v144, %v150
    %v154 = vld [vmem:[#allocation7] sm:$0x1]
    %v156 = vlaneseq
    %v157 = vshrl.u32 %v156, 7
    %v158 = vsub.s32 0, %v157
    %v159 = vrot.slane %v154, %v158
    %v161 = vadd.f32 %v152, %v159
    %v162 = vadd.f32 %v153, %v159
    %v163 = vpack.c.bf16 %v162, %v161
    %v164 = vld [vmem:[#allocation8] sm:$0xff]
    %v165 = vld [vmem:[#allocation8 + $0x8] sm:$0xff]
    %v166 = vld [vmem:[#allocation8 + $0x10] sm:$0xff]
    %v167 = vld [vmem:[#allocation8 + $0x18] sm:$0xff]
    %v168 = vpack.c.bf16 %v165, %v164
    %v169 = vpack.c.bf16 %v167, %v166
    %v170 = vld [vmem:[#allocation10] sm:$0x1]
    %v172 = vlaneseq
    %v173 = vshrl.u32 %v172, 7
    %v174 = vsub.s32 0, %v173
    %v175 = vrot.slane %v170, %v174
    %v178 = vsel %vm117, %v163, 0
    %180 = vmatprep.subr.bf16.mxu0 0
    %181 = vmatpush1.bf16.msra.mxu0 %v168
    %182 = vmatprep.subr.bf16.mxu0 0
    %183 = vmatpush1.bf16.msra.mxu0 %v169
    %184 = vmatprep.subr.bf16.mxu0 0
    %185 = vmatpush1.bf16.msra.mxu0 0
    %186 = vmatprep.subr.bf16.mxu0 0
    %187 = vmatpush1.bf16.msra.mxu0 0
    %188 = vmatprep.subr.bf16.mxu0 0
    %189 = vmatpush1.bf16.msra.mxu0 0
    %190 = vmatprep.subr.bf16.mxu0 0
    %191 = vmatpush1.bf16.msra.mxu0 0
    %192 = vmatprep.subr.bf16.mxu0 0
    %193 = vmatpush1.bf16.msra.mxu0 0
    %194 = vmatprep.subr.bf16.mxu0 0
    %195 = vmatpush1.bf16.msra.mxu0 0
    %196 = vmatprep.subr.bf16.mxu0 0
    %197 = vmatpush1.bf16.msra.mxu0 0
    %198 = vmatprep.subr.bf16.mxu0 0
    %199 = vmatpush1.bf16.msra.mxu0 0
    %200 = vmatprep.subr.bf16.mxu0 0
    %201 = vmatpush1.bf16.msra.mxu0 0
    %202 = vmatprep.subr.bf16.mxu0 0
    %203 = vmatpush1.bf16.msra.mxu0 0
    %204 = vmatprep.subr.bf16.mxu0 0
    %205 = vmatpush1.bf16.msra.mxu0 0
    %206 = vmatprep.subr.bf16.mxu0 0
    %207 = vmatpush1.bf16.msra.mxu0 0
    %208 = vmatprep.subr.bf16.mxu0 0
    %209 = vmatpush1.bf16.msra.mxu0 0
    %210 = vmatprep.subr.bf16.mxu0 0
    %211 = vmatpush1.bf16.msra.mxu0 0
    %212 = vmatprep.mubr.bf16.mxu0 0
    %213 = vmatmul.mubr.bf16.gmra.mrb[0].mxu0 %v178
    %v214 = vpop.f32.mrb[0].mxu0
    %v215 = vadd.f32 %v175, %v214
    %v216 = vpop.f32.mrb[0].mxu0
    %v217 = vpop.f32.mrb[0].mxu0
    %v218 = vadd.f32 %v175, %v217
    %v219 = vpop.f32.mrb[0].mxu0
    %220 = vdwg.mxu0
    %v221 = vmax.f32 %v215, 0.0
    %v222 = vmax.f32 %v218, 0.0
    %v223 = vpack.c.bf16 %v222, %v221
    %v224 = vld [vmem:[#allocation11] sm:$0xff]
    %v225 = vld [vmem:[#allocation11 + $0x8] sm:$0xff]
    %v226 = vld [vmem:[#allocation11 + $0x10] sm:$0xff]
    %v227 = vld [vmem:[#allocation11 + $0x18] sm:$0xff]
    %v228 = vld [vmem:[#allocation11 + $0x20] sm:$0xff]
    %v229 = vld [vmem:[#allocation11 + $0x28] sm:$0xff]
    %v230 = vld [vmem:[#allocation11 + $0x30] sm:$0xff]
    %v231 = vld [vmem:[#allocation11 + $0x38] sm:$0xff]
    %v232 = vld [vmem:[#allocation11 + $0x40] sm:$0xff]
    %v233 = vld [vmem:[#allocation11 + $0x48] sm:$0xff]
    %v234 = vld [vmem:[#allocation11 + $0x50] sm:$0xff]
    %v235 = vld [vmem:[#allocation11 + $0x58] sm:$0xff]
    %v236 = vld [vmem:[#allocation11 + $0x60] sm:$0xff]
    %v237 = vld [vmem:[#allocation11 + $0x68] sm:$0xff]
    %v238 = vld [vmem:[#allocation11 + $0x70] sm:$0xff]
    %v239 = vld [vmem:[#allocation11 + $0x78] sm:$0xff]
    %v240 = vpack.c.bf16 %v225, %v224
    %v241 = vpack.c.bf16 %v227, %v226
    %v242 = vpack.c.bf16 %v229, %v228
    %v243 = vpack.c.bf16 %v231, %v230
    %v244 = vpack.c.bf16 %v233, %v232
    %v245 = vpack.c.bf16 %v235, %v234
    %v246 = vpack.c.bf16 %v237, %v236
    %v247 = vpack.c.bf16 %v239, %v238
    %v248 = vld [vmem:[#allocation13] sm:$0x1]
    %v250 = vlaneseq
    %v251 = vshrl.u32 %v250, 7
    %v252 = vsub.s32 0, %v251
    %v253 = vrot.slane %v248, %v252
    %255 = vmatprep.subr.bf16.mxu0 0
    %256 = vmatpush1.bf16.msra.mxu0 %v240
    %257 = vmatprep.subr.bf16.mxu0 0
    %258 = vmatpush1.bf16.msra.mxu0 %v241
    %259 = vmatprep.subr.bf16.mxu0 0
    %260 = vmatpush1.bf16.msra.mxu0 %v242
    %261 = vmatprep.subr.bf16.mxu0 0
    %262 = vmatpush1.bf16.msra.mxu0 %v243
    %263 = vmatprep.subr.bf16.mxu0 0
    %264 = vmatpush1.bf16.msra.mxu0 %v244
    %265 = vmatprep.subr.bf16.mxu0 0
    %266 = vmatpush1.bf16.msra.mxu0 %v245
    %267 = vmatprep.subr.bf16.mxu0 0
    %268 = vmatpush1.bf16.msra.mxu0 %v246
    %269 = vmatprep.subr.bf16.mxu0 0
    %270 = vmatpush1.bf16.msra.mxu0 %v247
    %271 = vmatprep.subr.bf16.mxu0 0
    %272 = vmatpush1.bf16.msra.mxu0 0
    %273 = vmatprep.subr.bf16.mxu0 0
    %274 = vmatpush1.bf16.msra.mxu0 0
    %275 = vmatprep.subr.bf16.mxu0 0
    %276 = vmatpush1.bf16.msra.mxu0 0
    %277 = vmatprep.subr.bf16.mxu0 0
    %278 = vmatpush1.bf16.msra.mxu0 0
    %279 = vmatprep.subr.bf16.mxu0 0
    %280 = vmatpush1.bf16.msra.mxu0 0
    %281 = vmatprep.subr.bf16.mxu0 0
    %282 = vmatpush1.bf16.msra.mxu0 0
    %283 = vmatprep.subr.bf16.mxu0 0
    %284 = vmatpush1.bf16.msra.mxu0 0
    %285 = vmatprep.subr.bf16.mxu0 0
    %286 = vmatpush1.bf16.msra.mxu0 0
    %287 = vmatprep.mubr.bf16.mxu0 0
    %288 = vmatmul.mubr.bf16.gmra.mrb[0].mxu0 %v223
    %v289 = vpop.f32.mrb[0].mxu0
    %v290 = vadd.f32 %v253, %v289
    %v291 = vpop.f32.mrb[0].mxu0
    %v292 = vpop.f32.mrb[0].mxu0
    %v293 = vadd.f32 %v253, %v292
    %v294 = vpop.f32.mrb[0].mxu0
    %295 = vdwg.mxu0
    %v296 = vadd.f32 %v115, %v290
    %v297 = vadd.f32 %v116, %v293
    %298 = vst.msk [vmem:[#allocation14] sm:$0xff] %vm117, %v296
    %299 = vst.msk [vmem:[#allocation14 + $0x8] sm:$0xff] %vm117, %v297
    // Predicated region
    $region58: #{transformer_forward.28} parent=1 // pred_check
      _
    $region59: #{transformer_forward.28} parent=1 // pred_check_branch
      %301 = sbr.rel (0) target = $region61
    $region60: #{transformer_forward.28} parent=1 // pred_region
      %s303 = ssub.s32 256, 256
      %304 = vsyncadd [#allocation4], %s303
      %s305 = sshll.u32 [#allocation14], 4
      %s306 = int_to_ptr.vmem [resolvable:$true] %s305
      %311 = dma.vmem_to_hbm [thread:$0]  %s306, 256, %s7, [#allocation4], 128, 128, 8
    $region61: #{transformer_forward.28} parent=1 // pred_fallthru
      _
    // Predicated region
    $region62: #{transformer_forward.28} parent=1 // pred_check
      _
    $region63: #{transformer_forward.28} parent=1 // pred_check_branch
      %313 = sbr.rel (0) target = $region65
    $region64: #{transformer_forward.28} parent=1 // pred_region
      %314 = dma.done [#allocation4], 256
    $region65: #{transformer_forward.28} parent=1 // pred_fallthru
      _
    %315 = vsyncpa [#allocation3], 1
    %316 = vsyncpa [#allocation6], 1
    %317 = vsyncpa [#allocation9], 1
    %318 = vsyncpa [#allocation12], 1
    %319 = vsyncpa [#allocation4], 1

// kernel: transformer_forward.37
$region0: #{transformer_forward.37}
  #allocation0 [shape = 'u32[]', space=smem, size = 0x4, offset = 0x4, fixed_abs, tag = 'smem constant byte address 0x4 - core index']
  #allocation1 [shape = 'u32[144,128]{1,0:T(1,128)}', space=vmem, size = 0x12000, scoped, tag = 'internal scratch']
  %s0 = inlined_call_operand.hbm [shape: f32[16,32], index: 0, kind: input, shape index: {}]
  %s1 = inlined_call_operand.hbm [shape: f32[1,32], index: 1, kind: input, shape index: {}]
  %s2 = inlined_call_operand.hbm [shape: f32[1,32], index: 2, kind: input, shape index: {}]
  %s3 = inlined_call_operand.hbm [shape: f32[32,32], index: 3, kind: input, shape index: {}]
  %s4 = inlined_call_operand.hbm [shape: f32[16,32], index: 4, kind: output, shape index: {}]
  %s5 = sld [smem:[#allocation0]]
  $region42: #{transformer_forward.37} parent=0
    _
  %s7 = ssub.s32 1, %s5
  %s8 = scalar_select 0, %s7, %s5
  $region1: #{transformer_forward.37} parent=0
    #allocation2 [shape = 'u8[8192]{0}', space=vmem, size = 0x2000, scoped, tag = 'input window, operand 0, single buffered']
    #allocation3 [shape = 's32[1]{0}', space=sflag, size = 0x4, scoped, tag = 'scoped memory for transformer_forward.37']
    #allocation4 [shape = 's32[1]{0}', space=sflag, size = 0x4, scoped, tag = 'scoped memory for transformer_forward.37']
    #allocation5 [shape = 'u8[512]{0}', space=vmem, size = 0x400, scoped, tag = 'input window, operand 1, single buffered']
    #allocation6 [shape = 's32[1]{0}', space=sflag, size = 0x4, scoped, tag = 'scoped memory for transformer_forward.37']
    #allocation7 [shape = 'u8[512]{0}', space=vmem, size = 0x400, scoped, tag = 'input window, operand 2, single buffered']
    #allocation8 [shape = 'u8[16384]{0}', space=vmem, size = 0x4000, scoped, tag = 'input window, operand 3, single buffered']
    #allocation9 [shape = 's32[1]{0}', space=sflag, size = 0x4, scoped, tag = 'scoped memory for transformer_forward.37']
    #allocation10 [shape = 'u8[8192]{0}', space=vmem, size = 0x2000, scoped, tag = 'output window, operand 0, single buffered']
    %9 = vsyncpa [#allocation3], 0
    %10 = vsyncpa [#allocation6], 0
    %11 = vsyncpa [#allocation9], 0
    %12 = vsyncpa [#allocation4], 0
    // Predicated region
    $region2: #{transformer_forward.37} parent=1 // pred_check
      _
    $region3: #{transformer_forward.37} parent=1 // pred_check_branch
      %14 = sbr.rel (0) target = $region5
    $region4: #{transformer_forward.37} parent=1 // pred_region
      %s16 = ssub.s32 256, 256
      %17 = vsyncadd [#allocation3], %s16
      %s18 = sshll.u32 [#allocation2], 4
      %s19 = int_to_ptr.vmem [resolvable:$true] %s18
      %24 = dma.hbm_to_vmem [thread:$0]  %s0, 256, %s19, [#allocation3], 128, 128, 8
    $region5: #{transformer_forward.37} parent=1 // pred_fallthru
      _
    // Predicated region
    $region6: #{transformer_forward.37} parent=1 // pred_check
      _
    $region7: #{transformer_forward.37} parent=1 // pred_check_branch
      %26 = sbr.rel (0) target = $region9
    $region8: #{transformer_forward.37} parent=1 // pred_region
      %s28 = ssub.s32 16, 16
      %29 = vsyncadd [#allocation6], %s28
      %s31 = sshll.u32 [#allocation5], 4
      %s32 = int_to_ptr.vmem [resolvable:$true] %s31
      %34 = dma.hbm_to_vmem [thread:$0]  %s1, 16, %s32, [#allocation6]
    $region9: #{transformer_forward.37} parent=1 // pred_fallthru
      _
    // Predicated region
    $region10: #{transformer_forward.37} parent=1 // pred_check
      _
    $region11: #{transformer_forward.37} parent=1 // pred_check_branch
      %36 = sbr.rel (0) target = $region13
    $region12: #{transformer_forward.37} parent=1 // pred_region
      %s38 = ssub.s32 16, 16
      %39 = vsyncadd [#allocation6], %s38
      %s41 = sshll.u32 [#allocation7], 4
      %s42 = int_to_ptr.vmem [resolvable:$true] %s41
      %44 = dma.hbm_to_vmem [thread:$0]  %s2, 16, %s42, [#allocation6]
    $region13: #{transformer_forward.37} parent=1 // pred_fallthru
      _
    // Predicated region
    $region14: #{transformer_forward.37} parent=1 // pred_check
      _
    $region15: #{transformer_forward.37} parent=1 // pred_check_branch
      %46 = sbr.rel (0) target = $region17
    $region16: #{transformer_forward.37} parent=1 // pred_region
      %s48 = ssub.s32 512, 512
      %49 = vsyncadd [#allocation9], %s48
      %s50 = sshll.u32 [#allocation8], 4
      %s51 = int_to_ptr.vmem [resolvable:$true] %s50
      %56 = dma.hbm_to_vmem [thread:$0]  %s3, 512, %s51, [#allocation9], 128, 128, 8
    $region17: #{transformer_forward.37} parent=1 // pred_fallthru
      _
    // Predicated region
    $region18: #{transformer_forward.37} parent=1 // pred_check
      _
    $region19: #{transformer_forward.37} parent=1 // pred_check_branch
      %58 = sbr.rel (0) target = $region21
    $region20: #{transformer_forward.37} parent=1 // pred_region
      %59 = dma.done [#allocation3], 256
    $region21: #{transformer_forward.37} parent=1 // pred_fallthru
      _
    // Predicated region
    $region22: #{transformer_forward.37} parent=1 // pred_check
      _
    $region23: #{transformer_forward.37} parent=1 // pred_check_branch
      %61 = sbr.rel (0) target = $region25
    $region24: #{transformer_forward.37} parent=1 // pred_region
      %62 = dma.done [#allocation6], 16
    $region25: #{transformer_forward.37} parent=1 // pred_fallthru
      _
    // Predicated region
    $region26: #{transformer_forward.37} parent=1 // pred_check
      _
    $region27: #{transformer_forward.37} parent=1 // pred_check_branch
      %64 = sbr.rel (0) target = $region29
    $region28: #{transformer_forward.37} parent=1 // pred_region
      %65 = dma.done [#allocation6], 16
    $region29: #{transformer_forward.37} parent=1 // pred_fallthru
      _
    // Predicated region
    $region30: #{transformer_forward.37} parent=1 // pred_check
      _
    $region31: #{transformer_forward.37} parent=1 // pred_check_branch
      %67 = sbr.rel (0) target = $region33
    $region32: #{transformer_forward.37} parent=1 // pred_region
      %68 = dma.done [#allocation9], 512
    $region33: #{transformer_forward.37} parent=1 // pred_fallthru
      _
    %v70 = vld [vmem:[#allocation2] sm:$0xff]
    %v71 = vld [vmem:[#allocation2 + $0x8] sm:$0xff]
    %vm72 = vcmask 261120
    %v73 = vsel %vm72, %v70, 0.0
    %74 = vadd.xlane.f32.xlu0 %v73
    %v75 = vpop.xlane.xlu0 %74
    %v76 = vsel %vm72, %v71, 0.0
    %77 = vadd.xlane.f32.xlu0 %v76
    %v78 = vpop.xlane.xlu0 %77
    %v79 = vrcp.pop 32.0
    %v80 = vmul.f32 %v75, %v79
    %v81 = vmul.f32 %v78, %v79
    %v82 = vsub.f32 %v70, %v80
    %v83 = vsub.f32 %v71, %v81
    %v84 = vmul.f32 %v82, %v82
    %v85 = vmul.f32 %v83, %v83
    %v86 = vsel %vm72, %v84, 0.0
    %87 = vadd.xlane.f32.xlu0 %v86
    %v88 = vpop.xlane.xlu0 %87
    %v89 = vsel %vm72, %v85, 0.0
    %90 = vadd.xlane.f32.xlu0 %v89
    %v91 = vpop.xlane.xlu0 %90
    %v92 = vmul.f32 %v88, %v79
    %v93 = vmul.f32 %v91, %v79
    %v94 = vadd.f32 %v92, 1e-05
    %v95 = vadd.f32 %v93, 1e-05
    %v96 = vrsqrt.pop %v94
    %v97 = vrsqrt.pop %v95
    %v98 = vmul.f32 %v82, %v96
    %v99 = vmul.f32 %v83, %v97
    %v100 = vld [vmem:[#allocation5] sm:$0x1]
    %v102 = vlaneseq
    %v103 = vshrl.u32 %v102, 7
    %v104 = vsub.s32 0, %v103
    %v105 = vrot.slane %v100, %v104
    %v107 = vmul.f32 %v98, %v105
    %v108 = vmul.f32 %v99, %v105
    %v109 = vld [vmem:[#allocation7] sm:$0x1]
    %v111 = vlaneseq
    %v112 = vshrl.u32 %v111, 7
    %v113 = vsub.s32 0, %v112
    %v114 = vrot.slane %v109, %v113
    %v116 = vadd.f32 %v107, %v114
    %v117 = vadd.f32 %v108, %v114
    %v118 = vpack.c.bf16 %v117, %v116
    %v119 = vld [vmem:[#allocation8] sm:$0xff]
    %v120 = vld [vmem:[#allocation8 + $0x8] sm:$0xff]
    %v121 = vld [vmem:[#allocation8 + $0x10] sm:$0xff]
    %v122 = vld [vmem:[#allocation8 + $0x18] sm:$0xff]
    %v123 = vpack.c.bf16 %v120, %v119
    %v124 = vpack.c.bf16 %v122, %v121
    %v126 = vsel %vm72, %v118, 0
    %128 = vmatprep.subr.bf16.mxu0 0
    %129 = vmatpush1.bf16.msra.mxu0 %v123
    %130 = vmatprep.subr.bf16.mxu0 0
    %131 = vmatpush1.bf16.msra.mxu0 %v124
    %132 = vmatprep.subr.bf16.mxu0 0
    %133 = vmatpush1.bf16.msra.mxu0 0
    %134 = vmatprep.subr.bf16.mxu0 0
    %135 = vmatpush1.bf16.msra.mxu0 0
    %136 = vmatprep.subr.bf16.mxu0 0
    %137 = vmatpush1.bf16.msra.mxu0 0
    %138 = vmatprep.subr.bf16.mxu0 0
    %139 = vmatpush1.bf16.msra.mxu0 0
    %140 = vmatprep.subr.bf16.mxu0 0
    %141 = vmatpush1.bf16.msra.mxu0 0
    %142 = vmatprep.subr.bf16.mxu0 0
    %143 = vmatpush1.bf16.msra.mxu0 0
    %144 = vmatprep.subr.bf16.mxu0 0
    %145 = vmatpush1.bf16.msra.mxu0 0
    %146 = vmatprep.subr.bf16.mxu0 0
    %147 = vmatpush1.bf16.msra.mxu0 0
    %148 = vmatprep.subr.bf16.mxu0 0
    %149 = vmatpush1.bf16.msra.mxu0 0
    %150 = vmatprep.subr.bf16.mxu0 0
    %151 = vmatpush1.bf16.msra.mxu0 0
    %152 = vmatprep.subr.bf16.mxu0 0
    %153 = vmatpush1.bf16.msra.mxu0 0
    %154 = vmatprep.subr.bf16.mxu0 0
    %155 = vmatpush1.bf16.msra.mxu0 0
    %156 = vmatprep.subr.bf16.mxu0 0
    %157 = vmatpush1.bf16.msra.mxu0 0
    %158 = vmatprep.subr.bf16.mxu0 0
    %159 = vmatpush1.bf16.msra.mxu0 0
    %160 = vmatprep.mubr.bf16.mxu0 0
    %161 = vmatmul.mubr.bf16.gmra.mrb[0].mxu0 %v126
    %v162 = vpop.f32.mrb[0].mxu0
    %v163 = vadd.f32 0.0, %v162
    %v164 = vpop.f32.mrb[0].mxu0
    %v165 = vpop.f32.mrb[0].mxu0
    %v166 = vadd.f32 0.0, %v165
    %v167 = vpop.f32.mrb[0].mxu0
    %168 = vdwg.mxu0
    %169 = vst.msk [vmem:[#allocation10] sm:$0xff] %vm72, %v163
    %170 = vst.msk [vmem:[#allocation10 + $0x8] sm:$0xff] %vm72, %v166
    // Predicated region
    $region34: #{transformer_forward.37} parent=1 // pred_check
      _
    $region35: #{transformer_forward.37} parent=1 // pred_check_branch
      %172 = sbr.rel (0) target = $region37
    $region36: #{transformer_forward.37} parent=1 // pred_region
      %s174 = ssub.s32 256, 256
      %175 = vsyncadd [#allocation4], %s174
      %s176 = sshll.u32 [#allocation10], 4
      %s177 = int_to_ptr.vmem [resolvable:$true] %s176
      %182 = dma.vmem_to_hbm [thread:$0]  %s177, 256, %s4, [#allocation4], 128, 128, 8
    $region37: #{transformer_forward.37} parent=1 // pred_fallthru
      _
    // Predicated region
    $region38: #{transformer_forward.37} parent=1 // pred_check
      _
    $region39: #{transformer_forward.37} parent=1 // pred_check_branch
      %184 = sbr.rel (0) target = $region41
    $region40: #{transformer_forward.37} parent=1 // pred_region
      %185 = dma.done [#allocation4], 256
    $region41: #{transformer_forward.37} parent=1 // pred_fallthru
      _
    %186 = vsyncpa [#allocation3], 1
    %187 = vsyncpa [#allocation6], 1
    %188 = vsyncpa [#allocation9], 1
    %189 = vsyncpa [#allocation4], 1

// kernel: transformer_forward.49
$region0: #{transformer_forward.49}
  #allocation0 [shape = 'u32[]', space=smem, size = 0x4, offset = 0x4, fixed_abs, tag = 'smem constant byte address 0x4 - core index']
  #allocation1 [shape = 'u32[144,128]{1,0:T(1,128)}', space=vmem, size = 0x12000, scoped, tag = 'internal scratch']
  %s0 = inlined_call_operand.hbm [shape: f32[16,32], index: 0, kind: input, shape index: {}]
  %s1 = inlined_call_operand.hbm [shape: f32[1,32], index: 1, kind: input, shape index: {}]
  %s2 = inlined_call_operand.hbm [shape: f32[1,32], index: 2, kind: input, shape index: {}]
  %s3 = inlined_call_operand.hbm [shape: f32[32,16], index: 3, kind: input, shape index: {}]
  %s4 = inlined_call_operand.hbm [shape: f32[1,16], index: 4, kind: input, shape index: {}]
  %s5 = inlined_call_operand.hbm [shape: f32[16,16], index: 5, kind: output, shape index: {}]
  %s6 = sld [smem:[#allocation0]]
  $region50: #{transformer_forward.49} parent=0
    _
  %s8 = ssub.s32 1, %s6
  %s9 = scalar_select 0, %s8, %s6
  $region1: #{transformer_forward.49} parent=0
    #allocation2 [shape = 'u8[8192]{0}', space=vmem, size = 0x2000, scoped, tag = 'input window, operand 0, single buffered']
    #allocation3 [shape = 's32[1]{0}', space=sflag, size = 0x4, scoped, tag = 'scoped memory for transformer_forward.49']
    #allocation4 [shape = 's32[1]{0}', space=sflag, size = 0x4, scoped, tag = 'scoped memory for transformer_forward.49']
    #allocation5 [shape = 'u8[512]{0}', space=vmem, size = 0x400, scoped, tag = 'input window, operand 1, single buffered']
    #allocation6 [shape = 's32[1]{0}', space=sflag, size = 0x4, scoped, tag = 'scoped memory for transformer_forward.49']
    #allocation7 [shape = 'u8[512]{0}', space=vmem, size = 0x400, scoped, tag = 'input window, operand 2, single buffered']
    #allocation8 [shape = 'u8[16384]{0}', space=vmem, size = 0x4000, scoped, tag = 'input window, operand 3, single buffered']
    #allocation9 [shape = 's32[1]{0}', space=sflag, size = 0x4, scoped, tag = 'scoped memory for transformer_forward.49']
    #allocation10 [shape = 'u8[512]{0}', space=vmem, size = 0x400, scoped, tag = 'input window, operand 4, single buffered']
    #allocation11 [shape = 'u8[8192]{0}', space=vmem, size = 0x2000, scoped, tag = 'output window, operand 0, single buffered']
    %10 = vsyncpa [#allocation3], 0
    %11 = vsyncpa [#allocation6], 0
    %12 = vsyncpa [#allocation9], 0
    %13 = vsyncpa [#allocation4], 0
    // Predicated region
    $region2: #{transformer_forward.49} parent=1 // pred_check
      _
    $region3: #{transformer_forward.49} parent=1 // pred_check_branch
      %15 = sbr.rel (0) target = $region5
    $region4: #{transformer_forward.49} parent=1 // pred_region
      %s17 = ssub.s32 256, 256
      %18 = vsyncadd [#allocation3], %s17
      %s19 = sshll.u32 [#allocation2], 4
      %s20 = int_to_ptr.vmem [resolvable:$true] %s19
      %25 = dma.hbm_to_vmem [thread:$0]  %s0, 256, %s20, [#allocation3], 128, 128, 8
    $region5: #{transformer_forward.49} parent=1 // pred_fallthru
      _
    // Predicated region
    $region6: #{transformer_forward.49} parent=1 // pred_check
      _
    $region7: #{transformer_forward.49} parent=1 // pred_check_branch
      %27 = sbr.rel (0) target = $region9
    $region8: #{transformer_forward.49} parent=1 // pred_region
      %s29 = ssub.s32 16, 16
      %30 = vsyncadd [#allocation6], %s29
      %s32 = sshll.u32 [#allocation5], 4
      %s33 = int_to_ptr.vmem [resolvable:$true] %s32
      %35 = dma.hbm_to_vmem [thread:$0]  %s1, 16, %s33, [#allocation6]
    $region9: #{transformer_forward.49} parent=1 // pred_fallthru
      _
    // Predicated region
    $region10: #{transformer_forward.49} parent=1 // pred_check
      _
    $region11: #{transformer_forward.49} parent=1 // pred_check_branch
      %37 = sbr.rel (0) target = $region13
    $region12: #{transformer_forward.49} parent=1 // pred_region
      %s39 = ssub.s32 16, 16
      %40 = vsyncadd [#allocation6], %s39
      %s42 = sshll.u32 [#allocation7], 4
      %s43 = int_to_ptr.vmem [resolvable:$true] %s42
      %45 = dma.hbm_to_vmem [thread:$0]  %s2, 16, %s43, [#allocation6]
    $region13: #{transformer_forward.49} parent=1 // pred_fallthru
      _
    // Predicated region
    $region14: #{transformer_forward.49} parent=1 // pred_check
      _
    $region15: #{transformer_forward.49} parent=1 // pred_check_branch
      %47 = sbr.rel (0) target = $region17
    $region16: #{transformer_forward.49} parent=1 // pred_region
      %s49 = ssub.s32 512, 512
      %50 = vsyncadd [#allocation9], %s49
      %s51 = sshll.u32 [#allocation8], 4
      %s52 = int_to_ptr.vmem [resolvable:$true] %s51
      %57 = dma.hbm_to_vmem [thread:$0]  %s3, 512, %s52, [#allocation9], 128, 128, 8
    $region17: #{transformer_forward.49} parent=1 // pred_fallthru
      _
    // Predicated region
    $region18: #{transformer_forward.49} parent=1 // pred_check
      _
    $region19: #{transformer_forward.49} parent=1 // pred_check_branch
      %59 = sbr.rel (0) target = $region21
    $region20: #{transformer_forward.49} parent=1 // pred_region
      %s61 = ssub.s32 16, 16
      %62 = vsyncadd [#allocation9], %s61
      %s64 = sshll.u32 [#allocation10], 4
      %s65 = int_to_ptr.vmem [resolvable:$true] %s64
      %67 = dma.hbm_to_vmem [thread:$0]  %s4, 16, %s65, [#allocation9]
    $region21: #{transformer_forward.49} parent=1 // pred_fallthru
      _
    // Predicated region
    $region22: #{transformer_forward.49} parent=1 // pred_check
      _
    $region23: #{transformer_forward.49} parent=1 // pred_check_branch
      %69 = sbr.rel (0) target = $region25
    $region24: #{transformer_forward.49} parent=1 // pred_region
      %70 = dma.done [#allocation3], 256
    $region25: #{transformer_forward.49} parent=1 // pred_fallthru
      _
    // Predicated region
    $region26: #{transformer_forward.49} parent=1 // pred_check
      _
    $region27: #{transformer_forward.49} parent=1 // pred_check_branch
      %72 = sbr.rel (0) target = $region29
    $region28: #{transformer_forward.49} parent=1 // pred_region
      %73 = dma.done [#allocation6], 16
    $region29: #{transformer_forward.49} parent=1 // pred_fallthru
      _
    // Predicated region
    $region30: #{transformer_forward.49} parent=1 // pred_check
      _
    $region31: #{transformer_forward.49} parent=1 // pred_check_branch
      %75 = sbr.rel (0) target = $region33
    $region32: #{transformer_forward.49} parent=1 // pred_region
      %76 = dma.done [#allocation6], 16
    $region33: #{transformer_forward.49} parent=1 // pred_fallthru
      _
    // Predicated region
    $region34: #{transformer_forward.49} parent=1 // pred_check
      _
    $region35: #{transformer_forward.49} parent=1 // pred_check_branch
      %78 = sbr.rel (0) target = $region37
    $region36: #{transformer_forward.49} parent=1 // pred_region
      %79 = dma.done [#allocation9], 512
    $region37: #{transformer_forward.49} parent=1 // pred_fallthru
      _
    // Predicated region
    $region38: #{transformer_forward.49} parent=1 // pred_check
      _
    $region39: #{transformer_forward.49} parent=1 // pred_check_branch
      %81 = sbr.rel (0) target = $region41
    $region40: #{transformer_forward.49} parent=1 // pred_region
      %82 = dma.done [#allocation9], 16
    $region41: #{transformer_forward.49} parent=1 // pred_fallthru
      _
    %v84 = vld [vmem:[#allocation2] sm:$0xff]
    %v85 = vld [vmem:[#allocation2 + $0x8] sm:$0xff]
    %vm86 = vcmask 261120
    %v87 = vsel %vm86, %v84, 0.0
    %88 = vadd.xlane.f32.xlu0 %v87
    %v89 = vpop.xlane.xlu0 %88
    %v90 = vsel %vm86, %v85, 0.0
    %91 = vadd.xlane.f32.xlu0 %v90
    %v92 = vpop.xlane.xlu0 %91
    %v93 = vrcp.pop 32.0
    %v94 = vmul.f32 %v89, %v93
    %v95 = vmul.f32 %v92, %v93
    %v96 = vsub.f32 %v84, %v94
    %v97 = vsub.f32 %v85, %v95
    %v98 = vmul.f32 %v96, %v96
    %v99 = vmul.f32 %v97, %v97
    %v100 = vsel %vm86, %v98, 0.0
    %101 = vadd.xlane.f32.xlu0 %v100
    %v102 = vpop.xlane.xlu0 %101
    %v103 = vsel %vm86, %v99, 0.0
    %104 = vadd.xlane.f32.xlu0 %v103
    %v105 = vpop.xlane.xlu0 %104
    %v106 = vmul.f32 %v102, %v93
    %v107 = vmul.f32 %v105, %v93
    %v108 = vadd.f32 %v106, 1e-05
    %v109 = vadd.f32 %v107, 1e-05
    %v110 = vrsqrt.pop %v108
    %v111 = vrsqrt.pop %v109
    %v112 = vmul.f32 %v96, %v110
    %v113 = vmul.f32 %v97, %v111
    %v114 = vld [vmem:[#allocation5] sm:$0x1]
    %v116 = vlaneseq
    %v117 = vshrl.u32 %v116, 7
    %v118 = vsub.s32 0, %v117
    %v119 = vrot.slane %v114, %v118
    %v121 = vmul.f32 %v112, %v119
    %v122 = vmul.f32 %v113, %v119
    %v123 = vld [vmem:[#allocation7] sm:$0x1]
    %v125 = vlaneseq
    %v126 = vshrl.u32 %v125, 7
    %v127 = vsub.s32 0, %v126
    %v128 = vrot.slane %v123, %v127
    %v130 = vadd.f32 %v121, %v128
    %v131 = vadd.f32 %v122, %v128
    %v132 = vpack.c.bf16 %v131, %v130
    %v133 = vld [vmem:[#allocation8] sm:$0xff]
    %v134 = vld [vmem:[#allocation8 + $0x8] sm:$0xff]
    %v135 = vld [vmem:[#allocation8 + $0x10] sm:$0xff]
    %v136 = vld [vmem:[#allocation8 + $0x18] sm:$0xff]
    %v137 = vpack.c.bf16 %v134, %v133
    %v138 = vpack.c.bf16 %v136, %v135
    %v139 = vld [vmem:[#allocation10] sm:$0x1]
    %v141 = vlaneseq
    %v142 = vshrl.u32 %v141, 7
    %v143 = vsub.s32 0, %v142
    %v144 = vrot.slane %v139, %v143
    %v147 = vsel %vm86, %v132, 0
    %149 = vmatprep.subr.bf16.mxu0 0
    %150 = vmatpush1.bf16.msra.mxu0 %v137
    %151 = vmatprep.subr.bf16.mxu0 0
    %152 = vmatpush1.bf16.msra.mxu0 %v138
    %153 = vmatprep.subr.bf16.mxu0 0
    %154 = vmatpush1.bf16.msra.mxu0 0
    %155 = vmatprep.subr.bf16.mxu0 0
    %156 = vmatpush1.bf16.msra.mxu0 0
    %157 = vmatprep.subr.bf16.mxu0 0
    %158 = vmatpush1.bf16.msra.mxu0 0
    %159 = vmatprep.subr.bf16.mxu0 0
    %160 = vmatpush1.bf16.msra.mxu0 0
    %161 = vmatprep.subr.bf16.mxu0 0
    %162 = vmatpush1.bf16.msra.mxu0 0
    %163 = vmatprep.subr.bf16.mxu0 0
    %164 = vmatpush1.bf16.msra.mxu0 0
    %165 = vmatprep.subr.bf16.mxu0 0
    %166 = vmatpush1.bf16.msra.mxu0 0
    %167 = vmatprep.subr.bf16.mxu0 0
    %168 = vmatpush1.bf16.msra.mxu0 0
    %169 = vmatprep.subr.bf16.mxu0 0
    %170 = vmatpush1.bf16.msra.mxu0 0
    %171 = vmatprep.subr.bf16.mxu0 0
    %172 = vmatpush1.bf16.msra.mxu0 0
    %173 = vmatprep.subr.bf16.mxu0 0
    %174 = vmatpush1.bf16.msra.mxu0 0
    %175 = vmatprep.subr.bf16.mxu0 0
    %176 = vmatpush1.bf16.msra.mxu0 0
    %177 = vmatprep.subr.bf16.mxu0 0
    %178 = vmatpush1.bf16.msra.mxu0 0
    %179 = vmatprep.subr.bf16.mxu0 0
    %180 = vmatpush1.bf16.msra.mxu0 0
    %181 = vmatprep.mubr.bf16.mxu0 0
    %182 = vmatmul.mubr.bf16.gmra.mrb[0].mxu0 %v147
    %v183 = vpop.f32.mrb[0].mxu0
    %v184 = vadd.f32 %v144, %v183
    %v185 = vpop.f32.mrb[0].mxu0
    %v186 = vpop.f32.mrb[0].mxu0
    %v187 = vadd.f32 %v144, %v186
    %v188 = vpop.f32.mrb[0].mxu0
    %189 = vdwg.mxu0
    %vm190 = vcmask 130048
    %v191 = vsel %vm190, %v184, -inf
    %192 = vmax.xlane.f32.xlu0 %v191
    %v193 = vpop.xlane.xlu0 %192
    %v194 = vsel %vm190, %v187, -inf
    %195 = vmax.xlane.f32.xlu0 %v194
    %v196 = vpop.xlane.xlu0 %195
    %v197 = vsub.f32 %v184, %v193
    %v198 = vsub.f32 %v187, %v196
    %v199 = vmul.f32 %v197, 1.442695
    %v200 = vpow.pop %v199
    %v201 = vmul.f32 %v198, 1.442695
    %v202 = vpow.pop %v201
    %v203 = vsel %vm190, %v200, 0.0
    %204 = vadd.xlane.f32.xlu0 %v203
    %v205 = vpop.xlane.xlu0 %204
    %v206 = vsel %vm190, %v202, 0.0
    %207 = vadd.xlane.f32.xlu0 %v206
    %v208 = vpop.xlane.xlu0 %207
    %v209 = vlog2.pop %v205
    %v210 = vmul.f32 %v209, 0.6931472
    %v211 = vlog2.pop %v208
    %v212 = vmul.f32 %v211, 0.6931472
    %v213 = vsub.f32 %v197, %v210
    %v214 = vsub.f32 %v198, %v212
    %215 = vst.msk [vmem:[#allocation11] sm:$0xff] %vm190, %v213
    %216 = vst.msk [vmem:[#allocation11 + $0x8] sm:$0xff] %vm190, %v214
    // Predicated region
    $region42: #{transformer_forward.49} parent=1 // pred_check
      _
    $region43: #{transformer_forward.49} parent=1 // pred_check_branch
      %218 = sbr.rel (0) target = $region45
    $region44: #{transformer_forward.49} parent=1 // pred_region
      %s220 = ssub.s32 256, 256
      %221 = vsyncadd [#allocation4], %s220
      %s222 = sshll.u32 [#allocation11], 4
      %s223 = int_to_ptr.vmem [resolvable:$true] %s222
      %228 = dma.vmem_to_hbm [thread:$0]  %s223, 256, %s5, [#allocation4], 128, 128, 8
    $region45: #{transformer_forward.49} parent=1 // pred_fallthru
      _
    // Predicated region
    $region46: #{transformer_forward.49} parent=1 // pred_check
      _
    $region47: #{transformer_forward.49} parent=1 // pred_check_branch
      %230 = sbr.rel (0) target = $region49
    $region48: #{transformer_forward.49} parent=1 // pred_region
      %231 = dma.done [#allocation4], 256
    $region49: #{transformer_forward.49} parent=1 // pred_fallthru
      _
    %232 = vsyncpa [#allocation3], 1
    %233 = vsyncpa [#allocation6], 1
    %234 = vsyncpa [#allocation9], 1
    %235 = vsyncpa [#allocation4], 1

// kernel: transformer_forward.34
$region0: #{transformer_forward.34}
  #allocation0 [shape = 'u32[]', space=smem, size = 0x4, offset = 0x4, fixed_abs, tag = 'smem constant byte address 0x4 - core index']
  #allocation1 [shape = 'u32[144,128]{1,0:T(1,128)}', space=vmem, size = 0x12000, scoped, tag = 'internal scratch']
  #allocation2 [shape = 's32[1]{0}', space=sflag, size = 0x4, scoped, tag = 'scoped memory for transformer_forward.34']
  #allocation3 [shape = 'u8[512]{0}', space=smem, size = 0x200, scoped, tag = 'prefetched SMEM operand 0']
  %s0 = inlined_call_operand.hbm [shape: s32[2], index: 0, kind: input, shape index: {}]
  %s1 = inlined_call_operand.hbm [shape: f32[2,8,32], index: 1, kind: input, shape index: {}]
  %s2 = inlined_call_operand.hbm [shape: f32[2,8,32], index: 2, kind: input, shape index: {}]
  %s3 = inlined_call_operand.hbm [shape: f32[2,8,32], index: 3, kind: output, shape index: {}]
  %s4 = sld [smem:[#allocation0]]
  $region49: #{transformer_forward.34} parent=0
    _
  %s6 = ssub.s32 1, %s4
  %s7 = scalar_select 0, %s6, %s4
  %9 = dma.hbm_to_smem %s0, 16, [#allocation3], [#allocation2]
  %10 = dma.done [#allocation2], 16
  %11 = sfence
  $region1: #{transformer_forward.34} parent=0
    #allocation4 [shape = 'u8[8192]{0}', space=vmem, size = 0x2000, scoped, tag = 'input window, operand 1']
    #allocation5 [shape = 's32[2]{0}', space=sflag, size = 0x8, scoped, tag = 'scoped memory for transformer_forward.34']
    #allocation6 [shape = 's32[2]{0}', space=sflag, size = 0x8, scoped, tag = 'scoped memory for transformer_forward.34']
    #allocation7 [shape = 'u8[8192]{0}', space=vmem, size = 0x2000, scoped, tag = 'input window, operand 2']
    #allocation8 [shape = 's32[2]{0}', space=sflag, size = 0x8, scoped, tag = 'scoped memory for transformer_forward.34']
    #allocation9 [shape = 'u8[8192]{0}', space=vmem, size = 0x2000, scoped, tag = 'output window, operand 0']
    %12 = vsyncpa [#allocation5], 0
    %s13 = scalar_lea.sflag [#allocation5], 1
    %14 = vsyncpa %s13, 0
    %15 = vsyncpa [#allocation8], 0
    %s16 = scalar_lea.sflag [#allocation8], 1
    %17 = vsyncpa %s16, 0
    %18 = vsyncpa [#allocation6], 0
    %s19 = scalar_lea.sflag [#allocation6], 1
    %20 = vsyncpa %s19, 0
    loop: start=0, step=1, limit=4
    $region2: #{transformer_forward.34} parent=1 // loop_pre_header
      _
    $region3: #{transformer_forward.34} parent=1 // loop_header
      %s22 = sphi 0, %s26
      %p23 = scmp.ge.s32.totalorder %s22, 4
      %s32 = sphi 0, %s34
      %s35 = sphi 0, %s32
      %s36 = sphi 0, %s35
      %s52 = sphi 0, %s36
      %s58 = sphi 0, %s60
      %s61 = sphi 0, %s58
      %s62 = sphi 0, %s61
      %s78 = sphi 0, %s62
      %s84 = sphi 0, %s86
      %s87 = sphi 0, %s84
      %s88 = sphi 0, %s87
      %s104 = sphi 0, %s88
    $region4: #{transformer_forward.34} parent=1 // loop_header_branch
      %25 = sbr.rel (%p23) target = $region8
    $region5: #{transformer_forward.34} parent=1 // loop_body
      %s27 = ssub.s32 %s22, 1
      %s28 = ssub.s32 %s22, 2
      %s29 = sadd.s32 %s22, 1
      %s30 = ssub.s32 %s22, %s29
      %p31 = scmp.eq.s32.totalorder %s30, 0
      %s33 = sadd.s32 %s32, 1
      %s34 = scalar_select %p31, %s32, %s33
      %p37 = pneg %p31
      %p38 = scmp.eq.s32.totalorder %s22, 1
      %p39 = por %p37, %p38
      %p40 = scmp.ne.s32.totalorder %s32, %s35
      %p41 = scmp.eq.s32.totalorder %s22, 0
      %p42 = por %p40, %p41
      %p43 = scmp.ne.s32.totalorder %s32, %s35
      %p44 = scmp.eq.s32.totalorder %s27, 1
      %p45 = por %p43, %p44
      %p46 = scmp.ne.s32.totalorder %s35, %s36
      %p47 = scmp.eq.s32.totalorder %s27, 0
      %p48 = por %p46, %p47
      %p49 = scmp.ne.s32.totalorder %s35, %s36
      %p50 = scmp.eq.s32.totalorder %s28, 1
      %p51 = por %p49, %p50
      %p53 = scmp.ne.s32.totalorder %s36, %s52
      %p54 = scmp.eq.s32.totalorder %s28, 0
      %p55 = por %p53, %p54
      %s56 = ssub.s32 %s22, %s29
      %p57 = scmp.eq.s32.totalorder %s56, 0
      %s59 = sadd.s32 %s58, 1
      %s60 = scalar_select %p57, %s58, %s59
      %p63 = pneg %p57
      %p64 = scmp.eq.s32.totalorder %s22, 1
      %p65 = por %p63, %p64
      %p66 = scmp.ne.s32.totalorder %s58, %s61
      %p67 = scmp.eq.s32.totalorder %s22, 0
      %p68 = por %p66, %p67
      %p69 = scmp.ne.s32.totalorder %s58, %s61
      %p70 = scmp.eq.s32.totalorder %s27, 1
      %p71 = por %p69, %p70
      %p72 = scmp.ne.s32.totalorder %s61, %s62
      %p73 = scmp.eq.s32.totalorder %s27, 0
      %p74 = por %p72, %p73
      %p75 = scmp.ne.s32.totalorder %s61, %s62
      %p76 = scmp.eq.s32.totalorder %s28, 1
      %p77 = por %p75, %p76
      %p79 = scmp.ne.s32.totalorder %s62, %s78
      %p80 = scmp.eq.s32.totalorder %s28, 0
      %p81 = por %p79, %p80
      %s82 = ssub.s32 %s22, %s29
      %p83 = scmp.eq.s32.totalorder %s82, 0
      %s85 = sadd.s32 %s84, 1
      %s86 = scalar_select %p83, %s84, %s85
      %p89 = pneg %p83
      %p90 = scmp.eq.s32.totalorder %s22, 1
      %p91 = por %p89, %p90
      %p92 = scmp.ne.s32.totalorder %s84, %s87
      %p93 = scmp.eq.s32.totalorder %s22, 0
      %p94 = por %p92, %p93
      %p95 = scmp.ne.s32.totalorder %s84, %s87
      %p96 = scmp.eq.s32.totalorder %s27, 1
      %p97 = por %p95, %p96
      %p98 = scmp.ne.s32.totalorder %s87, %s88
      %p99 = scmp.eq.s32.totalorder %s27, 0
      %p100 = por %p98, %p99
      %p101 = scmp.ne.s32.totalorder %s87, %s88
      %p102 = scmp.eq.s32.totalorder %s28, 1
      %p103 = por %p101, %p102
      %p105 = scmp.ne.s32.totalorder %s88, %s104
      %p106 = scmp.eq.s32.totalorder %s28, 0
      %p107 = por %p105, %p106
      %p108 = scmp.le.s32.totalorder 1, %s22
      %p109 = scmp.lt.s32.totalorder %s22, 3
      %p110 = pnand %p108, %p109
      %p111 = pneg %p110
      // Predicated region
      $region9: #{transformer_forward.34} parent=5 // pred_check
        _
      $region10: #{transformer_forward.34} parent=5 // pred_check_branch
        %113 = sbr.rel (%p110) target = $region12
      $region11: #{transformer_forward.34} parent=5 // pred_region
        %s114 = ssub.s32 %s22, 1
      $region12: #{transformer_forward.34} parent=5 // pred_fallthru
        _
      %p115 = scmp.lt.s32.totalorder %s22, 2
      // Predicated region
      $region13: #{transformer_forward.34} parent=5 // pred_check
        %p116 = pneg %p115
      $region14: #{transformer_forward.34} parent=5 // pred_check_branch
        %118 = sbr.rel (%p116) target = $region16
      $region15: #{transformer_forward.34} parent=5 // pred_region
        // Predicated region
        $region17: #{transformer_forward.34} parent=15 // pred_check
          %p119 = pneg %p42
        $region18: #{transformer_forward.34} parent=15 // pred_check_branch
          %121 = sbr.rel (%p119) target = $region20
        $region19: #{transformer_forward.34} parent=15 // pred_region
          %s122 = sand.u32 %s32, 1
          %s123 = scalar_lea.sflag [#allocation5], %s122
          %s124 = sand.u32 %s32, 1
          %s125 = smul.addr %s124, 8
          %s126 = scalar_lea.vmem [#allocation4], %s125
          %s128 = ssub.s32 128, 128
          %129 = vsyncadd %s123, %s128
          %s130 = smul.addr %s22, 128
          %s131 = scalar_lea.hbm %s1, %s130
          %s133 = sshll.u32 %s126, 4
          %s134 = int_to_ptr.vmem [resolvable:$true] %s133
          %136 = dma.hbm_to_vmem [thread:$0]  %s131, 128, %s134, %s123
        $region20: #{transformer_forward.34} parent=15 // pred_fallthru
          _
        // Predicated region
        $region21: #{transformer_forward.34} parent=15 // pred_check
          %p137 = pneg %p68
        $region22: #{transformer_forward.34} parent=15 // pred_check_branch
          %139 = sbr.rel (%p137) target = $region24
        $region23: #{transformer_forward.34} parent=15 // pred_region
          %s140 = sand.u32 %s58, 1
          %s141 = scalar_lea.sflag [#allocation8], %s140
          %s142 = sand.u32 %s58, 1
          %s143 = smul.addr %s142, 8
          %s144 = scalar_lea.vmem [#allocation7], %s143
          %s146 = ssub.s32 128, 128
          %147 = vsyncadd %s141, %s146
          %s148 = smul.addr %s22, 128
          %s149 = scalar_lea.hbm %s2, %s148
          %s151 = sshll.u32 %s144, 4
          %s152 = int_to_ptr.vmem [resolvable:$true] %s151
          %154 = dma.hbm_to_vmem [thread:$0]  %s149, 128, %s152, %s141
        $region24: #{transformer_forward.34} parent=15 // pred_fallthru
          _
      $region16: #{transformer_forward.34} parent=5 // pred_fallthru
        _
      %p155 = scmp.le.s32.totalorder 1, %s22
      %p156 = scmp.lt.s32.totalorder %s22, 3
      %p157 = pnand %p155, %p156
      %p158 = pneg %p157
      // Predicated region
      $region25: #{transformer_forward.34} parent=5 // pred_check
        _
      $region26: #{transformer_forward.34} parent=5 // pred_check_branch
        %160 = sbr.rel (%p157) target = $region28
      $region27: #{transformer_forward.34} parent=5 // pred_region
        %s161 = ssub.s32 %s22, 1
        %s162 = sand.u32 %s35, 1
        %s163 = scalar_lea.sflag [#allocation5], %s162
        %s164 = sand.u32 %s35, 1
        %s165 = smul.addr %s164, 8
        %s166 = scalar_lea.vmem [#allocation4], %s165
        // Predicated region
        $region29: #{transformer_forward.34} parent=27 // pred_check
          %p167 = pneg %p48
        $region30: #{transformer_forward.34} parent=27 // pred_check_branch
          %169 = sbr.rel (%p167) target = $region32
        $region31: #{transformer_forward.34} parent=27 // pred_region
          %170 = dma.done %s163, 128
        $region32: #{transformer_forward.34} parent=27 // pred_fallthru
          _
        %s171 = sand.u32 %s61, 1
        %s172 = scalar_lea.sflag [#allocation8], %s171
        %s173 = sand.u32 %s61, 1
        %s174 = smul.addr %s173, 8
        %s175 = scalar_lea.vmem [#allocation7], %s174
        // Predicated region
        $region33: #{transformer_forward.34} parent=27 // pred_check
          %p176 = pneg %p74
        $region34: #{transformer_forward.34} parent=27 // pred_check_branch
          %178 = sbr.rel (%p176) target = $region36
        $region35: #{transformer_forward.34} parent=27 // pred_region
          %179 = dma.done %s172, 128
        $region36: #{transformer_forward.34} parent=27 // pred_fallthru
          _
        %s180 = sand.u32 %s35, 1
        %s181 = scalar_lea.sflag [#allocation5], %s180
        %s182 = sand.u32 %s35, 1
        %s183 = smul.addr %s182, 8
        %s184 = scalar_lea.vmem [#allocation4], %s183
        %p185 = pneg %p48
        %p186 = pneg %p45
        %s187 = sand.u32 %s61, 1
        %s188 = scalar_lea.sflag [#allocation8], %s187
        %s189 = sand.u32 %s61, 1
        %s190 = smul.addr %s189, 8
        %s191 = scalar_lea.vmem [#allocation7], %s190
        %p192 = pneg %p74
        %p193 = pneg %p71
        %p194 = pneg %p100
        %p195 = pneg %p97
        %s196 = sand.u32 %s87, 1
        %s197 = scalar_lea.sflag [#allocation6], %s196
        %s198 = sand.u32 %s87, 1
        %s199 = smul.addr %s198, 8
        %s200 = scalar_lea.vmem [#allocation9], %s199
        %v202 = vld [vmem:[%s166] sm:$0xff]
        %v203 = vpack.c.bf16 %v202, %v202
        %v204 = vld [vmem:[%s175] sm:$0xff]
        %v205 = vpack.c.bf16 %v204, %v204
        %v206 = vlaneseq
        %v207 = vand.u32 %v206, 127
        %v208 = vlaneseq
        %v209 = vshrl.u32 %v208, 7
        %vm210 = vcmp.gt.s32.totalorder %v207, %v209
        %vm211 = vcmask 64512
        %v213 = vsel %vm211, %v203, 0
        %v216 = vsel %vm211, %v205, 0
        %218 = vmatprep.subr.bf16.mxu0 0
        %219 = vmatpush1.bf16.xpose.msra.mxu0 %v216
        %220 = vmatprep.subr.bf16.mxu0 0
        %221 = vmatpush1.bf16.xpose.msra.mxu0 0
        %222 = vmatprep.subr.bf16.mxu0 0
        %223 = vmatpush1.bf16.xpose.msra.mxu0 0
        %224 = vmatprep.subr.bf16.mxu0 0
        %225 = vmatpush1.bf16.xpose.msra.mxu0 0
        %226 = vmatprep.subr.bf16.mxu0 0
        %227 = vmatpush1.bf16.xpose.msra.mxu0 0
        %228 = vmatprep.subr.bf16.mxu0 0
        %229 = vmatpush1.bf16.xpose.msra.mxu0 0
        %230 = vmatprep.subr.bf16.mxu0 0
        %231 = vmatpush1.bf16.xpose.msra.mxu0 0
        %232 = vmatprep.subr.bf16.mxu0 0
        %233 = vmatpush1.bf16.xpose.msra.mxu0 0
        %234 = vmatprep.subr.bf16.mxu0 0
        %235 = vmatpush1.bf16.xpose.msra.mxu0 0
        %236 = vmatprep.subr.bf16.mxu0 0
        %237 = vmatpush1.bf16.xpose.msra.mxu0 0
        %238 = vmatprep.subr.bf16.mxu0 0
        %239 = vmatpush1.bf16.xpose.msra.mxu0 0
        %240 = vmatprep.subr.bf16.mxu0 0
        %241 = vmatpush1.bf16.xpose.msra.mxu0 0
        %242 = vmatprep.subr.bf16.mxu0 0
        %243 = vmatpush1.bf16.xpose.msra.mxu0 0
        %244 = vmatprep.subr.bf16.mxu0 0
        %245 = vmatpush1.bf16.xpose.msra.mxu0 0
        %246 = vmatprep.subr.bf16.mxu0 0
        %247 = vmatpush1.bf16.xpose.msra.mxu0 0
        %248 = vmatprep.subr.bf16.mxu0 0
        %249 = vmatpush1.bf16.xpose.msra.mxu0 0
        %250 = vmatprep.mubr.bf16.mxu0 0
        %251 = vmatmul.mubr.bf16.gmra.mrb[0].mxu0 %v213
        %v252 = vpop.f32.mrb[0].mxu0
        %v253 = vadd.f32 0.0, %v252
        %v254 = vpop.f32.mrb[0].mxu0
        %v255 = vpop.f32.mrb[0].mxu0
        %v256 = vpop.f32.mrb[0].mxu0
        %257 = vdwg.mxu0
        %v258 = vsel %vm210, -inf, %v253
        %v259 = vmul.f32 %v258, 0.35355338
        %v260 = vsel %vm211, %v259, -inf
        %261 = vmax.xlane.f32.xlu0 %v260
        %v262 = vpop.xlane.xlu0 %261
        %v263 = vsub.f32 %v259, %v262
        %v264 = vmul.f32 %v263, 1.442695
        %v265 = vpow.pop %v264
        %v266 = vsel %vm211, %v265, 0.0
        %267 = vadd.xlane.f32.xlu0 %v266
        %v268 = vpop.xlane.xlu0 %267
        %v269 = vrcp.pop %v268
        %v270 = vmul.f32 %v265, %v269
        %v271 = vpack.c.bf16 %v270, %v270
        %v273 = vsel %vm211, %v271, 0
        %vm275 = vcmask 1043456
        %v276 = vsel %vm275, %v205, 0
        %278 = vmatprep.subr.bf16.mxu0 0
        %279 = vmatpush1.bf16.msra.mxu0 %v276
        %280 = vmatprep.subr.bf16.mxu0 0
        %281 = vmatpush1.bf16.msra.mxu0 0
        %282 = vmatprep.subr.bf16.mxu0 0
        %283 = vmatpush1.bf16.msra.mxu0 0
        %284 = vmatprep.subr.bf16.mxu0 0
        %285 = vmatpush1.bf16.msra.mxu0 0
        %286 = vmatprep.subr.bf16.mxu0 0
        %287 = vmatpush1.bf16.msra.mxu0 0
        %288 = vmatprep.subr.bf16.mxu0 0
        %289 = vmatpush1.bf16.msra.mxu0 0
        %290 = vmatprep.subr.bf16.mxu0 0
        %291 = vmatpush1.bf16.msra.mxu0 0
        %292 = vmatprep.subr.bf16.mxu0 0
        %293 = vmatpush1.bf16.msra.mxu0 0
        %294 = vmatprep.subr.bf16.mxu0 0
        %295 = vmatpush1.bf16.msra.mxu0 0
        %296 = vmatprep.subr.bf16.mxu0 0
        %297 = vmatpush1.bf16.msra.mxu0 0
        %298 = vmatprep.subr.bf16.mxu0 0
        %299 = vmatpush1.bf16.msra.mxu0 0
        %300 = vmatprep.subr.bf16.mxu0 0
        %301 = vmatpush1.bf16.msra.mxu0 0
        %302 = vmatprep.subr.bf16.mxu0 0
        %303 = vmatpush1.bf16.msra.mxu0 0
        %304 = vmatprep.subr.bf16.mxu0 0
        %305 = vmatpush1.bf16.msra.mxu0 0
        %306 = vmatprep.subr.bf16.mxu0 0
        %307 = vmatpush1.bf16.msra.mxu0 0
        %308 = vmatprep.subr.bf16.mxu0 0
        %309 = vmatpush1.bf16.msra.mxu0 0
        %310 = vmatprep.mubr.bf16.mxu0 0
        %311 = vmatmul.mubr.bf16.gmra.mrb[0].mxu0 %v273
        %v312 = vpop.f32.mrb[0].mxu0
        %v313 = vadd.f32 0.0, %v312
        %v314 = vpop.f32.mrb[0].mxu0
        %v315 = vpop.f32.mrb[0].mxu0
        %v316 = vpop.f32.mrb[0].mxu0
        %317 = vdwg.mxu0
        %319 = vrot.lane.b32.xlu0 %v203, 120
        %v320 = vpop.permute.xlu0 %319
        %322 = vrot.lane.b32.xlu0 %v205, 120
        %v323 = vpop.permute.xlu0 %322
        %v325 = vsel %vm211, %v320, 0
        %v328 = vsel %vm211, %v323, 0
        %330 = vmatprep.subr.bf16.mxu0 0
        %331 = vmatpush1.bf16.xpose.msra.mxu0 %v328
        %332 = vmatprep.subr.bf16.mxu0 0
        %333 = vmatpush1.bf16.xpose.msra.mxu0 0
        %334 = vmatprep.subr.bf16.mxu0 0
        %335 = vmatpush1.bf16.xpose.msra.mxu0 0
        %336 = vmatprep.subr.bf16.mxu0 0
        %337 = vmatpush1.bf16.xpose.msra.mxu0 0
        %338 = vmatprep.subr.bf16.mxu0 0
        %339 = vmatpush1.bf16.xpose.msra.mxu0 0
        %340 = vmatprep.subr.bf16.mxu0 0
        %341 = vmatpush1.bf16.xpose.msra.mxu0 0
        %342 = vmatprep.subr.bf16.mxu0 0
        %343 = vmatpush1.bf16.xpose.msra.mxu0 0
        %344 = vmatprep.subr.bf16.mxu0 0
        %345 = vmatpush1.bf16.xpose.msra.mxu0 0
        %346 = vmatprep.subr.bf16.mxu0 0
        %347 = vmatpush1.bf16.xpose.msra.mxu0 0
        %348 = vmatprep.subr.bf16.mxu0 0
        %349 = vmatpush1.bf16.xpose.msra.mxu0 0
        %350 = vmatprep.subr.bf16.mxu0 0
        %351 = vmatpush1.bf16.xpose.msra.mxu0 0
        %352 = vmatprep.subr.bf16.mxu0 0
        %353 = vmatpush1.bf16.xpose.msra.mxu0 0
        %354 = vmatprep.subr.bf16.mxu0 0
        %355 = vmatpush1.bf16.xpose.msra.mxu0 0
        %356 = vmatprep.subr.bf16.mxu0 0
        %357 = vmatpush1.bf16.xpose.msra.mxu0 0
        %358 = vmatprep.subr.bf16.mxu0 0
        %359 = vmatpush1.bf16.xpose.msra.mxu0 0
        %360 = vmatprep.subr.bf16.mxu0 0
        %361 = vmatpush1.bf16.xpose.msra.mxu0 0
        %362 = vmatprep.mubr.bf16.mxu0 0
        %363 = vmatmul.mubr.bf16.gmra.mrb[0].mxu0 %v325
        %v364 = vpop.f32.mrb[0].mxu0
        %v365 = vadd.f32 0.0, %v364
        %v366 = vpop.f32.mrb[0].mxu0
        %v367 = vpop.f32.mrb[0].mxu0
        %v368 = vpop.f32.mrb[0].mxu0
        %369 = vdwg.mxu0
        %v370 = vsel %vm210, -inf, %v365
        %v371 = vmul.f32 %v370, 0.35355338
        %v372 = vsel %vm211, %v371, -inf
        %373 = vmax.xlane.f32.xlu0 %v372
        %v374 = vpop.xlane.xlu0 %373
        %v375 = vsub.f32 %v371, %v374
        %v376 = vmul.f32 %v375, 1.442695
        %v377 = vpow.pop %v376
        %v378 = vsel %vm211, %v377, 0.0
        %379 = vadd.xlane.f32.xlu0 %v378
        %v380 = vpop.xlane.xlu0 %379
        %v381 = vrcp.pop %v380
        %v382 = vmul.f32 %v377, %v381
        %v383 = vpack.c.bf16 %v382, %v382
        %v385 = vsel %vm211, %v383, 0
        %v387 = vsel %vm275, %v323, 0
        %389 = vmatprep.subr.bf16.mxu0 0
        %390 = vmatpush1.bf16.msra.mxu0 %v387
        %391 = vmatprep.subr.bf16.mxu0 0
        %392 = vmatpush1.bf16.msra.mxu0 0
        %393 = vmatprep.subr.bf16.mxu0 0
        %394 = vmatpush1.bf16.msra.mxu0 0
        %395 = vmatprep.subr.bf16.mxu0 0
        %396 = vmatpush1.bf16.msra.mxu0 0
        %397 = vmatprep.subr.bf16.mxu0 0
        %398 = vmatpush1.bf16.msra.mxu0 0
        %399 = vmatprep.subr.bf16.mxu0 0
        %400 = vmatpush1.bf16.msra.mxu0 0
        %401 = vmatprep.subr.bf16.mxu0 0
        %402 = vmatpush1.bf16.msra.mxu0 0
        %403 = vmatprep.subr.bf16.mxu0 0
        %404 = vmatpush1.bf16.msra.mxu0 0
        %405 = vmatprep.subr.bf16.mxu0 0
        %406 = vmatpush1.bf16.msra.mxu0 0
        %407 = vmatprep.subr.bf16.mxu0 0
        %408 = vmatpush1.bf16.msra.mxu0 0
        %409 = vmatprep.subr.bf16.mxu0 0
        %410 = vmatpush1.bf16.msra.mxu0 0
        %411 = vmatprep.subr.bf16.mxu0 0
        %412 = vmatpush1.bf16.msra.mxu0 0
        %413 = vmatprep.subr.bf16.mxu0 0
        %414 = vmatpush1.bf16.msra.mxu0 0
        %415 = vmatprep.subr.bf16.mxu0 0
        %416 = vmatpush1.bf16.msra.mxu0 0
        %417 = vmatprep.subr.bf16.mxu0 0
        %418 = vmatpush1.bf16.msra.mxu0 0
        %419 = vmatprep.subr.bf16.mxu0 0
        %420 = vmatpush1.bf16.msra.mxu0 0
        %421 = vmatprep.mubr.bf16.mxu0 0
        %422 = vmatmul.mubr.bf16.gmra.mrb[0].mxu0 %v385
        %v423 = vpop.f32.mrb[0].mxu0
        %v424 = vadd.f32 0.0, %v423
        %v425 = vpop.f32.mrb[0].mxu0
        %v426 = vpop.f32.mrb[0].mxu0
        %v427 = vpop.f32.mrb[0].mxu0
        %428 = vdwg.mxu0
        %429 = vrot.lane.b32.xlu0 %v203, 112
        %v430 = vpop.permute.xlu0 %429
        %431 = vrot.lane.b32.xlu0 %v205, 112
        %v432 = vpop.permute.xlu0 %431
        %v434 = vsel %vm211, %v430, 0
        %v437 = vsel %vm211, %v432, 0
        %439 = vmatprep.subr.bf16.mxu0 0
        %440 = vmatpush1.bf16.xpose.msra.mxu0 %v437
        %441 = vmatprep.subr.bf16.mxu0 0
        %442 = vmatpush1.bf16.xpose.msra.mxu0 0
        %443 = vmatprep.subr.bf16.mxu0 0
        %444 = vmatpush1.bf16.xpose.msra.mxu0 0
        %445 = vmatprep.subr.bf16.mxu0 0
        %446 = vmatpush1.bf16.xpose.msra.mxu0 0
        %447 = vmatprep.subr.bf16.mxu0 0
        %448 = vmatpush1.bf16.xpose.msra.mxu0 0
        %449 = vmatprep.subr.bf16.mxu0 0
        %450 = vmatpush1.bf16.xpose.msra.mxu0 0
        %451 = vmatprep.subr.bf16.mxu0 0
        %452 = vmatpush1.bf16.xpose.msra.mxu0 0
        %453 = vmatprep.subr.bf16.mxu0 0
        %454 = vmatpush1.bf16.xpose.msra.mxu0 0
        %455 = vmatprep.subr.bf16.mxu0 0
        %456 = vmatpush1.bf16.xpose.msra.mxu0 0
        %457 = vmatprep.subr.bf16.mxu0 0
        %458 = vmatpush1.bf16.xpose.msra.mxu0 0
        %459 = vmatprep.subr.bf16.mxu0 0
        %460 = vmatpush1.bf16.xpose.msra.mxu0 0
        %461 = vmatprep.subr.bf16.mxu0 0
        %462 = vmatpush1.bf16.xpose.msra.mxu0 0
        %463 = vmatprep.subr.bf16.mxu0 0
        %464 = vmatpush1.bf16.xpose.msra.mxu0 0
        %465 = vmatprep.subr.bf16.mxu0 0
        %466 = vmatpush1.bf16.xpose.msra.mxu0 0
        %467 = vmatprep.subr.bf16.mxu0 0
        %468 = vmatpush1.bf16.xpose.msra.mxu0 0
        %469 = vmatprep.subr.bf16.mxu0 0
        %470 = vmatpush1.bf16.xpose.msra.mxu0 0
        %471 = vmatprep.mubr.bf16.mxu0 0
        %472 = vmatmul.mubr.bf16.gmra.mrb[0].mxu0 %v434
        %v473 = vpop.f32.mrb[0].mxu0
        %v474 = vadd.f32 0.0, %v473
        %v475 = vpop.f32.mrb[0].mxu0
        %v476 = vpop.f32.mrb[0].mxu0
        %v477 = vpop.f32.mrb[0].mxu0
        %478 = vdwg.mxu0
        %v479 = vsel %vm210, -inf, %v474
        %v480 = vmul.f32 %v479, 0.35355338
        %v481 = vsel %vm211, %v480, -inf
        %482 = vmax.xlane.f32.xlu0 %v481
        %v483 = vpop.xlane.xlu0 %482
        %v484 = vsub.f32 %v480, %v483
        %v485 = vmul.f32 %v484, 1.442695
        %v486 = vpow.pop %v485
        %v487 = vsel %vm211, %v486, 0.0
        %488 = vadd.xlane.f32.xlu0 %v487
        %v489 = vpop.xlane.xlu0 %488
        %v490 = vrcp.pop %v489
        %v491 = vmul.f32 %v486, %v490
        %v492 = vpack.c.bf16 %v491, %v491
        %v494 = vsel %vm211, %v492, 0
        %v496 = vsel %vm275, %v432, 0
        %498 = vmatprep.subr.bf16.mxu0 0
        %499 = vmatpush1.bf16.msra.mxu0 %v496
        %500 = vmatprep.subr.bf16.mxu0 0
        %501 = vmatpush1.bf16.msra.mxu0 0
        %502 = vmatprep.subr.bf16.mxu0 0
        %503 = vmatpush1.bf16.msra.mxu0 0
        %504 = vmatprep.subr.bf16.mxu0 0
        %505 = vmatpush1.bf16.msra.mxu0 0
        %506 = vmatprep.subr.bf16.mxu0 0
        %507 = vmatpush1.bf16.msra.mxu0 0
        %508 = vmatprep.subr.bf16.mxu0 0
        %509 = vmatpush1.bf16.msra.mxu0 0
        %510 = vmatprep.subr.bf16.mxu0 0
        %511 = vmatpush1.bf16.msra.mxu0 0
        %512 = vmatprep.subr.bf16.mxu0 0
        %513 = vmatpush1.bf16.msra.mxu0 0
        %514 = vmatprep.subr.bf16.mxu0 0
        %515 = vmatpush1.bf16.msra.mxu0 0
        %516 = vmatprep.subr.bf16.mxu0 0
        %517 = vmatpush1.bf16.msra.mxu0 0
        %518 = vmatprep.subr.bf16.mxu0 0
        %519 = vmatpush1.bf16.msra.mxu0 0
        %520 = vmatprep.subr.bf16.mxu0 0
        %521 = vmatpush1.bf16.msra.mxu0 0
        %522 = vmatprep.subr.bf16.mxu0 0
        %523 = vmatpush1.bf16.msra.mxu0 0
        %524 = vmatprep.subr.bf16.mxu0 0
        %525 = vmatpush1.bf16.msra.mxu0 0
        %526 = vmatprep.subr.bf16.mxu0 0
        %527 = vmatpush1.bf16.msra.mxu0 0
        %528 = vmatprep.subr.bf16.mxu0 0
        %529 = vmatpush1.bf16.msra.mxu0 0
        %530 = vmatprep.mubr.bf16.mxu0 0
        %531 = vmatmul.mubr.bf16.gmra.mrb[0].mxu0 %v494
        %v532 = vpop.f32.mrb[0].mxu0
        %v533 = vadd.f32 0.0, %v532
        %v534 = vpop.f32.mrb[0].mxu0
        %v535 = vpop.f32.mrb[0].mxu0
        %v536 = vpop.f32.mrb[0].mxu0
        %537 = vdwg.mxu0
        %538 = vrot.lane.b32.xlu0 %v203, 104
        %v539 = vpop.permute.xlu0 %538
        %540 = vrot.lane.b32.xlu0 %v205, 104
        %v541 = vpop.permute.xlu0 %540
        %v543 = vsel %vm211, %v539, 0
        %v546 = vsel %vm211, %v541, 0
        %548 = vmatprep.subr.bf16.mxu0 0
        %549 = vmatpush1.bf16.xpose.msra.mxu0 %v546
        %550 = vmatprep.subr.bf16.mxu0 0
        %551 = vmatpush1.bf16.xpose.msra.mxu0 0
        %552 = vmatprep.subr.bf16.mxu0 0
        %553 = vmatpush1.bf16.xpose.msra.mxu0 0
        %554 = vmatprep.subr.bf16.mxu0 0
        %555 = vmatpush1.bf16.xpose.msra.mxu0 0
        %556 = vmatprep.subr.bf16.mxu0 0
        %557 = vmatpush1.bf16.xpose.msra.mxu0 0
        %558 = vmatprep.subr.bf16.mxu0 0
        %559 = vmatpush1.bf16.xpose.msra.mxu0 0
        %560 = vmatprep.subr.bf16.mxu0 0
        %561 = vmatpush1.bf16.xpose.msra.mxu0 0
        %562 = vmatprep.subr.bf16.mxu0 0
        %563 = vmatpush1.bf16.xpose.msra.mxu0 0
        %564 = vmatprep.subr.bf16.mxu0 0
        %565 = vmatpush1.bf16.xpose.msra.mxu0 0
        %566 = vmatprep.subr.bf16.mxu0 0
        %567 = vmatpush1.bf16.xpose.msra.mxu0 0
        %568 = vmatprep.subr.bf16.mxu0 0
        %569 = vmatpush1.bf16.xpose.msra.mxu0 0
        %570 = vmatprep.subr.bf16.mxu0 0
        %571 = vmatpush1.bf16.xpose.msra.mxu0 0
        %572 = vmatprep.subr.bf16.mxu0 0
        %573 = vmatpush1.bf16.xpose.msra.mxu0 0
        %574 = vmatprep.subr.bf16.mxu0 0
        %575 = vmatpush1.bf16.xpose.msra.mxu0 0
        %576 = vmatprep.subr.bf16.mxu0 0
        %577 = vmatpush1.bf16.xpose.msra.mxu0 0
        %578 = vmatprep.subr.bf16.mxu0 0
        %579 = vmatpush1.bf16.xpose.msra.mxu0 0
        %580 = vmatprep.mubr.bf16.mxu0 0
        %581 = vmatmul.mubr.bf16.gmra.mrb[0].mxu0 %v543
        %v582 = vpop.f32.mrb[0].mxu0
        %v583 = vadd.f32 0.0, %v582
        %v584 = vpop.f32.mrb[0].mxu0
        %v585 = vpop.f32.mrb[0].mxu0
        %v586 = vpop.f32.mrb[0].mxu0
        %587 = vdwg.mxu0
        %v588 = vsel %vm210, -inf, %v583
        %v589 = vmul.f32 %v588, 0.35355338
        %v590 = vsel %vm211, %v589, -inf
        %591 = vmax.xlane.f32.xlu0 %v590
        %v592 = vpop.xlane.xlu0 %591
        %v593 = vsub.f32 %v589, %v592
        %v594 = vmul.f32 %v593, 1.442695
        %v595 = vpow.pop %v594
        %v596 = vsel %vm211, %v595, 0.0
        %597 = vadd.xlane.f32.xlu0 %v596
        %v598 = vpop.xlane.xlu0 %597
        %v599 = vrcp.pop %v598
        %v600 = vmul.f32 %v595, %v599
        %v601 = vpack.c.bf16 %v600, %v600
        %v603 = vsel %vm211, %v601, 0
        %v605 = vsel %vm275, %v541, 0
        %607 = vmatprep.subr.bf16.mxu0 0
        %608 = vmatpush1.bf16.msra.mxu0 %v605
        %609 = vmatprep.subr.bf16.mxu0 0
        %610 = vmatpush1.bf16.msra.mxu0 0
        %611 = vmatprep.subr.bf16.mxu0 0
        %612 = vmatpush1.bf16.msra.mxu0 0
        %613 = vmatprep.subr.bf16.mxu0 0
        %614 = vmatpush1.bf16.msra.mxu0 0
        %615 = vmatprep.subr.bf16.mxu0 0
        %616 = vmatpush1.bf16.msra.mxu0 0
        %617 = vmatprep.subr.bf16.mxu0 0
        %618 = vmatpush1.bf16.msra.mxu0 0
        %619 = vmatprep.subr.bf16.mxu0 0
        %620 = vmatpush1.bf16.msra.mxu0 0
        %621 = vmatprep.subr.bf16.mxu0 0
        %622 = vmatpush1.bf16.msra.mxu0 0
        %623 = vmatprep.subr.bf16.mxu0 0
        %624 = vmatpush1.bf16.msra.mxu0 0
        %625 = vmatprep.subr.bf16.mxu0 0
        %626 = vmatpush1.bf16.msra.mxu0 0
        %627 = vmatprep.subr.bf16.mxu0 0
        %628 = vmatpush1.bf16.msra.mxu0 0
        %629 = vmatprep.subr.bf16.mxu0 0
        %630 = vmatpush1.bf16.msra.mxu0 0
        %631 = vmatprep.subr.bf16.mxu0 0
        %632 = vmatpush1.bf16.msra.mxu0 0
        %633 = vmatprep.subr.bf16.mxu0 0
        %634 = vmatpush1.bf16.msra.mxu0 0
        %635 = vmatprep.subr.bf16.mxu0 0
        %636 = vmatpush1.bf16.msra.mxu0 0
        %637 = vmatprep.subr.bf16.mxu0 0
        %638 = vmatpush1.bf16.msra.mxu0 0
        %639 = vmatprep.mubr.bf16.mxu0 0
        %640 = vmatmul.mubr.bf16.gmra.mrb[0].mxu0 %v603
        %v641 = vpop.f32.mrb[0].mxu0
        %v642 = vadd.f32 0.0, %v641
        %v643 = vpop.f32.mrb[0].mxu0
        %v644 = vpop.f32.mrb[0].mxu0
        %v645 = vpop.f32.mrb[0].mxu0
        %646 = vdwg.mxu0
        %648 = vrot.lane.b32.xlu0 %v424, 8
        %v649 = vpop.permute.xlu0 %648
        %652 = vrot.lane.b32.xlu0 %v533, 16
        %v653 = vpop.permute.xlu0 %652
        %656 = vrot.lane.b32.xlu0 %v642, 24
        %v657 = vpop.permute.xlu0 %656
        %v659 = vsel %vm211, %v313, %v649
        %vm660 = vcmask 130048
        %v661 = vsel %vm660, %v659, %v653
        %vm662 = vcmask 195584
        %v663 = vsel %vm662, %v661, %v657
        %vm664 = vcmask 261120
        %665 = vst.msk [vmem:[%s200] sm:$0xff] %vm664, %v663
        %s666 = sand.u32 %s87, 1
        %s667 = scalar_lea.sflag [#allocation6], %s666
        %s668 = sand.u32 %s87, 1
        %s669 = smul.addr %s668, 8
        %s670 = scalar_lea.vmem [#allocation9], %s669
        // Predicated region
        $region37: #{transformer_forward.34} parent=27 // pred_check
          %p671 = pneg %p97
        $region38: #{transformer_forward.34} parent=27 // pred_check_branch
          %673 = sbr.rel (%p671) target = $region40
        $region39: #{transformer_forward.34} parent=27 // pred_region
          %s675 = ssub.s32 128, 128
          %676 = vsyncadd %s667, %s675
          %s677 = smul.addr %s27, 128
          %s678 = scalar_lea.hbm %s3, %s677
          %s680 = sshll.u32 %s670, 4
          %s681 = int_to_ptr.vmem [resolvable:$true] %s680
          %683 = dma.vmem_to_hbm [thread:$0]  %s681, 128, %s678, %s667
        $region40: #{transformer_forward.34} parent=27 // pred_fallthru
          _
      $region28: #{transformer_forward.34} parent=5 // pred_fallthru
        _
      %p684 = scmp.le.s32.totalorder 2, %s22
      // Predicated region
      $region41: #{transformer_forward.34} parent=5 // pred_check
        %p685 = pneg %p684
      $region42: #{transformer_forward.34} parent=5 // pred_check_branch
        %687 = sbr.rel (%p685) target = $region44
      $region43: #{transformer_forward.34} parent=5 // pred_region
        %s688 = ssub.s32 %s22, 2
        // Predicated region
        $region45: #{transformer_forward.34} parent=43 // pred_check
          %p689 = pneg %p103
        $region46: #{transformer_forward.34} parent=43 // pred_check_branch
          %691 = sbr.rel (%p689) target = $region48
        $region47: #{transformer_forward.34} parent=43 // pred_region
          %s692 = sand.u32 %s88, 1
          %s693 = scalar_lea.sflag [#allocation6], %s692
          %s694 = sand.u32 %s88, 1
          %s695 = smul.addr %s694, 8
          %s696 = scalar_lea.vmem [#allocation9], %s695
          %697 = dma.done %s693, 128
        $region48: #{transformer_forward.34} parent=43 // pred_fallthru
          _
      $region44: #{transformer_forward.34} parent=5 // pred_fallthru
        _
    $region6: #{transformer_forward.34} parent=1 // loop_footer
      %s26 = sadd.s32 1, %s22
    $region7: #{transformer_forward.34} parent=1 // loop_footer_branch
      %21 = sbr.rel target = $region3
    $region8: #{transformer_forward.34} parent=1 // loop_exit
      _
    %698 = vsyncpa [#allocation5], 1
    %s699 = scalar_lea.sflag [#allocation5], 1
    %700 = vsyncpa %s699, 1
    %701 = vsyncpa [#allocation8], 1
    %s702 = scalar_lea.sflag [#allocation8], 1
    %703 = vsyncpa %s702, 1
    %704 = vsyncpa [#allocation6], 1
    %s705 = scalar_lea.sflag [#allocation6], 1
    %706 = vsyncpa %s705, 1

</llo_original>
